<compile_context>
chip_gen: v7x
topology: tpu7x:2x2x1
jax: 0.10.0
libtpu: 0.0.40
codegen_flags: <defaults>
</compile_context>

<pallas_src>
import functools

import jax
import jax.numpy as jnp
from jax.experimental import pallas as pl
from jax.experimental.pallas import tpu as pltpu

MM_DTYPE = jnp.bfloat16   # MXU operand dtype (f32 accumulation everywhere)
K1_PAD = 32               # layer-1 im2col K (3*3*3 = 27, zero-padded to 32)


# ----------------------------- Pallas kernel -------------------------------

def _fcn_kernel(p1_ref, w1_ref, b1_ref, w2_ref, b2_ref, w3_ref, b3_ref,
                w4_ref, b4_ref, mask_ref, o_ref, buf64_ref, buf128_ref,
                *, body, guard, padded_w):
    """Whole network on one resident block.

    body       = N * (OH+2) * padded_w  (row-major flattened padded feature map)
    buf64_ref  = bf16 (body + 2*guard, 64)  scratch: layer-1 output, padded-flat
    buf128_ref = bf16 (body + 2*guard, 128) scratch: layer-2 output, padded-flat
    mask_ref   = (body, 1) f32: 1.0 at interior positions, 0.0 at border rows /
                 extra padded columns.

    Correctness invariants of the shifted-flat 3x3 scheme:
      (a) guard >= padded_w + 1 (shifted slices stay in-bounds),
      (b) every non-interior row a shifted tap can touch is zero: guard rows
          are zeroed below, border body rows are zeroed by `* mask` at every
          layer that feeds a 3x3 conv (layers 1 and 2).
    """
    # Zero ONLY the guard rows; every body row is overwritten below.
    buf64_ref[0:guard, :] = jnp.zeros((guard, 64), MM_DTYPE)
    buf64_ref[guard + body:guard + body + guard, :] = jnp.zeros((guard, 64), MM_DTYPE)
    buf128_ref[0:guard, :] = jnp.zeros((guard, 128), MM_DTYPE)
    buf128_ref[guard + body:guard + body + guard, :] = jnp.zeros((guard, 128), MM_DTYPE)

    mask = mask_ref[...]                                           # (body, 1)

    # ---- layer 1: 3x3 stride-16 conv (im2col rows precomputed) + BN + ReLU
    y = jnp.dot(p1_ref[...], w1_ref[...], preferred_element_type=jnp.float32)
    y = jnp.maximum(y + b1_ref[...], 0.0) * mask                   # (body, 64)
    buf64_ref[guard:guard + body, :] = y.astype(MM_DTYPE)

    # ---- 3x3 pad=1 conv as 9 shifted matmuls over a padded flat bf16 buffer
    def conv3x3(buf_ref, w_ref):
        # TODO(synk): on v7x the 9 taps could be staged into one (body, 9*C)
        # slab and issued as a single matmul (MRB in-place accumulate); kept
        # as chained dots here since slab staging doubles VMEM traffic.
        acc = jnp.zeros((body, 128), jnp.float32)
        for kh in range(3):
            for kw in range(3):
                start = guard + (kh - 1) * padded_w + (kw - 1)     # static
                xin = buf_ref[start:start + body, :]               # bf16, no cast
                acc = acc + jnp.dot(xin, w_ref[kh * 3 + kw],
                                    preferred_element_type=jnp.float32)
        return acc

    # ---- layer 2: Conv(64->128, k3, p1) + BN + ReLU  (K = 64, unpadded w2)
    y = jnp.maximum(conv3x3(buf64_ref, w2_ref) + b2_ref[...], 0.0) * mask
    buf128_ref[guard:guard + body, :] = y.astype(MM_DTYPE)

    # ---- layer 3: Conv(128->128, k3, p1) + BN + ReLU
    y = jnp.maximum(conv3x3(buf128_ref, w3_ref) + b3_ref[...], 0.0)
    # (no mask needed: layer 4 is 1x1; border rows are discarded by wrapper)

    # ---- layer 4: Conv(128->2, k1); out channels padded to 128 -> lane-dense
    out = jnp.dot(y.astype(MM_DTYPE), w4_ref[...],
                  preferred_element_type=jnp.float32) + b4_ref[...]
    o_ref[...] = out.astype(o_ref.dtype)


# ------------------------------ JAX glue ------------------------------------

def _layer1_patches(x, oh, ow, padded_w, k=3, stride=16, padding=1):
    """x:(N,H,W,3) -> (N*(OH+2)*padded_w, K1_PAD) im2col rows in padded-flat
    row order (zero rows at the padded border / extra columns).  Patch element
    order is (kh, kw, Cin), zero-padded 27 -> K1_PAD."""
    n, h, w, c = x.shape
    xp = jnp.pad(x, ((0, 0), (padding, padding), (padding, padding), (0, 0)))
    taps = []
    for di in range(k):
        for dj in range(k):
            taps.append(xp[:, di:di + stride * oh:stride,
                           dj:dj + stride * ow:stride, :])
    cols = jnp.stack(taps, axis=3).reshape(n, oh, ow, k * k * c)   # (n,oh,ow,27)
    cols = jnp.pad(cols, ((0, 0), (1, 1), (1, padded_w - ow - 1),
                          (0, K1_PAD - k * k * c)))
    return cols.reshape(n * (oh + 2) * padded_w, K1_PAD)


def prepare_params(p, eps=1e-5):
    """One-time offline prep: fold eval-mode BN into weights/bias, rearrange
    conv weights for the kernel, pad to lane-friendly widths, cast to bf16.
    Keep the result device-resident (it is re-used across forward calls)."""
    # TODO(synk): training-mode BatchNorm (batch statistics) is not implemented.
    def fold_conv_bn(w_oihw, b, gamma, beta, mean, var):
        scale = gamma * jax.lax.rsqrt(var + eps)                   # per Cout
        w = jnp.transpose(w_oihw, (2, 3, 1, 0)) * scale            # (kh,kw,ci,co)
        bias = scale * (b - mean) + beta
        return w, bias

    prep = {}
    # layer 1: 3->64, k3 (BN1 folded); im2col K zero-padded 27 -> K1_PAD
    w, bias = fold_conv_bn(p["w1"], p["b1"], p["g1"], p["beta1"], p["m1"], p["v1"])
    prep["w1"] = jnp.pad(w.reshape(27, 64),
                         ((0, K1_PAD - 27), (0, 0))).astype(MM_DTYPE)
    prep["b1"] = bias.reshape(1, 64).astype(jnp.float32)

    # layer 2: 64->128, k3 (BN2 folded); input channels NOT padded (K = 64)
    w, bias = fold_conv_bn(p["w2"], p["b2"], p["g2"], p["beta2"], p["m2"], p["v2"])
    prep["w2"] = w.reshape(9, 64, 128).astype(MM_DTYPE)
    prep["b2"] = bias.reshape(1, 128).astype(jnp.float32)

    # layer 3: 128->128, k3 (BN3 folded)
    w, bias = fold_conv_bn(p["w3"], p["b3"], p["g3"], p["beta3"], p["m3"], p["v3"])
    prep["w3"] = w.reshape(9, 128, 128).astype(MM_DTYPE)
    prep["b3"] = bias.reshape(1, 128).astype(jnp.float32)

    # layer 4: 128->2, k1, no BN (out channels zero-padded 2->128 -> lane-dense)
    w4 = jnp.transpose(p["w4"], (2, 3, 1, 0)).reshape(128, 2)
    prep["w4"] = jnp.pad(w4, ((0, 0), (0, 126))).astype(MM_DTYPE)
    prep["b4"] = jnp.pad(p["b4"], (0, 126)).reshape(1, 128).astype(jnp.float32)
    return prep


def init_params(key):
    def conv(key, cout, cin, k):
        kw_, kb_ = jax.random.split(key)
        fan_in = cin * k * k
        w = jax.random.normal(kw_, (cout, cin, k, k), jnp.float32) / jnp.sqrt(fan_in)
        b = 0.01 * jax.random.normal(kb_, (cout,), jnp.float32)
        return w, b

    def bn(key, c):
        k1, k2, k3, k4 = jax.random.split(key, 4)
        gamma = 1.0 + 0.1 * jax.random.normal(k1, (c,), jnp.float32)
        beta = 0.1 * jax.random.normal(k2, (c,), jnp.float32)
        mean = 0.1 * jax.random.normal(k3, (c,), jnp.float32)
        var = 1.0 + 0.1 * jnp.abs(jax.random.normal(k4, (c,), jnp.float32))
        return gamma, beta, mean, var

    keys = jax.random.split(key, 8)
    p = {}
    p["w1"], p["b1"] = conv(keys[0], 64, 3, 3)      # init_conv: 3->64, k3, s16, p1
    p["g1"], p["beta1"], p["m1"], p["v1"] = bn(keys[1], 64)
    p["w2"], p["b2"] = conv(keys[2], 128, 64, 3)    # conv_block[0]
    p["g2"], p["beta2"], p["m2"], p["v2"] = bn(keys[3], 128)
    p["w3"], p["b3"] = conv(keys[4], 128, 128, 3)   # conv_block[3]
    p["g3"], p["beta3"], p["m3"], p["v3"] = bn(keys[5], 128)
    p["w4"], p["b4"] = conv(keys[6], 2, 128, 1)     # conv_block[6]
    return p


def forward(x_nhwc, prep):
    """x_nhwc: (N, H, W, 3) float32. Returns NCHW (N, 2, OH, OW) float32."""
    n, h, w, _ = x_nhwc.shape
    oh = (h + 2 - 3) // 16 + 1
    ow = (w + 2 - 3) // 16 + 1
    padded_h = oh + 2
    padded_w = ((ow + 2 + 7) // 8) * 8              # multiple of 8: aligned kh shifts
    body = n * padded_h * padded_w                  # multiple of 8: unmasked stores
    guard = max(16, -(-(padded_w + 1) // 16) * 16)  # >= padded_w+1, 16-aligned

    # Layer-1 im2col in padded-flat row order (XLA glue; matmul is in-kernel).
    # TODO(synk): stride-16 patch extraction could also move in-kernel via
    # strided VMEM loads; kept in XLA for lowering robustness at these sizes.
    p1 = _layer1_patches(x_nhwc, oh, ow, padded_w).astype(MM_DTYPE)

    mask = jnp.pad(jnp.ones((n, oh, ow, 1), jnp.float32),
                   ((0, 0), (1, 1), (1, padded_w - ow - 1), (0, 0)))
    mask = mask.reshape(body, 1)

    flops = 2 * body * (K1_PAD * 64 + 9 * 64 * 128 + 9 * 128 * 128 + 128 * 128)
    bytes_accessed = (body * K1_PAD * 2 + K1_PAD * 64 * 2      # p1, w1
                      + 9 * 64 * 128 * 2 + 9 * 128 * 128 * 2   # w2, w3
                      + 128 * 128 * 2 + 4 * 128 * 4            # w4, biases
                      + body * 4 + body * 128 * 4)             # mask, out

    kernel = functools.partial(_fcn_kernel, body=body, guard=guard,
                               padded_w=padded_w)
    vmem = pl.BlockSpec(memory_space=pltpu.MemorySpace.VMEM)
    out = pl.pallas_call(
        kernel,
        out_shape=jax.ShapeDtypeStruct((body, 128), jnp.float32),
        in_specs=[vmem] * 10,
        out_specs=vmem,
        scratch_shapes=[pltpu.VMEM((body + 2 * guard, 64), MM_DTYPE),
                        pltpu.VMEM((body + 2 * guard, 128), MM_DTYPE)],
        compiler_params=pltpu.CompilerParams(vmem_limit_bytes=32 * 1024 * 1024),
        cost_estimate=pl.CostEstimate(flops=flops, transcendentals=0,
                                      bytes_accessed=bytes_accessed),
        # TODO(synk): for large N / resolution, add an M-grid over images with
        # dimension_semantics=("parallel",) to use both v7x TensorCores.
    )(p1, prep["w1"], prep["b1"], prep["w2"], prep["b2"],
      prep["w3"], prep["b3"], prep["w4"], prep["b4"], mask)

    # Drop padded-border rows / extra columns and the zero-padded out channels.
    out = out.reshape(n, padded_h, padded_w, 128)[:, 1:1 + oh, 1:1 + ow, :2]
    return jnp.transpose(out, (0, 3, 1, 2))                      # NCHW


# --------------------------------- main -------------------------------------

if __name__ == "__main__":
    key = jax.random.PRNGKey(0)
    k_x, k_p = jax.random.split(key)
    # Module expects NHWC input with 3 channels; 64x64 spatial -> 4x4 output.
    x = jax.random.normal(k_x, (2, 64, 64, 3), jnp.float32)
    params = init_params(k_p)
    prep = prepare_params(params)   # one-time offline prep; stays device-resident

    out = jax.jit(forward)(x, prep)
    out = jax.block_until_ready(out)
    assert out.shape == (2, 2, 4, 4), out.shape
    assert jnp.isfinite(out).all()
    print("KERNEL_OK")
</pallas_src>

<mosaic_0001>
module attributes {stable_mosaic.version = 11 : i64} {
  func.func @_fcn_kernel(%arg0: memref<96x32xbf16, #tpu.memory_space<vmem>>, %arg1: memref<32x64xbf16, #tpu.memory_space<vmem>>, %arg2: memref<1x64xf32, #tpu.memory_space<vmem>>, %arg3: memref<9x64x128xbf16, #tpu.memory_space<vmem>>, %arg4: memref<1x128xf32, #tpu.memory_space<vmem>>, %arg5: memref<9x128x128xbf16, #tpu.memory_space<vmem>>, %arg6: memref<1x128xf32, #tpu.memory_space<vmem>>, %arg7: memref<128x128xbf16, #tpu.memory_space<vmem>>, %arg8: memref<1x128xf32, #tpu.memory_space<vmem>>, %arg9: memref<96x1xf32, #tpu.memory_space<vmem>>, %arg10: memref<96x128xf32, #tpu.memory_space<vmem>>, %arg11: memref<128x64xbf16, #tpu.memory_space<vmem>>, %arg12: memref<128x128xbf16, #tpu.memory_space<vmem>>) attributes {dimension_semantics = [], scalar_prefetch = 0 : i64, scratch_operands = 2 : i64, tpu.core_type = #tpu.core_type<tc>} {
    %cst = arith.constant 0.000000e+00 : bf16
    %0 = vector.broadcast %cst : bf16 to vector<16x64xbf16>
    %c0 = arith.constant 0 : index
    %c0_0 = arith.constant 0 : index
    %1 = vector.load %arg11[%c0, %c0_0] : memref<128x64xbf16, #tpu.memory_space<vmem>>, vector<16x64xbf16>
    tpu.vector_store %arg11[%c0, %c0_0], %0 {strides = array<i32>} : memref<128x64xbf16, #tpu.memory_space<vmem>>, vector<16x64xbf16>,
    %cst_1 = arith.constant 0.000000e+00 : bf16
    %2 = vector.broadcast %cst_1 : bf16 to vector<16x64xbf16>
    %c112 = arith.constant 112 : index
    %c0_2 = arith.constant 0 : index
    %3 = vector.load %arg11[%c112, %c0_2] : memref<128x64xbf16, #tpu.memory_space<vmem>>, vector<16x64xbf16>
    tpu.vector_store %arg11[%c112, %c0_2], %2 {strides = array<i32>} : memref<128x64xbf16, #tpu.memory_space<vmem>>, vector<16x64xbf16>,
    %cst_3 = arith.constant 0.000000e+00 : bf16
    %4 = vector.broadcast %cst_3 : bf16 to vector<16x128xbf16>
    %c0_4 = arith.constant 0 : index
    %c0_5 = arith.constant 0 : index
    %5 = vector.load %arg12[%c0_4, %c0_5] : memref<128x128xbf16, #tpu.memory_space<vmem>>, vector<16x128xbf16>
    tpu.vector_store %arg12[%c0_4, %c0_5], %4 {strides = array<i32>} : memref<128x128xbf16, #tpu.memory_space<vmem>>, vector<16x128xbf16>,
    %cst_6 = arith.constant 0.000000e+00 : bf16
    %6 = vector.broadcast %cst_6 : bf16 to vector<16x128xbf16>
    %c112_7 = arith.constant 112 : index
    %c0_8 = arith.constant 0 : index
    %7 = vector.load %arg12[%c112_7, %c0_8] : memref<128x128xbf16, #tpu.memory_space<vmem>>, vector<16x128xbf16>
    tpu.vector_store %arg12[%c112_7, %c0_8], %6 {strides = array<i32>} : memref<128x128xbf16, #tpu.memory_space<vmem>>, vector<16x128xbf16>,
    %c0_9 = arith.constant 0 : index
    %c0_10 = arith.constant 0 : index
    %8 = vector.load %arg9[%c0_9, %c0_10] : memref<96x1xf32, #tpu.memory_space<vmem>>, vector<96x1xf32>
    %c0_11 = arith.constant 0 : index
    %c0_12 = arith.constant 0 : index
    %9 = vector.load %arg0[%c0_11, %c0_12] : memref<96x32xbf16, #tpu.memory_space<vmem>>, vector<96x32xbf16>
    %c0_13 = arith.constant 0 : index
    %c0_14 = arith.constant 0 : index
    %10 = vector.load %arg1[%c0_13, %c0_14] : memref<32x64xbf16, #tpu.memory_space<vmem>>, vector<32x64xbf16>
    %cst_15 = arith.constant dense<0.000000e+00> : vector<96x64xf32>
    %11 = tpu.matmul %9, %10, %cst_15 {dimension_numbers = #tpu.dot_dimension_numbers<[1], [0], [0], [1], [0, 0, 1, 1], [], []>} : vector<96x32xbf16>, vector<32x64xbf16>, vector<96x64xf32> -> vector<96x64xf32>
    %c0_16 = arith.constant 0 : index
    %c0_17 = arith.constant 0 : index
    %12 = vector.load %arg2[%c0_16, %c0_17] : memref<1x64xf32, #tpu.memory_space<vmem>>, vector<1x64xf32>
    %13 = vector.broadcast %12 : vector<1x64xf32> to vector<96x64xf32>
    %14 = arith.addf %11, %13 : vector<96x64xf32>
    %cst_18 = arith.constant 0.000000e+00 : f32
    %15 = vector.broadcast %cst_18 : f32 to vector<96x64xf32>
    %16 = arith.maximumf %14, %15 : vector<96x64xf32>
    %17 = vector.broadcast %8 : vector<96x1xf32> to vector<96x64xf32>
    %18 = arith.mulf %16, %17 : vector<96x64xf32>
    %19 = arith.truncf %18 : vector<96x64xf32> to vector<96x64xbf16>
    %c16 = arith.constant 16 : index
    %c0_19 = arith.constant 0 : index
    %20 = vector.load %arg11[%c16, %c0_19] : memref<128x64xbf16, #tpu.memory_space<vmem>>, vector<96x64xbf16>
    tpu.vector_store %arg11[%c16, %c0_19], %19 {strides = array<i32>} : memref<128x64xbf16, #tpu.memory_space<vmem>>, vector<96x64xbf16>,
    %cst_20 = arith.constant 0.000000e+00 : f32
    %21 = vector.broadcast %cst_20 : f32 to vector<96x128xf32>
    %c7 = arith.constant 7 : index
    %c0_21 = arith.constant 0 : index
    %22 = vector.load %arg11[%c7, %c0_21] : memref<128x64xbf16, #tpu.memory_space<vmem>>, vector<96x64xbf16>
    %c0_22 = arith.constant 0 : index
    %c0_23 = arith.constant 0 : index
    %c0_24 = arith.constant 0 : index
    %23 = vector.load %arg3[%c0_22, %c0_23, %c0_24] : memref<9x64x128xbf16, #tpu.memory_space<vmem>>, vector<1x64x128xbf16>
    %24 = vector.shape_cast %23 : vector<1x64x128xbf16> to vector<64x128xbf16>
    %cst_25 = arith.constant dense<0.000000e+00> : vector<96x128xf32>
    %25 = tpu.matmul %22, %24, %cst_25 {dimension_numbers = #tpu.dot_dimension_numbers<[1], [0], [0], [1], [0, 0, 1, 1], [], []>} : vector<96x64xbf16>, vector<64x128xbf16>, vector<96x128xf32> -> vector<96x128xf32>
    %26 = arith.addf %21, %25 : vector<96x128xf32>
    %c8 = arith.constant 8 : index
    %c0_26 = arith.constant 0 : index
    %27 = vector.load %arg11[%c8, %c0_26] : memref<128x64xbf16, #tpu.memory_space<vmem>>, vector<96x64xbf16>
    %c1 = arith.constant 1 : index
    %c0_27 = arith.constant 0 : index
    %c0_28 = arith.constant 0 : index
    %28 = vector.load %arg3[%c1, %c0_27, %c0_28] : memref<9x64x128xbf16, #tpu.memory_space<vmem>>, vector<1x64x128xbf16>
    %29 = vector.shape_cast %28 : vector<1x64x128xbf16> to vector<64x128xbf16>
    %cst_29 = arith.constant dense<0.000000e+00> : vector<96x128xf32>
    %30 = tpu.matmul %27, %29, %cst_29 {dimension_numbers = #tpu.dot_dimension_numbers<[1], [0], [0], [1], [0, 0, 1, 1], [], []>} : vector<96x64xbf16>, vector<64x128xbf16>, vector<96x128xf32> -> vector<96x128xf32>
    %31 = arith.addf %26, %30 : vector<96x128xf32>
    %c9 = arith.constant 9 : index
    %c0_30 = arith.constant 0 : index
    %32 = vector.load %arg11[%c9, %c0_30] : memref<128x64xbf16, #tpu.memory_space<vmem>>, vector<96x64xbf16>
    %c2 = arith.constant 2 : index
    %c0_31 = arith.constant 0 : index
    %c0_32 = arith.constant 0 : index
    %33 = vector.load %arg3[%c2, %c0_31, %c0_32] : memref<9x64x128xbf16, #tpu.memory_space<vmem>>, vector<1x64x128xbf16>
    %34 = vector.shape_cast %33 : vector<1x64x128xbf16> to vector<64x128xbf16>
    %cst_33 = arith.constant dense<0.000000e+00> : vector<96x128xf32>
    %35 = tpu.matmul %32, %34, %cst_33 {dimension_numbers = #tpu.dot_dimension_numbers<[1], [0], [0], [1], [0, 0, 1, 1], [], []>} : vector<96x64xbf16>, vector<64x128xbf16>, vector<96x128xf32> -> vector<96x128xf32>
    %36 = arith.addf %31, %35 : vector<96x128xf32>
    %c15 = arith.constant 15 : index
    %c0_34 = arith.constant 0 : index
    %37 = vector.load %arg11[%c15, %c0_34] : memref<128x64xbf16, #tpu.memory_space<vmem>>, vector<96x64xbf16>
    %c3 = arith.constant 3 : index
    %c0_35 = arith.constant 0 : index
    %c0_36 = arith.constant 0 : index
    %38 = vector.load %arg3[%c3, %c0_35, %c0_36] : memref<9x64x128xbf16, #tpu.memory_space<vmem>>, vector<1x64x128xbf16>
    %39 = vector.shape_cast %38 : vector<1x64x128xbf16> to vector<64x128xbf16>
    %cst_37 = arith.constant dense<0.000000e+00> : vector<96x128xf32>
    %40 = tpu.matmul %37, %39, %cst_37 {dimension_numbers = #tpu.dot_dimension_numbers<[1], [0], [0], [1], [0, 0, 1, 1], [], []>} : vector<96x64xbf16>, vector<64x128xbf16>, vector<96x128xf32> -> vector<96x128xf32>
    %41 = arith.addf %36, %40 : vector<96x128xf32>
    %c16_38 = arith.constant 16 : index
    %c0_39 = arith.constant 0 : index
    %42 = vector.load %arg11[%c16_38, %c0_39] : memref<128x64xbf16, #tpu.memory_space<vmem>>, vector<96x64xbf16>
    %c4 = arith.constant 4 : index
    %c0_40 = arith.constant 0 : index
    %c0_41 = arith.constant 0 : index
    %43 = vector.load %arg3[%c4, %c0_40, %c0_41] : memref<9x64x128xbf16, #tpu.memory_space<vmem>>, vector<1x64x128xbf16>
    %44 = vector.shape_cast %43 : vector<1x64x128xbf16> to vector<64x128xbf16>
    %cst_42 = arith.constant dense<0.000000e+00> : vector<96x128xf32>
    %45 = tpu.matmul %42, %44, %cst_42 {dimension_numbers = #tpu.dot_dimension_numbers<[1], [0], [0], [1], [0, 0, 1, 1], [], []>} : vector<96x64xbf16>, vector<64x128xbf16>, vector<96x128xf32> -> vector<96x128xf32>
    %46 = arith.addf %41, %45 : vector<96x128xf32>
    %c17 = arith.constant 17 : index
    %c0_43 = arith.constant 0 : index
    %47 = vector.load %arg11[%c17, %c0_43] : memref<128x64xbf16, #tpu.memory_space<vmem>>, vector<96x64xbf16>
    %c5 = arith.constant 5 : index
    %c0_44 = arith.constant 0 : index
    %c0_45 = arith.constant 0 : index
    %48 = vector.load %arg3[%c5, %c0_44, %c0_45] : memref<9x64x128xbf16, #tpu.memory_space<vmem>>, vector<1x64x128xbf16>
    %49 = vector.shape_cast %48 : vector<1x64x128xbf16> to vector<64x128xbf16>
    %cst_46 = arith.constant dense<0.000000e+00> : vector<96x128xf32>
    %50 = tpu.matmul %47, %49, %cst_46 {dimension_numbers = #tpu.dot_dimension_numbers<[1], [0], [0], [1], [0, 0, 1, 1], [], []>} : vector<96x64xbf16>, vector<64x128xbf16>, vector<96x128xf32> -> vector<96x128xf32>
    %51 = arith.addf %46, %50 : vector<96x128xf32>
    %c23 = arith.constant 23 : index
    %c0_47 = arith.constant 0 : index
    %52 = vector.load %arg11[%c23, %c0_47] : memref<128x64xbf16, #tpu.memory_space<vmem>>, vector<96x64xbf16>
    %c6 = arith.constant 6 : index
    %c0_48 = arith.constant 0 : index
    %c0_49 = arith.constant 0 : index
    %53 = vector.load %arg3[%c6, %c0_48, %c0_49] : memref<9x64x128xbf16, #tpu.memory_space<vmem>>, vector<1x64x128xbf16>
    %54 = vector.shape_cast %53 : vector<1x64x128xbf16> to vector<64x128xbf16>
    %cst_50 = arith.constant dense<0.000000e+00> : vector<96x128xf32>
    %55 = tpu.matmul %52, %54, %cst_50 {dimension_numbers = #tpu.dot_dimension_numbers<[1], [0], [0], [1], [0, 0, 1, 1], [], []>} : vector<96x64xbf16>, vector<64x128xbf16>, vector<96x128xf32> -> vector<96x128xf32>
    %56 = arith.addf %51, %55 : vector<96x128xf32>
    %c24 = arith.constant 24 : index
    %c0_51 = arith.constant 0 : index
    %57 = vector.load %arg11[%c24, %c0_51] : memref<128x64xbf16, #tpu.memory_space<vmem>>, vector<96x64xbf16>
    %c7_52 = arith.constant 7 : index
    %c0_53 = arith.constant 0 : index
    %c0_54 = arith.constant 0 : index
    %58 = vector.load %arg3[%c7_52, %c0_53, %c0_54] : memref<9x64x128xbf16, #tpu.memory_space<vmem>>, vector<1x64x128xbf16>
    %59 = vector.shape_cast %58 : vector<1x64x128xbf16> to vector<64x128xbf16>
    %cst_55 = arith.constant dense<0.000000e+00> : vector<96x128xf32>
    %60 = tpu.matmul %57, %59, %cst_55 {dimension_numbers = #tpu.dot_dimension_numbers<[1], [0], [0], [1], [0, 0, 1, 1], [], []>} : vector<96x64xbf16>, vector<64x128xbf16>, vector<96x128xf32> -> vector<96x128xf32>
    %61 = arith.addf %56, %60 : vector<96x128xf32>
    %c25 = arith.constant 25 : index
    %c0_56 = arith.constant 0 : index
    %62 = vector.load %arg11[%c25, %c0_56] : memref<128x64xbf16, #tpu.memory_space<vmem>>, vector<96x64xbf16>
    %c8_57 = arith.constant 8 : index
    %c0_58 = arith.constant 0 : index
    %c0_59 = arith.constant 0 : index
    %63 = vector.load %arg3[%c8_57, %c0_58, %c0_59] : memref<9x64x128xbf16, #tpu.memory_space<vmem>>, vector<1x64x128xbf16>
    %64 = vector.shape_cast %63 : vector<1x64x128xbf16> to vector<64x128xbf16>
    %cst_60 = arith.constant dense<0.000000e+00> : vector<96x128xf32>
    %65 = tpu.matmul %62, %64, %cst_60 {dimension_numbers = #tpu.dot_dimension_numbers<[1], [0], [0], [1], [0, 0, 1, 1], [], []>} : vector<96x64xbf16>, vector<64x128xbf16>, vector<96x128xf32> -> vector<96x128xf32>
    %66 = arith.addf %61, %65 : vector<96x128xf32>
    %c0_61 = arith.constant 0 : index
    %c0_62 = arith.constant 0 : index
    %67 = vector.load %arg4[%c0_61, %c0_62] : memref<1x128xf32, #tpu.memory_space<vmem>>, vector<1x128xf32>
    %68 = vector.broadcast %67 : vector<1x128xf32> to vector<96x128xf32>
    %69 = arith.addf %66, %68 : vector<96x128xf32>
    %cst_63 = arith.constant 0.000000e+00 : f32
    %70 = vector.broadcast %cst_63 : f32 to vector<96x128xf32>
    %71 = arith.maximumf %69, %70 : vector<96x128xf32>
    %72 = vector.broadcast %8 : vector<96x1xf32> to vector<96x128xf32>
    %73 = arith.mulf %71, %72 : vector<96x128xf32>
    %74 = arith.truncf %73 : vector<96x128xf32> to vector<96x128xbf16>
    %c16_64 = arith.constant 16 : index
    %c0_65 = arith.constant 0 : index
    %75 = vector.load %arg12[%c16_64, %c0_65] : memref<128x128xbf16, #tpu.memory_space<vmem>>, vector<96x128xbf16>
    tpu.vector_store %arg12[%c16_64, %c0_65], %74 {strides = array<i32>} : memref<128x128xbf16, #tpu.memory_space<vmem>>, vector<96x128xbf16>,
    %cst_66 = arith.constant 0.000000e+00 : f32
    %76 = vector.broadcast %cst_66 : f32 to vector<96x128xf32>
    %c7_67 = arith.constant 7 : index
    %c0_68 = arith.constant 0 : index
    %77 = vector.load %arg12[%c7_67, %c0_68] : memref<128x128xbf16, #tpu.memory_space<vmem>>, vector<96x128xbf16>
    %c0_69 = arith.constant 0 : index
    %c0_70 = arith.constant 0 : index
    %c0_71 = arith.constant 0 : index
    %78 = vector.load %arg5[%c0_69, %c0_70, %c0_71] : memref<9x128x128xbf16, #tpu.memory_space<vmem>>, vector<1x128x128xbf16>
    %79 = vector.shape_cast %78 : vector<1x128x128xbf16> to vector<128x128xbf16>
    %cst_72 = arith.constant dense<0.000000e+00> : vector<96x128xf32>
    %80 = tpu.matmul %77, %79, %cst_72 {dimension_numbers = #tpu.dot_dimension_numbers<[1], [0], [0], [1], [0, 0, 1, 1], [], []>} : vector<96x128xbf16>, vector<128x128xbf16>, vector<96x128xf32> -> vector<96x128xf32>
    %81 = arith.addf %76, %80 : vector<96x128xf32>
    %c8_73 = arith.constant 8 : index
    %c0_74 = arith.constant 0 : index
    %82 = vector.load %arg12[%c8_73, %c0_74] : memref<128x128xbf16, #tpu.memory_space<vmem>>, vector<96x128xbf16>
    %c1_75 = arith.constant 1 : index
    %c0_76 = arith.constant 0 : index
    %c0_77 = arith.constant 0 : index
    %83 = vector.load %arg5[%c1_75, %c0_76, %c0_77] : memref<9x128x128xbf16, #tpu.memory_space<vmem>>, vector<1x128x128xbf16>
    %84 = vector.shape_cast %83 : vector<1x128x128xbf16> to vector<128x128xbf16>
    %cst_78 = arith.constant dense<0.000000e+00> : vector<96x128xf32>
    %85 = tpu.matmul %82, %84, %cst_78 {dimension_numbers = #tpu.dot_dimension_numbers<[1], [0], [0], [1], [0, 0, 1, 1], [], []>} : vector<96x128xbf16>, vector<128x128xbf16>, vector<96x128xf32> -> vector<96x128xf32>
    %86 = arith.addf %81, %85 : vector<96x128xf32>
    %c9_79 = arith.constant 9 : index
    %c0_80 = arith.constant 0 : index
    %87 = vector.load %arg12[%c9_79, %c0_80] : memref<128x128xbf16, #tpu.memory_space<vmem>>, vector<96x128xbf16>
    %c2_81 = arith.constant 2 : index
    %c0_82 = arith.constant 0 : index
    %c0_83 = arith.constant 0 : index
    %88 = vector.load %arg5[%c2_81, %c0_82, %c0_83] : memref<9x128x128xbf16, #tpu.memory_space<vmem>>, vector<1x128x128xbf16>
    %89 = vector.shape_cast %88 : vector<1x128x128xbf16> to vector<128x128xbf16>
    %cst_84 = arith.constant dense<0.000000e+00> : vector<96x128xf32>
    %90 = tpu.matmul %87, %89, %cst_84 {dimension_numbers = #tpu.dot_dimension_numbers<[1], [0], [0], [1], [0, 0, 1, 1], [], []>} : vector<96x128xbf16>, vector<128x128xbf16>, vector<96x128xf32> -> vector<96x128xf32>
    %91 = arith.addf %86, %90 : vector<96x128xf32>
    %c15_85 = arith.constant 15 : index
    %c0_86 = arith.constant 0 : index
    %92 = vector.load %arg12[%c15_85, %c0_86] : memref<128x128xbf16, #tpu.memory_space<vmem>>, vector<96x128xbf16>
    %c3_87 = arith.constant 3 : index
    %c0_88 = arith.constant 0 : index
    %c0_89 = arith.constant 0 : index
    %93 = vector.load %arg5[%c3_87, %c0_88, %c0_89] : memref<9x128x128xbf16, #tpu.memory_space<vmem>>, vector<1x128x128xbf16>
    %94 = vector.shape_cast %93 : vector<1x128x128xbf16> to vector<128x128xbf16>
    %cst_90 = arith.constant dense<0.000000e+00> : vector<96x128xf32>
    %95 = tpu.matmul %92, %94, %cst_90 {dimension_numbers = #tpu.dot_dimension_numbers<[1], [0], [0], [1], [0, 0, 1, 1], [], []>} : vector<96x128xbf16>, vector<128x128xbf16>, vector<96x128xf32> -> vector<96x128xf32>
    %96 = arith.addf %91, %95 : vector<96x128xf32>
    %c16_91 = arith.constant 16 : index
    %c0_92 = arith.constant 0 : index
    %97 = vector.load %arg12[%c16_91, %c0_92] : memref<128x128xbf16, #tpu.memory_space<vmem>>, vector<96x128xbf16>
    %c4_93 = arith.constant 4 : index
    %c0_94 = arith.constant 0 : index
    %c0_95 = arith.constant 0 : index
    %98 = vector.load %arg5[%c4_93, %c0_94, %c0_95] : memref<9x128x128xbf16, #tpu.memory_space<vmem>>, vector<1x128x128xbf16>
    %99 = vector.shape_cast %98 : vector<1x128x128xbf16> to vector<128x128xbf16>
    %cst_96 = arith.constant dense<0.000000e+00> : vector<96x128xf32>
    %100 = tpu.matmul %97, %99, %cst_96 {dimension_numbers = #tpu.dot_dimension_numbers<[1], [0], [0], [1], [0, 0, 1, 1], [], []>} : vector<96x128xbf16>, vector<128x128xbf16>, vector<96x128xf32> -> vector<96x128xf32>
    %101 = arith.addf %96, %100 : vector<96x128xf32>
    %c17_97 = arith.constant 17 : index
    %c0_98 = arith.constant 0 : index
    %102 = vector.load %arg12[%c17_97, %c0_98] : memref<128x128xbf16, #tpu.memory_space<vmem>>, vector<96x128xbf16>
    %c5_99 = arith.constant 5 : index
    %c0_100 = arith.constant 0 : index
    %c0_101 = arith.constant 0 : index
    %103 = vector.load %arg5[%c5_99, %c0_100, %c0_101] : memref<9x128x128xbf16, #tpu.memory_space<vmem>>, vector<1x128x128xbf16>
    %104 = vector.shape_cast %103 : vector<1x128x128xbf16> to vector<128x128xbf16>
    %cst_102 = arith.constant dense<0.000000e+00> : vector<96x128xf32>
    %105 = tpu.matmul %102, %104, %cst_102 {dimension_numbers = #tpu.dot_dimension_numbers<[1], [0], [0], [1], [0, 0, 1, 1], [], []>} : vector<96x128xbf16>, vector<128x128xbf16>, vector<96x128xf32> -> vector<96x128xf32>
    %106 = arith.addf %101, %105 : vector<96x128xf32>
    %c23_103 = arith.constant 23 : index
    %c0_104 = arith.constant 0 : index
    %107 = vector.load %arg12[%c23_103, %c0_104] : memref<128x128xbf16, #tpu.memory_space<vmem>>, vector<96x128xbf16>
    %c6_105 = arith.constant 6 : index
    %c0_106 = arith.constant 0 : index
    %c0_107 = arith.constant 0 : index
    %108 = vector.load %arg5[%c6_105, %c0_106, %c0_107] : memref<9x128x128xbf16, #tpu.memory_space<vmem>>, vector<1x128x128xbf16>
    %109 = vector.shape_cast %108 : vector<1x128x128xbf16> to vector<128x128xbf16>
    %cst_108 = arith.constant dense<0.000000e+00> : vector<96x128xf32>
    %110 = tpu.matmul %107, %109, %cst_108 {dimension_numbers = #tpu.dot_dimension_numbers<[1], [0], [0], [1], [0, 0, 1, 1], [], []>} : vector<96x128xbf16>, vector<128x128xbf16>, vector<96x128xf32> -> vector<96x128xf32>
    %111 = arith.addf %106, %110 : vector<96x128xf32>
    %c24_109 = arith.constant 24 : index
    %c0_110 = arith.constant 0 : index
    %112 = vector.load %arg12[%c24_109, %c0_110] : memref<128x128xbf16, #tpu.memory_space<vmem>>, vector<96x128xbf16>
    %c7_111 = arith.constant 7 : index
    %c0_112 = arith.constant 0 : index
    %c0_113 = arith.constant 0 : index
    %113 = vector.load %arg5[%c7_111, %c0_112, %c0_113] : memref<9x128x128xbf16, #tpu.memory_space<vmem>>, vector<1x128x128xbf16>
    %114 = vector.shape_cast %113 : vector<1x128x128xbf16> to vector<128x128xbf16>
    %cst_114 = arith.constant dense<0.000000e+00> : vector<96x128xf32>
    %115 = tpu.matmul %112, %114, %cst_114 {dimension_numbers = #tpu.dot_dimension_numbers<[1], [0], [0], [1], [0, 0, 1, 1], [], []>} : vector<96x128xbf16>, vector<128x128xbf16>, vector<96x128xf32> -> vector<96x128xf32>
    %116 = arith.addf %111, %115 : vector<96x128xf32>
    %c25_115 = arith.constant 25 : index
    %c0_116 = arith.constant 0 : index
    %117 = vector.load %arg12[%c25_115, %c0_116] : memref<128x128xbf16, #tpu.memory_space<vmem>>, vector<96x128xbf16>
    %c8_117 = arith.constant 8 : index
    %c0_118 = arith.constant 0 : index
    %c0_119 = arith.constant 0 : index
    %118 = vector.load %arg5[%c8_117, %c0_118, %c0_119] : memref<9x128x128xbf16, #tpu.memory_space<vmem>>, vector<1x128x128xbf16>
    %119 = vector.shape_cast %118 : vector<1x128x128xbf16> to vector<128x128xbf16>
    %cst_120 = arith.constant dense<0.000000e+00> : vector<96x128xf32>
    %120 = tpu.matmul %117, %119, %cst_120 {dimension_numbers = #tpu.dot_dimension_numbers<[1], [0], [0], [1], [0, 0, 1, 1], [], []>} : vector<96x128xbf16>, vector<128x128xbf16>, vector<96x128xf32> -> vector<96x128xf32>
    %121 = arith.addf %116, %120 : vector<96x128xf32>
    %c0_121 = arith.constant 0 : index
    %c0_122 = arith.constant 0 : index
    %122 = vector.load %arg6[%c0_121, %c0_122] : memref<1x128xf32, #tpu.memory_space<vmem>>, vector<1x128xf32>
    %123 = vector.broadcast %122 : vector<1x128xf32> to vector<96x128xf32>
    %124 = arith.addf %121, %123 : vector<96x128xf32>
    %cst_123 = arith.constant 0.000000e+00 : f32
    %125 = vector.broadcast %cst_123 : f32 to vector<96x128xf32>
    %126 = arith.maximumf %124, %125 : vector<96x128xf32>
    %127 = arith.truncf %126 : vector<96x128xf32> to vector<96x128xbf16>
    %c0_124 = arith.constant 0 : index
    %c0_125 = arith.constant 0 : index
    %128 = vector.load %arg7[%c0_124, %c0_125] : memref<128x128xbf16, #tpu.memory_space<vmem>>, vector<128x128xbf16>
    %cst_126 = arith.constant dense<0.000000e+00> : vector<96x128xf32>
    %129 = tpu.matmul %127, %128, %cst_126 {dimension_numbers = #tpu.dot_dimension_numbers<[1], [0], [0], [1], [0, 0, 1, 1], [], []>} : vector<96x128xbf16>, vector<128x128xbf16>, vector<96x128xf32> -> vector<96x128xf32>
    %c0_127 = arith.constant 0 : index
    %c0_128 = arith.constant 0 : index
    %130 = vector.load %arg8[%c0_127, %c0_128] : memref<1x128xf32, #tpu.memory_space<vmem>>, vector<1x128xf32>
    %131 = vector.broadcast %130 : vector<1x128xf32> to vector<96x128xf32>
    %132 = arith.addf %129, %131 : vector<96x128xf32>
    %c0_129 = arith.constant 0 : index
    %c0_130 = arith.constant 0 : index
    %133 = vector.load %arg10[%c0_129, %c0_130] : memref<96x128xf32, #tpu.memory_space<vmem>>, vector<96x128xf32>
    tpu.vector_store %arg10[%c0_129, %c0_130], %132 {strides = array<i32>} : memref<96x128xf32, #tpu.memory_space<vmem>>, vector<96x128xf32>,
    return
  }
}

</mosaic_0001>

<llo_original>
// kernel: forward.1
$region0: #{forward.1}
  #allocation0 [shape = 'u32[]', space=smem, size = 0x4, offset = 0x4, fixed_abs, tag = 'smem constant byte address 0x4 - core index']
  #allocation1 [shape = 'u32[144,128]{1,0:T(1,128)}', space=vmem, size = 0x12000, scoped, tag = 'internal scratch']
  #allocation2 [shape = 'bf16[128,64]{1,0:T(16,128)(2,1)}', space=vmem, size = 0x8000, scoped, tag = 'scratch operand']
  #allocation3 [shape = 'bf16[128,128]{1,0:T(16,128)(2,1)}', space=vmem, size = 0x8000, scoped, tag = 'scratch operand']
  %s0 = inlined_call_operand.vmem [shape: bf16[96,32], index: 0, kind: input, shape index: {}]
  %s1 = inlined_call_operand.vmem [shape: bf16[32,64], index: 1, kind: input, shape index: {}]
  %s2 = inlined_call_operand.vmem [shape: f32[1,64], index: 2, kind: input, shape index: {}]
  %s3 = inlined_call_operand.vmem [shape: bf16[9,64,128], index: 3, kind: input, shape index: {}]
  %s4 = inlined_call_operand.vmem [shape: f32[1,128], index: 4, kind: input, shape index: {}]
  %s5 = inlined_call_operand.vmem [shape: bf16[9,128,128], index: 5, kind: input, shape index: {}]
  %s6 = inlined_call_operand.vmem [shape: f32[1,128], index: 6, kind: input, shape index: {}]
  %s7 = inlined_call_operand.vmem [shape: bf16[128,128], index: 7, kind: input, shape index: {}]
  %s8 = inlined_call_operand.vmem [shape: f32[1,128], index: 8, kind: input, shape index: {}]
  %s9 = inlined_call_operand.vmem [shape: f32[96,1], index: 9, kind: input, shape index: {}]
  %s10 = inlined_call_operand.vmem [shape: f32[96,128], index: 10, kind: output, shape index: {}]
  %s11 = sld [smem:[#allocation0]]
  $region50: #{forward.1} parent=0
    _
  %s13 = ssub.s32 1, %s11
  %s14 = scalar_select 0, %s13, %s11
  // Predicated region
  $region2: #{forward.1} parent=0 // pred_check
    _
  $region3: #{forward.1} parent=0 // pred_check_branch
    %16 = sbr.rel (0) target = $region5
  $region4: #{forward.1} parent=0 // pred_region
    _
  $region5: #{forward.1} parent=0 // pred_fallthru
    _
  // Predicated region
  $region6: #{forward.1} parent=0 // pred_check
    _
  $region7: #{forward.1} parent=0 // pred_check_branch
    %18 = sbr.rel (0) target = $region9
  $region8: #{forward.1} parent=0 // pred_region
    _
  $region9: #{forward.1} parent=0 // pred_fallthru
    _
  // Predicated region
  $region10: #{forward.1} parent=0 // pred_check
    _
  $region11: #{forward.1} parent=0 // pred_check_branch
    %20 = sbr.rel (0) target = $region13
  $region12: #{forward.1} parent=0 // pred_region
    _
  $region13: #{forward.1} parent=0 // pred_fallthru
    _
  // Predicated region
  $region14: #{forward.1} parent=0 // pred_check
    _
  $region15: #{forward.1} parent=0 // pred_check_branch
    %22 = sbr.rel (0) target = $region17
  $region16: #{forward.1} parent=0 // pred_region
    _
  $region17: #{forward.1} parent=0 // pred_fallthru
    _
  // Predicated region
  $region18: #{forward.1} parent=0 // pred_check
    _
  $region19: #{forward.1} parent=0 // pred_check_branch
    %24 = sbr.rel (0) target = $region21
  $region20: #{forward.1} parent=0 // pred_region
    _
  $region21: #{forward.1} parent=0 // pred_fallthru
    _
  // Predicated region
  $region22: #{forward.1} parent=0 // pred_check
    _
  $region23: #{forward.1} parent=0 // pred_check_branch
    %26 = sbr.rel (0) target = $region25
  $region24: #{forward.1} parent=0 // pred_region
    _
  $region25: #{forward.1} parent=0 // pred_fallthru
    _
  // Predicated region
  $region26: #{forward.1} parent=0 // pred_check
    _
  $region27: #{forward.1} parent=0 // pred_check_branch
    %28 = sbr.rel (0) target = $region29
  $region28: #{forward.1} parent=0 // pred_region
    _
  $region29: #{forward.1} parent=0 // pred_fallthru
    _
  // Predicated region
  $region30: #{forward.1} parent=0 // pred_check
    _
  $region31: #{forward.1} parent=0 // pred_check_branch
    %30 = sbr.rel (0) target = $region33
  $region32: #{forward.1} parent=0 // pred_region
    _
  $region33: #{forward.1} parent=0 // pred_fallthru
    _
  // Predicated region
  $region34: #{forward.1} parent=0 // pred_check
    _
  $region35: #{forward.1} parent=0 // pred_check_branch
    %32 = sbr.rel (0) target = $region37
  $region36: #{forward.1} parent=0 // pred_region
    _
  $region37: #{forward.1} parent=0 // pred_fallthru
    _
  // Predicated region
  $region38: #{forward.1} parent=0 // pred_check
    _
  $region39: #{forward.1} parent=0 // pred_check_branch
    %34 = sbr.rel (0) target = $region41
  $region40: #{forward.1} parent=0 // pred_region
    _
  $region41: #{forward.1} parent=0 // pred_fallthru
    _
  %vm36 = vcmask 523264
  %37 = vst.msk [vmem:[#allocation2] sm:$0xff] %vm36, 0
  %38 = vst.msk [vmem:[#allocation2 + $0x38] sm:$0xff] %vm36, 0
  %39 = vst [vmem:[#allocation3] sm:$0xff] 0
  %40 = vst [vmem:[#allocation3 + $0x38] sm:$0xff] 0
  %v41 = vld [vmem:[%s9] sm:$0xff]
  %v42 = vld [vmem:[%s9 + $0x8] sm:$0xff]
  %v43 = vld [vmem:[%s9 + $0x10] sm:$0xff]
  %v44 = vld [vmem:[%s9 + $0x18] sm:$0xff]
  %v45 = vld [vmem:[%s9 + $0x20] sm:$0xff]
  %v46 = vld [vmem:[%s9 + $0x28] sm:$0xff]
  %v47 = vld [vmem:[%s9 + $0x30] sm:$0xff]
  %v48 = vld [vmem:[%s9 + $0x38] sm:$0xff]
  %v49 = vld [vmem:[%s9 + $0x40] sm:$0xff]
  %v50 = vld [vmem:[%s9 + $0x48] sm:$0xff]
  %v51 = vld [vmem:[%s9 + $0x50] sm:$0xff]
  %v52 = vld [vmem:[%s9 + $0x58] sm:$0xff]
  %v53 = vld [vmem:[%s0] sm:$0xf]
  %v54 = vld [vmem:[%s0 + $0x4] sm:$0xf]
  %v55 = vld [vmem:[%s0 + $0x8] sm:$0xf]
  %v56 = vld [vmem:[%s0 + $0xc] sm:$0xf]
  %v57 = vld [vmem:[%s0 + $0x10] sm:$0xf]
  %v58 = vld [vmem:[%s0 + $0x14] sm:$0xf]
  %v59 = vld [vmem:[%s0 + $0x18] sm:$0xf]
  %v60 = vld [vmem:[%s0 + $0x1c] sm:$0xf]
  %v61 = vld [vmem:[%s0 + $0x20] sm:$0xf]
  %v62 = vld [vmem:[%s0 + $0x24] sm:$0xf]
  %v63 = vld [vmem:[%s0 + $0x28] sm:$0xf]
  %v64 = vld [vmem:[%s0 + $0x2c] sm:$0xf]
  %v65 = vld [vmem:[%s1] sm:$0xf]
  %v66 = vld [vmem:[%s1 + $0x4] sm:$0xf]
  %v67 = vld [vmem:[%s1 + $0x8] sm:$0xf]
  %v68 = vld [vmem:[%s1 + $0xc] sm:$0xf]
  %v69 = vld [vmem:[%s2] sm:$0x1]
  %v71 = vlaneseq
  %v72 = vshrl.u32 %v71, 7
  %v73 = vsub.s32 0, %v72
  %v74 = vrot.slane %v69, %v73
  %v88 = vunpack.c.l.b16 %v53
  %v89 = vunpack.c.l.b16 %v54
  %v90 = vunpack.c.l.b16 %v55
  %v91 = vunpack.c.l.b16 %v56
  %v92 = vunpack.c.l.b16 %v57
  %v93 = vunpack.c.l.b16 %v58
  %v94 = vunpack.c.l.b16 %v59
  %v95 = vunpack.c.l.b16 %v60
  %v96 = vunpack.c.l.b16 %v61
  %v97 = vunpack.c.l.b16 %v62
  %v98 = vunpack.c.l.b16 %v63
  %v99 = vunpack.c.l.b16 %v64
  %v100 = vpack.c.b16 %v89, %v88
  %v101 = vpack.c.b16 %v91, %v90
  %v102 = vpack.c.b16 %v93, %v92
  %v103 = vpack.c.b16 %v95, %v94
  %v104 = vpack.c.b16 %v97, %v96
  %v105 = vpack.c.b16 %v99, %v98
  %v110 = vunpack.c.l.b16 %v65
  %v111 = vunpack.c.l.b16 %v66
  %v112 = vunpack.c.l.b16 %v67
  %v113 = vunpack.c.l.b16 %v68
  %v114 = vpack.c.b16 %v111, %v110
  %v115 = vpack.c.b16 %v113, %v112
  %vm118 = vcmask 261120
  %v120 = vsel %vm118, %v100, 0
  %v123 = vsel %vm118, %v101, 0
  %v126 = vsel %vm118, %v102, 0
  %v129 = vsel %vm118, %v103, 0
  %v132 = vsel %vm118, %v104, 0
  %v135 = vsel %vm118, %v105, 0
  %137 = vmatprep.subr.bf16.mxu0 0
  %138 = vmatpush1.bf16.msra.mxu0 %v114
  %139 = vmatprep.subr.bf16.mxu0 0
  %140 = vmatpush1.bf16.msra.mxu0 %v115
  %141 = vmatprep.subr.bf16.mxu0 0
  %142 = vmatpush1.bf16.msra.mxu0 0
  %143 = vmatprep.subr.bf16.mxu0 0
  %144 = vmatpush1.bf16.msra.mxu0 0
  %145 = vmatprep.subr.bf16.mxu0 0
  %146 = vmatpush1.bf16.msra.mxu0 0
  %147 = vmatprep.subr.bf16.mxu0 0
  %148 = vmatpush1.bf16.msra.mxu0 0
  %149 = vmatprep.subr.bf16.mxu0 0
  %150 = vmatpush1.bf16.msra.mxu0 0
  %151 = vmatprep.subr.bf16.mxu0 0
  %152 = vmatpush1.bf16.msra.mxu0 0
  %153 = vmatprep.subr.bf16.mxu0 0
  %154 = vmatpush1.bf16.msra.mxu0 0
  %155 = vmatprep.subr.bf16.mxu0 0
  %156 = vmatpush1.bf16.msra.mxu0 0
  %157 = vmatprep.subr.bf16.mxu0 0
  %158 = vmatpush1.bf16.msra.mxu0 0
  %159 = vmatprep.subr.bf16.mxu0 0
  %160 = vmatpush1.bf16.msra.mxu0 0
  %161 = vmatprep.subr.bf16.mxu0 0
  %162 = vmatpush1.bf16.msra.mxu0 0
  %163 = vmatprep.subr.bf16.mxu0 0
  %164 = vmatpush1.bf16.msra.mxu0 0
  %165 = vmatprep.subr.bf16.mxu0 0
  %166 = vmatpush1.bf16.msra.mxu0 0
  %167 = vmatprep.subr.bf16.mxu0 0
  %168 = vmatpush1.bf16.msra.mxu0 0
  %169 = vmatprep.mubr.bf16.mxu0 0
  %170 = vmatmul.mubr.bf16.gmra.mrb[0].mxu0 %v120
  %v171 = vpop.f32.mrb[0].mxu0
  %v172 = vadd.f32 %v74, %v171
  %v173 = vpop.f32.mrb[0].mxu0
  %v174 = vpop.f32.mrb[0].mxu0
  %v175 = vadd.f32 %v74, %v174
  %v176 = vpop.f32.mrb[0].mxu0
  %177 = vmatprep.mubr.bf16.mxu0 0
  %178 = vmatmul.mubr.bf16.gmra.mrb[0].mxu0 %v123
  %v179 = vpop.f32.mrb[0].mxu0
  %v180 = vadd.f32 %v74, %v179
  %v181 = vpop.f32.mrb[0].mxu0
  %v182 = vpop.f32.mrb[0].mxu0
  %v183 = vadd.f32 %v74, %v182
  %v184 = vpop.f32.mrb[0].mxu0
  %185 = vmatprep.mubr.bf16.mxu0 0
  %186 = vmatmul.mubr.bf16.gmra.mrb[0].mxu0 %v126
  %v187 = vpop.f32.mrb[0].mxu0
  %v188 = vadd.f32 %v74, %v187
  %v189 = vpop.f32.mrb[0].mxu0
  %v190 = vpop.f32.mrb[0].mxu0
  %v191 = vadd.f32 %v74, %v190
  %v192 = vpop.f32.mrb[0].mxu0
  %193 = vmatprep.mubr.bf16.mxu0 0
  %194 = vmatmul.mubr.bf16.gmra.mrb[0].mxu0 %v129
  %v195 = vpop.f32.mrb[0].mxu0
  %v196 = vadd.f32 %v74, %v195
  %v197 = vpop.f32.mrb[0].mxu0
  %v198 = vpop.f32.mrb[0].mxu0
  %v199 = vadd.f32 %v74, %v198
  %v200 = vpop.f32.mrb[0].mxu0
  %201 = vmatprep.mubr.bf16.mxu0 0
  %202 = vmatmul.mubr.bf16.gmra.mrb[0].mxu0 %v132
  %v203 = vpop.f32.mrb[0].mxu0
  %v204 = vadd.f32 %v74, %v203
  %v205 = vpop.f32.mrb[0].mxu0
  %v206 = vpop.f32.mrb[0].mxu0
  %v207 = vadd.f32 %v74, %v206
  %v208 = vpop.f32.mrb[0].mxu0
  %209 = vmatprep.mubr.bf16.mxu0 0
  %210 = vmatmul.mubr.bf16.gmra.mrb[0].mxu0 %v135
  %v211 = vpop.f32.mrb[0].mxu0
  %v212 = vadd.f32 %v74, %v211
  %v213 = vpop.f32.mrb[0].mxu0
  %v214 = vpop.f32.mrb[0].mxu0
  %v215 = vadd.f32 %v74, %v214
  %v216 = vpop.f32.mrb[0].mxu0
  %217 = vdwg.mxu0
  %v218 = vmax.f32 %v172, 0.0
  %v219 = vmax.f32 %v175, 0.0
  %v220 = vmax.f32 %v180, 0.0
  %v221 = vmax.f32 %v183, 0.0
  %v222 = vmax.f32 %v188, 0.0
  %v223 = vmax.f32 %v191, 0.0
  %v224 = vmax.f32 %v196, 0.0
  %v225 = vmax.f32 %v199, 0.0
  %v226 = vmax.f32 %v204, 0.0
  %v227 = vmax.f32 %v207, 0.0
  %v228 = vmax.f32 %v212, 0.0
  %v229 = vmax.f32 %v215, 0.0
  %231 = vset.pattern.permute.xlu0 0
  %232 = vperm.xlu0 %231, %v41
  %v233 = vpop.permute.xlu0 %232
  %236 = vset.pattern.permute.xlu0 0
  %237 = vperm.xlu0 %236, %v42
  %v238 = vpop.permute.xlu0 %237
  %241 = vset.pattern.permute.xlu0 0
  %242 = vperm.xlu0 %241, %v43
  %v243 = vpop.permute.xlu0 %242
  %246 = vset.pattern.permute.xlu0 0
  %247 = vperm.xlu0 %246, %v44
  %v248 = vpop.permute.xlu0 %247
  %251 = vset.pattern.permute.xlu0 0
  %252 = vperm.xlu0 %251, %v45
  %v253 = vpop.permute.xlu0 %252
  %256 = vset.pattern.permute.xlu0 0
  %257 = vperm.xlu0 %256, %v46
  %v258 = vpop.permute.xlu0 %257
  %261 = vset.pattern.permute.xlu0 0
  %262 = vperm.xlu0 %261, %v47
  %v263 = vpop.permute.xlu0 %262
  %266 = vset.pattern.permute.xlu0 0
  %267 = vperm.xlu0 %266, %v48
  %v268 = vpop.permute.xlu0 %267
  %271 = vset.pattern.permute.xlu0 0
  %272 = vperm.xlu0 %271, %v49
  %v273 = vpop.permute.xlu0 %272
  %276 = vset.pattern.permute.xlu0 0
  %277 = vperm.xlu0 %276, %v50
  %v278 = vpop.permute.xlu0 %277
  %281 = vset.pattern.permute.xlu0 0
  %282 = vperm.xlu0 %281, %v51
  %v283 = vpop.permute.xlu0 %282
  %286 = vset.pattern.permute.xlu0 0
  %287 = vperm.xlu0 %286, %v52
  %v288 = vpop.permute.xlu0 %287
  %v290 = vmul.f32 %v218, %v233
  %v291 = vmul.f32 %v219, %v238
  %v292 = vmul.f32 %v220, %v243
  %v293 = vmul.f32 %v221, %v248
  %v294 = vmul.f32 %v222, %v253
  %v295 = vmul.f32 %v223, %v258
  %v296 = vmul.f32 %v224, %v263
  %v297 = vmul.f32 %v225, %v268
  %v298 = vmul.f32 %v226, %v273
  %v299 = vmul.f32 %v227, %v278
  %v300 = vmul.f32 %v228, %v283
  %v301 = vmul.f32 %v229, %v288
  %v302 = vpack.c.bf16 %v291, %v290
  %v303 = vpack.c.bf16 %v293, %v292
  %v304 = vpack.c.bf16 %v295, %v294
  %v305 = vpack.c.bf16 %v297, %v296
  %v306 = vpack.c.bf16 %v299, %v298
  %v307 = vpack.c.bf16 %v301, %v300
  %308 = vst.msk [vmem:[#allocation2 + $0x8] sm:$0xff] %vm36, %v302
  %309 = vst.msk [vmem:[#allocation2 + $0x10] sm:$0xff] %vm36, %v303
  %310 = vst.msk [vmem:[#allocation2 + $0x18] sm:$0xff] %vm36, %v304
  %311 = vst.msk [vmem:[#allocation2 + $0x20] sm:$0xff] %vm36, %v305
  %312 = vst.msk [vmem:[#allocation2 + $0x28] sm:$0xff] %vm36, %v306
  %313 = vst.msk [vmem:[#allocation2 + $0x30] sm:$0xff] %vm36, %v307
  %v314 = vld [vmem:[#allocation2] sm:$0xf8]
  %v315 = vld [vmem:[#allocation2 + $0x8] sm:$0xff]
  %v316 = vld [vmem:[#allocation2 + $0x10] sm:$0xff]
  %v317 = vld [vmem:[#allocation2 + $0x18] sm:$0xff]
  %v318 = vld [vmem:[#allocation2 + $0x20] sm:$0xff]
  %v319 = vld [vmem:[#allocation2 + $0x28] sm:$0xff]
  %v320 = vld [vmem:[#allocation2 + $0x30] sm:$0xf]
  %v321 = vld [vmem:[%s3] sm:$0xf]
  %v322 = vld [vmem:[%s3 + $0x4] sm:$0xf]
  %v323 = vld [vmem:[%s3 + $0x8] sm:$0xf]
  %v324 = vld [vmem:[%s3 + $0xc] sm:$0xf]
  %v325 = vld [vmem:[%s3 + $0x10] sm:$0xf]
  %v326 = vld [vmem:[%s3 + $0x14] sm:$0xf]
  %v327 = vld [vmem:[%s3 + $0x18] sm:$0xf]
  %v328 = vld [vmem:[%s3 + $0x1c] sm:$0xf]
  %v329 = vld [vmem:[#allocation2] sm:$0xf0]
  %s330 = scalar_lea.vmem %s3, 32
  %v331 = vld [vmem:[%s330] sm:$0xf]
  %v332 = vld [vmem:[%s330 + $0x4] sm:$0xf]
  %v333 = vld [vmem:[%s330 + $0x8] sm:$0xf]
  %v334 = vld [vmem:[%s330 + $0xc] sm:$0xf]
  %v335 = vld [vmem:[%s330 + $0x10] sm:$0xf]
  %v336 = vld [vmem:[%s330 + $0x14] sm:$0xf]
  %v337 = vld [vmem:[%s330 + $0x18] sm:$0xf]
  %v338 = vld [vmem:[%s330 + $0x1c] sm:$0xf]
  %vm346 = vcmask 1043456
  %v347 = vrot.slane %v329, 4
  %v348 = vrot.slane %v315, 4
  %v349 = vsel %vm346, %v347, %v348
  %v350 = vrot.slane %v316, 4
  %v351 = vsel %vm346, %v348, %v350
  %v352 = vrot.slane %v317, 4
  %v353 = vsel %vm346, %v350, %v352
  %v354 = vrot.slane %v318, 4
  %v355 = vsel %vm346, %v352, %v354
  %v356 = vrot.slane %v319, 4
  %v357 = vsel %vm346, %v354, %v356
  %v358 = vrot.slane %v320, 4
  %v359 = vsel %vm346, %v356, %v358
  %v368 = vunpack.c.l.b16 %v331
  %v369 = vunpack.c.l.b16 %v332
  %v370 = vunpack.c.l.b16 %v333
  %v371 = vunpack.c.l.b16 %v334
  %v372 = vunpack.c.l.b16 %v335
  %v373 = vunpack.c.l.b16 %v336
  %v374 = vunpack.c.l.b16 %v337
  %v375 = vunpack.c.l.b16 %v338
  %v376 = vpack.c.b16 %v369, %v368
  %v377 = vpack.c.b16 %v371, %v370
  %v378 = vpack.c.b16 %v373, %v372
  %v379 = vpack.c.b16 %v375, %v374
  %v385 = vsel %vm36, %v349, 0
  %v388 = vsel %vm36, %v351, 0
  %v391 = vsel %vm36, %v353, 0
  %v394 = vsel %vm36, %v355, 0
  %v397 = vsel %vm36, %v357, 0
  %v400 = vsel %vm36, %v359, 0
  %402 = vmatprep.subr.bf16.mxu0 0
  %403 = vmatpush1.bf16.msra.mxu0 %v376
  %404 = vmatprep.subr.bf16.mxu0 0
  %405 = vmatpush1.bf16.msra.mxu0 %v377
  %406 = vmatprep.subr.bf16.mxu0 0
  %407 = vmatpush1.bf16.msra.mxu0 %v378
  %408 = vmatprep.subr.bf16.mxu0 0
  %409 = vmatpush1.bf16.msra.mxu0 %v379
  %410 = vmatprep.subr.bf16.mxu0 0
  %411 = vmatpush1.bf16.msra.mxu0 0
  %412 = vmatprep.subr.bf16.mxu0 0
  %413 = vmatpush1.bf16.msra.mxu0 0
  %414 = vmatprep.subr.bf16.mxu0 0
  %415 = vmatpush1.bf16.msra.mxu0 0
  %416 = vmatprep.subr.bf16.mxu0 0
  %417 = vmatpush1.bf16.msra.mxu0 0
  %418 = vmatprep.subr.bf16.mxu0 0
  %419 = vmatpush1.bf16.msra.mxu0 0
  %420 = vmatprep.subr.bf16.mxu0 0
  %421 = vmatpush1.bf16.msra.mxu0 0
  %422 = vmatprep.subr.bf16.mxu0 0
  %423 = vmatpush1.bf16.msra.mxu0 0
  %424 = vmatprep.subr.bf16.mxu0 0
  %425 = vmatpush1.bf16.msra.mxu0 0
  %426 = vmatprep.subr.bf16.mxu0 0
  %427 = vmatpush1.bf16.msra.mxu0 0
  %428 = vmatprep.subr.bf16.mxu0 0
  %429 = vmatpush1.bf16.msra.mxu0 0
  %430 = vmatprep.subr.bf16.mxu0 0
  %431 = vmatpush1.bf16.msra.mxu0 0
  %432 = vmatprep.subr.bf16.mxu0 0
  %433 = vmatpush1.bf16.msra.mxu0 0
  %434 = vmatprep.mubr.bf16.mxu0 0
  %435 = vmatmul.mubr.bf16.gmra.mrb[0].mxu0 %v385
  %v436 = vpop.f32.mrb[0].mxu0
  %v437 = vadd.f32 0.0, %v436
  %v438 = vpop.f32.mrb[0].mxu0
  %v439 = vpop.f32.mrb[0].mxu0
  %v440 = vadd.f32 0.0, %v439
  %v441 = vpop.f32.mrb[0].mxu0
  %442 = vmatprep.mubr.bf16.mxu0 0
  %443 = vmatmul.mubr.bf16.gmra.mrb[0].mxu0 %v388
  %v444 = vpop.f32.mrb[0].mxu0
  %v445 = vadd.f32 0.0, %v444
  %v446 = vpop.f32.mrb[0].mxu0
  %v447 = vpop.f32.mrb[0].mxu0
  %v448 = vadd.f32 0.0, %v447
  %v449 = vpop.f32.mrb[0].mxu0
  %450 = vmatprep.mubr.bf16.mxu0 0
  %451 = vmatmul.mubr.bf16.gmra.mrb[0].mxu0 %v391
  %v452 = vpop.f32.mrb[0].mxu0
  %v453 = vadd.f32 0.0, %v452
  %v454 = vpop.f32.mrb[0].mxu0
  %v455 = vpop.f32.mrb[0].mxu0
  %v456 = vadd.f32 0.0, %v455
  %v457 = vpop.f32.mrb[0].mxu0
  %458 = vmatprep.mubr.bf16.mxu0 0
  %459 = vmatmul.mubr.bf16.gmra.mrb[0].mxu0 %v394
  %v460 = vpop.f32.mrb[0].mxu0
  %v461 = vadd.f32 0.0, %v460
  %v462 = vpop.f32.mrb[0].mxu0
  %v463 = vpop.f32.mrb[0].mxu0
  %v464 = vadd.f32 0.0, %v463
  %v465 = vpop.f32.mrb[0].mxu0
  %466 = vmatprep.mubr.bf16.mxu0 0
  %467 = vmatmul.mubr.bf16.gmra.mrb[0].mxu0 %v397
  %v468 = vpop.f32.mrb[0].mxu0
  %v469 = vadd.f32 0.0, %v468
  %v470 = vpop.f32.mrb[0].mxu0
  %v471 = vpop.f32.mrb[0].mxu0
  %v472 = vadd.f32 0.0, %v471
  %v473 = vpop.f32.mrb[0].mxu0
  %474 = vmatprep.mubr.bf16.mxu0 0
  %475 = vmatmul.mubr.bf16.gmra.mrb[0].mxu0 %v400
  %v476 = vpop.f32.mrb[0].mxu0
  %v477 = vadd.f32 0.0, %v476
  %v478 = vpop.f32.mrb[0].mxu0
  %v479 = vpop.f32.mrb[0].mxu0
  %v480 = vadd.f32 0.0, %v479
  %v481 = vpop.f32.mrb[0].mxu0
  %482 = vdwg.mxu0
  %vm483 = vsmask.f32 4352
  %v485 = vshrl.u32 %v314, 16
  %v487 = vrot.slane %v485, 3
  %v488 = vshll.u32 %v314, 16
  %v490 = vrot.slane %v488, 4
  %v491 = vor.u32 %v487, %v490
  %v493 = vshrl.u32 %v315, 16
  %v495 = vrot.slane %v493, 3
  %v496 = vshll.u32 %v315, 16
  %v498 = vrot.slane %v496, 4
  %v499 = vor.u32 %v495, %v498
  %v500 = vsel %vm483, %v491, %v499
  %v502 = vshrl.u32 %v316, 16
  %v504 = vrot.slane %v502, 3
  %v505 = vshll.u32 %v316, 16
  %v507 = vrot.slane %v505, 4
  %v508 = vor.u32 %v504, %v507
  %v509 = vsel %vm483, %v499, %v508
  %v511 = vshrl.u32 %v317, 16
  %v513 = vrot.slane %v511, 3
  %v514 = vshll.u32 %v317, 16
  %v516 = vrot.slane %v514, 4
  %v517 = vor.u32 %v513, %v516
  %v518 = vsel %vm483, %v508, %v517
  %v520 = vshrl.u32 %v318, 16
  %v522 = vrot.slane %v520, 3
  %v523 = vshll.u32 %v318, 16
  %v525 = vrot.slane %v523, 4
  %v526 = vor.u32 %v522, %v525
  %v527 = vsel %vm483, %v517, %v526
  %v529 = vshrl.u32 %v319, 16
  %v531 = vrot.slane %v529, 3
  %v532 = vshll.u32 %v319, 16
  %v534 = vrot.slane %v532, 4
  %v535 = vor.u32 %v531, %v534
  %v536 = vsel %vm483, %v526, %v535
  %v538 = vshrl.u32 %v320, 16
  %v540 = vrot.slane %v538, 3
  %v541 = vshll.u32 %v320, 16
  %v543 = vrot.slane %v541, 4
  %v544 = vor.u32 %v540, %v543
  %v545 = vsel %vm483, %v535, %v544
  %v554 = vunpack.c.l.b16 %v321
  %v555 = vunpack.c.l.b16 %v322
  %v556 = vunpack.c.l.b16 %v323
  %v557 = vunpack.c.l.b16 %v324
  %v558 = vunpack.c.l.b16 %v325
  %v559 = vunpack.c.l.b16 %v326
  %v560 = vunpack.c.l.b16 %v327
  %v561 = vunpack.c.l.b16 %v328
  %v562 = vpack.c.b16 %v555, %v554
  %v563 = vpack.c.b16 %v557, %v556
  %v564 = vpack.c.b16 %v559, %v558
  %v565 = vpack.c.b16 %v561, %v560
  %v571 = vsel %vm36, %v500, 0
  %v574 = vsel %vm36, %v509, 0
  %v577 = vsel %vm36, %v518, 0
  %v580 = vsel %vm36, %v527, 0
  %v583 = vsel %vm36, %v536, 0
  %v586 = vsel %vm36, %v545, 0
  %588 = vmatprep.subr.bf16.mxu0 0
  %589 = vmatpush1.bf16.msra.mxu0 %v562
  %590 = vmatprep.subr.bf16.mxu0 0
  %591 = vmatpush1.bf16.msra.mxu0 %v563
  %592 = vmatprep.subr.bf16.mxu0 0
  %593 = vmatpush1.bf16.msra.mxu0 %v564
  %594 = vmatprep.subr.bf16.mxu0 0
  %595 = vmatpush1.bf16.msra.mxu0 %v565
  %596 = vmatprep.subr.bf16.mxu0 0
  %597 = vmatpush1.bf16.msra.mxu0 0
  %598 = vmatprep.subr.bf16.mxu0 0
  %599 = vmatpush1.bf16.msra.mxu0 0
  %600 = vmatprep.subr.bf16.mxu0 0
  %601 = vmatpush1.bf16.msra.mxu0 0
  %602 = vmatprep.subr.bf16.mxu0 0
  %603 = vmatpush1.bf16.msra.mxu0 0
  %604 = vmatprep.subr.bf16.mxu0 0
  %605 = vmatpush1.bf16.msra.mxu0 0
  %606 = vmatprep.subr.bf16.mxu0 0
  %607 = vmatpush1.bf16.msra.mxu0 0
  %608 = vmatprep.subr.bf16.mxu0 0
  %609 = vmatpush1.bf16.msra.mxu0 0
  %610 = vmatprep.subr.bf16.mxu0 0
  %611 = vmatpush1.bf16.msra.mxu0 0
  %612 = vmatprep.subr.bf16.mxu0 0
  %613 = vmatpush1.bf16.msra.mxu0 0
  %614 = vmatprep.subr.bf16.mxu0 0
  %615 = vmatpush1.bf16.msra.mxu0 0
  %616 = vmatprep.subr.bf16.mxu0 0
  %617 = vmatpush1.bf16.msra.mxu0 0
  %618 = vmatprep.subr.bf16.mxu0 0
  %619 = vmatpush1.bf16.msra.mxu0 0
  %620 = vmatprep.mubr.bf16.mxu0 0
  %621 = vmatmul.mubr.bf16.gmra.mrb[0].mxu0 %v571
  %v622 = vpop.f32.mrb[0].mxu0
  %v623 = vadd.f32 %v437, %v622
  %v624 = vpop.f32.mrb[0].mxu0
  %v625 = vpop.f32.mrb[0].mxu0
  %v626 = vadd.f32 %v440, %v625
  %v627 = vpop.f32.mrb[0].mxu0
  %628 = vmatprep.mubr.bf16.mxu0 0
  %629 = vmatmul.mubr.bf16.gmra.mrb[0].mxu0 %v574
  %v630 = vpop.f32.mrb[0].mxu0
  %v631 = vadd.f32 %v445, %v630
  %v632 = vpop.f32.mrb[0].mxu0
  %v633 = vpop.f32.mrb[0].mxu0
  %v634 = vadd.f32 %v448, %v633
  %v635 = vpop.f32.mrb[0].mxu0
  %636 = vmatprep.mubr.bf16.mxu0 0
  %637 = vmatmul.mubr.bf16.gmra.mrb[0].mxu0 %v577
  %v638 = vpop.f32.mrb[0].mxu0
  %v639 = vadd.f32 %v453, %v638
  %v640 = vpop.f32.mrb[0].mxu0
  %v641 = vpop.f32.mrb[0].mxu0
  %v642 = vadd.f32 %v456, %v641
  %v643 = vpop.f32.mrb[0].mxu0
  %644 = vmatprep.mubr.bf16.mxu0 0
  %645 = vmatmul.mubr.bf16.gmra.mrb[0].mxu0 %v580
  %v646 = vpop.f32.mrb[0].mxu0
  %v647 = vadd.f32 %v461, %v646
  %v648 = vpop.f32.mrb[0].mxu0
  %v649 = vpop.f32.mrb[0].mxu0
  %v650 = vadd.f32 %v464, %v649
  %v651 = vpop.f32.mrb[0].mxu0
  %652 = vmatprep.mubr.bf16.mxu0 0
  %653 = vmatmul.mubr.bf16.gmra.mrb[0].mxu0 %v583
  %v654 = vpop.f32.mrb[0].mxu0
  %v655 = vadd.f32 %v469, %v654
  %v656 = vpop.f32.mrb[0].mxu0
  %v657 = vpop.f32.mrb[0].mxu0
  %v658 = vadd.f32 %v472, %v657
  %v659 = vpop.f32.mrb[0].mxu0
  %660 = vmatprep.mubr.bf16.mxu0 0
  %661 = vmatmul.mubr.bf16.gmra.mrb[0].mxu0 %v586
  %v662 = vpop.f32.mrb[0].mxu0
  %v663 = vadd.f32 %v477, %v662
  %v664 = vpop.f32.mrb[0].mxu0
  %v665 = vpop.f32.mrb[0].mxu0
  %v666 = vadd.f32 %v480, %v665
  %v667 = vpop.f32.mrb[0].mxu0
  %668 = vdwg.mxu0
  %v669 = vld [vmem:[#allocation2 + $0x30] sm:$0x1f]
  %s670 = scalar_lea.vmem %s3, 64
  %v671 = vld [vmem:[%s670] sm:$0xf]
  %v672 = vld [vmem:[%s670 + $0x4] sm:$0xf]
  %v673 = vld [vmem:[%s670 + $0x8] sm:$0xf]
  %v674 = vld [vmem:[%s670 + $0xc] sm:$0xf]
  %v675 = vld [vmem:[%s670 + $0x10] sm:$0xf]
  %v676 = vld [vmem:[%s670 + $0x14] sm:$0xf]
  %v677 = vld [vmem:[%s670 + $0x18] sm:$0xf]
  %v678 = vld [vmem:[%s670 + $0x1c] sm:$0xf]
  %vm679 = vsmask.f32 3328
  %v681 = vshrl.u32 %v329, 16
  %v683 = vrot.slane %v681, 4
  %v684 = vshll.u32 %v329, 16
  %v686 = vrot.slane %v684, 5
  %v687 = vor.u32 %v683, %v686
  %v688 = vrot.slane %v493, 4
  %v689 = vrot.slane %v496, 5
  %v690 = vor.u32 %v688, %v689
  %v691 = vsel %vm679, %v687, %v690
  %v692 = vrot.slane %v502, 4
  %v693 = vrot.slane %v505, 5
  %v694 = vor.u32 %v692, %v693
  %v695 = vsel %vm679, %v690, %v694
  %v696 = vrot.slane %v511, 4
  %v697 = vrot.slane %v514, 5
  %v698 = vor.u32 %v696, %v697
  %v699 = vsel %vm679, %v694, %v698
  %v700 = vrot.slane %v520, 4
  %v701 = vrot.slane %v523, 5
  %v702 = vor.u32 %v700, %v701
  %v703 = vsel %vm679, %v698, %v702
  %v704 = vrot.slane %v529, 4
  %v705 = vrot.slane %v532, 5
  %v706 = vor.u32 %v704, %v705
  %v707 = vsel %vm679, %v702, %v706
  %v709 = vshrl.u32 %v669, 16
  %v711 = vrot.slane %v709, 4
  %v712 = vshll.u32 %v669, 16
  %v714 = vrot.slane %v712, 5
  %v715 = vor.u32 %v711, %v714
  %v716 = vsel %vm679, %v706, %v715
  %v725 = vunpack.c.l.b16 %v671
  %v726 = vunpack.c.l.b16 %v672
  %v727 = vunpack.c.l.b16 %v673
  %v728 = vunpack.c.l.b16 %v674
  %v729 = vunpack.c.l.b16 %v675
  %v730 = vunpack.c.l.b16 %v676
  %v731 = vunpack.c.l.b16 %v677
  %v732 = vunpack.c.l.b16 %v678
  %v733 = vpack.c.b16 %v726, %v725
  %v734 = vpack.c.b16 %v728, %v727
  %v735 = vpack.c.b16 %v730, %v729
  %v736 = vpack.c.b16 %v732, %v731
  %v742 = vsel %vm36, %v691, 0
  %v745 = vsel %vm36, %v695, 0
  %v748 = vsel %vm36, %v699, 0
  %v751 = vsel %vm36, %v703, 0
  %v754 = vsel %vm36, %v707, 0
  %v757 = vsel %vm36, %v716, 0
  %759 = vmatprep.subr.bf16.mxu0 0
  %760 = vmatpush1.bf16.msra.mxu0 %v733
  %761 = vmatprep.subr.bf16.mxu0 0
  %762 = vmatpush1.bf16.msra.mxu0 %v734
  %763 = vmatprep.subr.bf16.mxu0 0
  %764 = vmatpush1.bf16.msra.mxu0 %v735
  %765 = vmatprep.subr.bf16.mxu0 0
  %766 = vmatpush1.bf16.msra.mxu0 %v736
  %767 = vmatprep.subr.bf16.mxu0 0
  %768 = vmatpush1.bf16.msra.mxu0 0
  %769 = vmatprep.subr.bf16.mxu0 0
  %770 = vmatpush1.bf16.msra.mxu0 0
  %771 = vmatprep.subr.bf16.mxu0 0
  %772 = vmatpush1.bf16.msra.mxu0 0
  %773 = vmatprep.subr.bf16.mxu0 0
  %774 = vmatpush1.bf16.msra.mxu0 0
  %775 = vmatprep.subr.bf16.mxu0 0
  %776 = vmatpush1.bf16.msra.mxu0 0
  %777 = vmatprep.subr.bf16.mxu0 0
  %778 = vmatpush1.bf16.msra.mxu0 0
  %779 = vmatprep.subr.bf16.mxu0 0
  %780 = vmatpush1.bf16.msra.mxu0 0
  %781 = vmatprep.subr.bf16.mxu0 0
  %782 = vmatpush1.bf16.msra.mxu0 0
  %783 = vmatprep.subr.bf16.mxu0 0
  %784 = vmatpush1.bf16.msra.mxu0 0
  %785 = vmatprep.subr.bf16.mxu0 0
  %786 = vmatpush1.bf16.msra.mxu0 0
  %787 = vmatprep.subr.bf16.mxu0 0
  %788 = vmatpush1.bf16.msra.mxu0 0
  %789 = vmatprep.subr.bf16.mxu0 0
  %790 = vmatpush1.bf16.msra.mxu0 0
  %791 = vmatprep.mubr.bf16.mxu0 0
  %792 = vmatmul.mubr.bf16.gmra.mrb[0].mxu0 %v742
  %v793 = vpop.f32.mrb[0].mxu0
  %v794 = vadd.f32 0.0, %v793
  %v795 = vpop.f32.mrb[0].mxu0
  %v796 = vpop.f32.mrb[0].mxu0
  %v797 = vadd.f32 0.0, %v796
  %v798 = vpop.f32.mrb[0].mxu0
  %799 = vmatprep.mubr.bf16.mxu0 0
  %800 = vmatmul.mubr.bf16.gmra.mrb[0].mxu0 %v745
  %v801 = vpop.f32.mrb[0].mxu0
  %v802 = vadd.f32 0.0, %v801
  %v803 = vpop.f32.mrb[0].mxu0
  %v804 = vpop.f32.mrb[0].mxu0
  %v805 = vadd.f32 0.0, %v804
  %v806 = vpop.f32.mrb[0].mxu0
  %807 = vmatprep.mubr.bf16.mxu0 0
  %808 = vmatmul.mubr.bf16.gmra.mrb[0].mxu0 %v748
  %v809 = vpop.f32.mrb[0].mxu0
  %v810 = vadd.f32 0.0, %v809
  %v811 = vpop.f32.mrb[0].mxu0
  %v812 = vpop.f32.mrb[0].mxu0
  %v813 = vadd.f32 0.0, %v812
  %v814 = vpop.f32.mrb[0].mxu0
  %815 = vmatprep.mubr.bf16.mxu0 0
  %816 = vmatmul.mubr.bf16.gmra.mrb[0].mxu0 %v751
  %v817 = vpop.f32.mrb[0].mxu0
  %v818 = vadd.f32 0.0, %v817
  %v819 = vpop.f32.mrb[0].mxu0
  %v820 = vpop.f32.mrb[0].mxu0
  %v821 = vadd.f32 0.0, %v820
  %v822 = vpop.f32.mrb[0].mxu0
  %823 = vmatprep.mubr.bf16.mxu0 0
  %824 = vmatmul.mubr.bf16.gmra.mrb[0].mxu0 %v754
  %v825 = vpop.f32.mrb[0].mxu0
  %v826 = vadd.f32 0.0, %v825
  %v827 = vpop.f32.mrb[0].mxu0
  %v828 = vpop.f32.mrb[0].mxu0
  %v829 = vadd.f32 0.0, %v828
  %v830 = vpop.f32.mrb[0].mxu0
  %831 = vmatprep.mubr.bf16.mxu0 0
  %832 = vmatmul.mubr.bf16.gmra.mrb[0].mxu0 %v757
  %v833 = vpop.f32.mrb[0].mxu0
  %v834 = vadd.f32 0.0, %v833
  %v835 = vpop.f32.mrb[0].mxu0
  %v836 = vpop.f32.mrb[0].mxu0
  %v837 = vadd.f32 0.0, %v836
  %v838 = vpop.f32.mrb[0].mxu0
  %839 = vdwg.mxu0
  %v840 = vadd.f32 %v623, %v794
  %v841 = vadd.f32 %v626, %v797
  %v842 = vadd.f32 %v631, %v802
  %v843 = vadd.f32 %v634, %v805
  %v844 = vadd.f32 %v639, %v810
  %v845 = vadd.f32 %v642, %v813
  %v846 = vadd.f32 %v647, %v818
  %v847 = vadd.f32 %v650, %v821
  %v848 = vadd.f32 %v655, %v826
  %v849 = vadd.f32 %v658, %v829
  %v850 = vadd.f32 %v663, %v834
  %v851 = vadd.f32 %v666, %v837
  %v852 = vld [vmem:[#allocation2] sm:$0x80]
  %v853 = vld [vmem:[#allocation2 + $0x30] sm:$0xff]
  %s854 = scalar_lea.vmem %s3, 96
  %v855 = vld [vmem:[%s854] sm:$0xf]
  %v856 = vld [vmem:[%s854 + $0x4] sm:$0xf]
  %v857 = vld [vmem:[%s854 + $0x8] sm:$0xf]
  %v858 = vld [vmem:[%s854 + $0xc] sm:$0xf]
  %v859 = vld [vmem:[%s854 + $0x10] sm:$0xf]
  %v860 = vld [vmem:[%s854 + $0x14] sm:$0xf]
  %v861 = vld [vmem:[%s854 + $0x18] sm:$0xf]
  %v862 = vld [vmem:[%s854 + $0x1c] sm:$0xf]
  %vm863 = vsmask.f32 256
  %v865 = vshrl.u32 %v852, 16
  %v867 = vrot.slane %v865, 7
  %v868 = vrot.slane %v493, 7
  %v869 = vor.u32 %v868, %v496
  %v870 = vsel %vm863, %v867, %v869
  %v871 = vrot.slane %v502, 7
  %v872 = vor.u32 %v871, %v505
  %v873 = vsel %vm863, %v868, %v872
  %v874 = vrot.slane %v511, 7
  %v875 = vor.u32 %v874, %v514
  %v876 = vsel %vm863, %v871, %v875
  %v877 = vrot.slane %v520, 7
  %v878 = vor.u32 %v877, %v523
  %v879 = vsel %vm863, %v874, %v878
  %v880 = vrot.slane %v529, 7
  %v881 = vor.u32 %v880, %v532
  %v882 = vsel %vm863, %v877, %v881
  %v884 = vshrl.u32 %v853, 16
  %v886 = vrot.slane %v884, 7
  %v887 = vshll.u32 %v853, 16
  %v889 = vor.u32 %v886, %v887
  %v890 = vsel %vm863, %v880, %v889
  %v899 = vunpack.c.l.b16 %v855
  %v900 = vunpack.c.l.b16 %v856
  %v901 = vunpack.c.l.b16 %v857
  %v902 = vunpack.c.l.b16 %v858
  %v903 = vunpack.c.l.b16 %v859
  %v904 = vunpack.c.l.b16 %v860
  %v905 = vunpack.c.l.b16 %v861
  %v906 = vunpack.c.l.b16 %v862
  %v907 = vpack.c.b16 %v900, %v899
  %v908 = vpack.c.b16 %v902, %v901
  %v909 = vpack.c.b16 %v904, %v903
  %v910 = vpack.c.b16 %v906, %v905
  %v916 = vsel %vm36, %v870, 0
  %v919 = vsel %vm36, %v873, 0
  %v922 = vsel %vm36, %v876, 0
  %v925 = vsel %vm36, %v879, 0
  %v928 = vsel %vm36, %v882, 0
  %v931 = vsel %vm36, %v890, 0
  %933 = vmatprep.subr.bf16.mxu0 0
  %934 = vmatpush1.bf16.msra.mxu0 %v907
  %935 = vmatprep.subr.bf16.mxu0 0
  %936 = vmatpush1.bf16.msra.mxu0 %v908
  %937 = vmatprep.subr.bf16.mxu0 0
  %938 = vmatpush1.bf16.msra.mxu0 %v909
  %939 = vmatprep.subr.bf16.mxu0 0
  %940 = vmatpush1.bf16.msra.mxu0 %v910
  %941 = vmatprep.subr.bf16.mxu0 0
  %942 = vmatpush1.bf16.msra.mxu0 0
  %943 = vmatprep.subr.bf16.mxu0 0
  %944 = vmatpush1.bf16.msra.mxu0 0
  %945 = vmatprep.subr.bf16.mxu0 0
  %946 = vmatpush1.bf16.msra.mxu0 0
  %947 = vmatprep.subr.bf16.mxu0 0
  %948 = vmatpush1.bf16.msra.mxu0 0
  %949 = vmatprep.subr.bf16.mxu0 0
  %950 = vmatpush1.bf16.msra.mxu0 0
  %951 = vmatprep.subr.bf16.mxu0 0
  %952 = vmatpush1.bf16.msra.mxu0 0
  %953 = vmatprep.subr.bf16.mxu0 0
  %954 = vmatpush1.bf16.msra.mxu0 0
  %955 = vmatprep.subr.bf16.mxu0 0
  %956 = vmatpush1.bf16.msra.mxu0 0
  %957 = vmatprep.subr.bf16.mxu0 0
  %958 = vmatpush1.bf16.msra.mxu0 0
  %959 = vmatprep.subr.bf16.mxu0 0
  %960 = vmatpush1.bf16.msra.mxu0 0
  %961 = vmatprep.subr.bf16.mxu0 0
  %962 = vmatpush1.bf16.msra.mxu0 0
  %963 = vmatprep.subr.bf16.mxu0 0
  %964 = vmatpush1.bf16.msra.mxu0 0
  %965 = vmatprep.mubr.bf16.mxu0 0
  %966 = vmatmul.mubr.bf16.gmra.mrb[0].mxu0 %v916
  %v967 = vpop.f32.mrb[0].mxu0
  %v968 = vadd.f32 0.0, %v967
  %v969 = vpop.f32.mrb[0].mxu0
  %v970 = vpop.f32.mrb[0].mxu0
  %v971 = vadd.f32 0.0, %v970
  %v972 = vpop.f32.mrb[0].mxu0
  %973 = vmatprep.mubr.bf16.mxu0 0
  %974 = vmatmul.mubr.bf16.gmra.mrb[0].mxu0 %v919
  %v975 = vpop.f32.mrb[0].mxu0
  %v976 = vadd.f32 0.0, %v975
  %v977 = vpop.f32.mrb[0].mxu0
  %v978 = vpop.f32.mrb[0].mxu0
  %v979 = vadd.f32 0.0, %v978
  %v980 = vpop.f32.mrb[0].mxu0
  %981 = vmatprep.mubr.bf16.mxu0 0
  %982 = vmatmul.mubr.bf16.gmra.mrb[0].mxu0 %v922
  %v983 = vpop.f32.mrb[0].mxu0
  %v984 = vadd.f32 0.0, %v983
  %v985 = vpop.f32.mrb[0].mxu0
  %v986 = vpop.f32.mrb[0].mxu0
  %v987 = vadd.f32 0.0, %v986
  %v988 = vpop.f32.mrb[0].mxu0
  %989 = vmatprep.mubr.bf16.mxu0 0
  %990 = vmatmul.mubr.bf16.gmra.mrb[0].mxu0 %v925
  %v991 = vpop.f32.mrb[0].mxu0
  %v992 = vadd.f32 0.0, %v991
  %v993 = vpop.f32.mrb[0].mxu0
  %v994 = vpop.f32.mrb[0].mxu0
  %v995 = vadd.f32 0.0, %v994
  %v996 = vpop.f32.mrb[0].mxu0
  %997 = vmatprep.mubr.bf16.mxu0 0
  %998 = vmatmul.mubr.bf16.gmra.mrb[0].mxu0 %v928
  %v999 = vpop.f32.mrb[0].mxu0
  %v1000 = vadd.f32 0.0, %v999
  %v1001 = vpop.f32.mrb[0].mxu0
  %v1002 = vpop.f32.mrb[0].mxu0
  %v1003 = vadd.f32 0.0, %v1002
  %v1004 = vpop.f32.mrb[0].mxu0
  %1005 = vmatprep.mubr.bf16.mxu0 0
  %1006 = vmatmul.mubr.bf16.gmra.mrb[0].mxu0 %v931
  %v1007 = vpop.f32.mrb[0].mxu0
  %v1008 = vadd.f32 0.0, %v1007
  %v1009 = vpop.f32.mrb[0].mxu0
  %v1010 = vpop.f32.mrb[0].mxu0
  %v1011 = vadd.f32 0.0, %v1010
  %v1012 = vpop.f32.mrb[0].mxu0
  %1013 = vdwg.mxu0
  %v1014 = vadd.f32 %v840, %v968
  %v1015 = vadd.f32 %v841, %v971
  %v1016 = vadd.f32 %v842, %v976
  %v1017 = vadd.f32 %v843, %v979
  %v1018 = vadd.f32 %v844, %v984
  %v1019 = vadd.f32 %v845, %v987
  %v1020 = vadd.f32 %v846, %v992
  %v1021 = vadd.f32 %v847, %v995
  %v1022 = vadd.f32 %v848, %v1000
  %v1023 = vadd.f32 %v849, %v1003
  %v1024 = vadd.f32 %v850, %v1008
  %v1025 = vadd.f32 %v851, %v1011
  %s1026 = scalar_lea.vmem %s3, 128
  %v1027 = vld [vmem:[%s1026] sm:$0xf]
  %v1028 = vld [vmem:[%s1026 + $0x4] sm:$0xf]
  %v1029 = vld [vmem:[%s1026 + $0x8] sm:$0xf]
  %v1030 = vld [vmem:[%s1026 + $0xc] sm:$0xf]
  %v1031 = vld [vmem:[%s1026 + $0x10] sm:$0xf]
  %v1032 = vld [vmem:[%s1026 + $0x14] sm:$0xf]
  %v1033 = vld [vmem:[%s1026 + $0x18] sm:$0xf]
  %v1034 = vld [vmem:[%s1026 + $0x1c] sm:$0xf]
  %v1043 = vunpack.c.l.b16 %v1027
  %v1044 = vunpack.c.l.b16 %v1028
  %v1045 = vunpack.c.l.b16 %v1029
  %v1046 = vunpack.c.l.b16 %v1030
  %v1047 = vunpack.c.l.b16 %v1031
  %v1048 = vunpack.c.l.b16 %v1032
  %v1049 = vunpack.c.l.b16 %v1033
  %v1050 = vunpack.c.l.b16 %v1034
  %v1051 = vpack.c.b16 %v1044, %v1043
  %v1052 = vpack.c.b16 %v1046, %v1045
  %v1053 = vpack.c.b16 %v1048, %v1047
  %v1054 = vpack.c.b16 %v1050, %v1049
  %v1059 = vsel %vm36, %v315, 0
  %v1061 = vsel %vm36, %v316, 0
  %v1063 = vsel %vm36, %v317, 0
  %v1065 = vsel %vm36, %v318, 0
  %v1067 = vsel %vm36, %v319, 0
  %v1069 = vsel %vm36, %v853, 0
  %1071 = vmatprep.subr.bf16.mxu0 0
  %1072 = vmatpush1.bf16.msra.mxu0 %v1051
  %1073 = vmatprep.subr.bf16.mxu0 0
  %1074 = vmatpush1.bf16.msra.mxu0 %v1052
  %1075 = vmatprep.subr.bf16.mxu0 0
  %1076 = vmatpush1.bf16.msra.mxu0 %v1053
  %1077 = vmatprep.subr.bf16.mxu0 0
  %1078 = vmatpush1.bf16.msra.mxu0 %v1054
  %1079 = vmatprep.subr.bf16.mxu0 0
  %1080 = vmatpush1.bf16.msra.mxu0 0
  %1081 = vmatprep.subr.bf16.mxu0 0
  %1082 = vmatpush1.bf16.msra.mxu0 0
  %1083 = vmatprep.subr.bf16.mxu0 0
  %1084 = vmatpush1.bf16.msra.mxu0 0
  %1085 = vmatprep.subr.bf16.mxu0 0
  %1086 = vmatpush1.bf16.msra.mxu0 0
  %1087 = vmatprep.subr.bf16.mxu0 0
  %1088 = vmatpush1.bf16.msra.mxu0 0
  %1089 = vmatprep.subr.bf16.mxu0 0
  %1090 = vmatpush1.bf16.msra.mxu0 0
  %1091 = vmatprep.subr.bf16.mxu0 0
  %1092 = vmatpush1.bf16.msra.mxu0 0
  %1093 = vmatprep.subr.bf16.mxu0 0
  %1094 = vmatpush1.bf16.msra.mxu0 0
  %1095 = vmatprep.subr.bf16.mxu0 0
  %1096 = vmatpush1.bf16.msra.mxu0 0
  %1097 = vmatprep.subr.bf16.mxu0 0
  %1098 = vmatpush1.bf16.msra.mxu0 0
  %1099 = vmatprep.subr.bf16.mxu0 0
  %1100 = vmatpush1.bf16.msra.mxu0 0
  %1101 = vmatprep.subr.bf16.mxu0 0
  %1102 = vmatpush1.bf16.msra.mxu0 0
  %1103 = vmatprep.mubr.bf16.mxu0 0
  %1104 = vmatmul.mubr.bf16.gmra.mrb[0].mxu0 %v1059
  %v1105 = vpop.f32.mrb[0].mxu0
  %v1106 = vadd.f32 0.0, %v1105
  %v1107 = vpop.f32.mrb[0].mxu0
  %v1108 = vpop.f32.mrb[0].mxu0
  %v1109 = vadd.f32 0.0, %v1108
  %v1110 = vpop.f32.mrb[0].mxu0
  %1111 = vmatprep.mubr.bf16.mxu0 0
  %1112 = vmatmul.mubr.bf16.gmra.mrb[0].mxu0 %v1061
  %v1113 = vpop.f32.mrb[0].mxu0
  %v1114 = vadd.f32 0.0, %v1113
  %v1115 = vpop.f32.mrb[0].mxu0
  %v1116 = vpop.f32.mrb[0].mxu0
  %v1117 = vadd.f32 0.0, %v1116
  %v1118 = vpop.f32.mrb[0].mxu0
  %1119 = vmatprep.mubr.bf16.mxu0 0
  %1120 = vmatmul.mubr.bf16.gmra.mrb[0].mxu0 %v1063
  %v1121 = vpop.f32.mrb[0].mxu0
  %v1122 = vadd.f32 0.0, %v1121
  %v1123 = vpop.f32.mrb[0].mxu0
  %v1124 = vpop.f32.mrb[0].mxu0
  %v1125 = vadd.f32 0.0, %v1124
  %v1126 = vpop.f32.mrb[0].mxu0
  %1127 = vmatprep.mubr.bf16.mxu0 0
  %1128 = vmatmul.mubr.bf16.gmra.mrb[0].mxu0 %v1065
  %v1129 = vpop.f32.mrb[0].mxu0
  %v1130 = vadd.f32 0.0, %v1129
  %v1131 = vpop.f32.mrb[0].mxu0
  %v1132 = vpop.f32.mrb[0].mxu0
  %v1133 = vadd.f32 0.0, %v1132
  %v1134 = vpop.f32.mrb[0].mxu0
  %1135 = vmatprep.mubr.bf16.mxu0 0
  %1136 = vmatmul.mubr.bf16.gmra.mrb[0].mxu0 %v1067
  %v1137 = vpop.f32.mrb[0].mxu0
  %v1138 = vadd.f32 0.0, %v1137
  %v1139 = vpop.f32.mrb[0].mxu0
  %v1140 = vpop.f32.mrb[0].mxu0
  %v1141 = vadd.f32 0.0, %v1140
  %v1142 = vpop.f32.mrb[0].mxu0
  %1143 = vmatprep.mubr.bf16.mxu0 0
  %1144 = vmatmul.mubr.bf16.gmra.mrb[0].mxu0 %v1069
  %v1145 = vpop.f32.mrb[0].mxu0
  %v1146 = vadd.f32 0.0, %v1145
  %v1147 = vpop.f32.mrb[0].mxu0
  %v1148 = vpop.f32.mrb[0].mxu0
  %v1149 = vadd.f32 0.0, %v1148
  %v1150 = vpop.f32.mrb[0].mxu0
  %1151 = vdwg.mxu0
  %v1152 = vadd.f32 %v1014, %v1106
  %v1153 = vadd.f32 %v1015, %v1109
  %v1154 = vadd.f32 %v1016, %v1114
  %v1155 = vadd.f32 %v1017, %v1117
  %v1156 = vadd.f32 %v1018, %v1122
  %v1157 = vadd.f32 %v1019, %v1125
  %v1158 = vadd.f32 %v1020, %v1130
  %v1159 = vadd.f32 %v1021, %v1133
  %v1160 = vadd.f32 %v1022, %v1138
  %v1161 = vadd.f32 %v1023, %v1141
  %v1162 = vadd.f32 %v1024, %v1146
  %v1163 = vadd.f32 %v1025, %v1149
  %v1164 = vld [vmem:[#allocation2 + $0x8] sm:$0xff]
  %v1165 = vld [vmem:[#allocation2 + $0x10] sm:$0xff]
  %v1166 = vld [vmem:[#allocation2 + $0x18] sm:$0xff]
  %v1167 = vld [vmem:[#allocation2 + $0x20] sm:$0xff]
  %v1168 = vld [vmem:[#allocation2 + $0x28] sm:$0xff]
  %v1169 = vld [vmem:[#allocation2 + $0x30] sm:$0xff]
  %v1170 = vld [vmem:[#allocation2 + $0x38] sm:$0x1]
  %s1171 = scalar_lea.vmem %s3, 160
  %v1172 = vld [vmem:[%s1171] sm:$0xf]
  %v1173 = vld [vmem:[%s1171 + $0x4] sm:$0xf]
  %v1174 = vld [vmem:[%s1171 + $0x8] sm:$0xf]
  %v1175 = vld [vmem:[%s1171 + $0xc] sm:$0xf]
  %v1176 = vld [vmem:[%s1171 + $0x10] sm:$0xf]
  %v1177 = vld [vmem:[%s1171 + $0x14] sm:$0xf]
  %v1178 = vld [vmem:[%s1171 + $0x18] sm:$0xf]
  %v1179 = vld [vmem:[%s1171 + $0x1c] sm:$0xf]
  %vm1180 = vsmask.f32 7424
  %v1182 = vshrl.u32 %v1164, 16
  %v1184 = vshll.u32 %v1164, 16
  %v1186 = vrot.slane %v1184, 1
  %v1187 = vor.u32 %v1182, %v1186
  %v1189 = vshll.u32 %v1165, 16
  %v1191 = vrot.slane %v1189, 1
  %v1192 = vsel %vm1180, %v1187, %v1191
  %v1193 = vshrl.u32 %v1165, 16
  %v1195 = vor.u32 %v1193, %v1191
  %v1197 = vshll.u32 %v1166, 16
  %v1199 = vrot.slane %v1197, 1
  %v1200 = vsel %vm1180, %v1195, %v1199
  %v1201 = vshrl.u32 %v1166, 16
  %v1203 = vor.u32 %v1201, %v1199
  %v1205 = vshll.u32 %v1167, 16
  %v1207 = vrot.slane %v1205, 1
  %v1208 = vsel %vm1180, %v1203, %v1207
  %v1209 = vshrl.u32 %v1167, 16
  %v1211 = vor.u32 %v1209, %v1207
  %v1213 = vshll.u32 %v1168, 16
  %v1215 = vrot.slane %v1213, 1
  %v1216 = vsel %vm1180, %v1211, %v1215
  %v1217 = vshrl.u32 %v1168, 16
  %v1219 = vor.u32 %v1217, %v1215
  %v1221 = vshll.u32 %v1169, 16
  %v1223 = vrot.slane %v1221, 1
  %v1224 = vsel %vm1180, %v1219, %v1223
  %v1225 = vshrl.u32 %v1169, 16
  %v1227 = vor.u32 %v1225, %v1223
  %v1229 = vshll.u32 %v1170, 16
  %v1231 = vrot.slane %v1229, 1
  %v1232 = vsel %vm1180, %v1227, %v1231
  %v1241 = vunpack.c.l.b16 %v1172
  %v1242 = vunpack.c.l.b16 %v1173
  %v1243 = vunpack.c.l.b16 %v1174
  %v1244 = vunpack.c.l.b16 %v1175
  %v1245 = vunpack.c.l.b16 %v1176
  %v1246 = vunpack.c.l.b16 %v1177
  %v1247 = vunpack.c.l.b16 %v1178
  %v1248 = vunpack.c.l.b16 %v1179
  %v1249 = vpack.c.b16 %v1242, %v1241
  %v1250 = vpack.c.b16 %v1244, %v1243
  %v1251 = vpack.c.b16 %v1246, %v1245
  %v1252 = vpack.c.b16 %v1248, %v1247
  %v1258 = vsel %vm36, %v1192, 0
  %v1261 = vsel %vm36, %v1200, 0
  %v1264 = vsel %vm36, %v1208, 0
  %v1267 = vsel %vm36, %v1216, 0
  %v1270 = vsel %vm36, %v1224, 0
  %v1273 = vsel %vm36, %v1232, 0
  %1275 = vmatprep.subr.bf16.mxu0 0
  %1276 = vmatpush1.bf16.msra.mxu0 %v1249
  %1277 = vmatprep.subr.bf16.mxu0 0
  %1278 = vmatpush1.bf16.msra.mxu0 %v1250
  %1279 = vmatprep.subr.bf16.mxu0 0
  %1280 = vmatpush1.bf16.msra.mxu0 %v1251
  %1281 = vmatprep.subr.bf16.mxu0 0
  %1282 = vmatpush1.bf16.msra.mxu0 %v1252
  %1283 = vmatprep.subr.bf16.mxu0 0
  %1284 = vmatpush1.bf16.msra.mxu0 0
  %1285 = vmatprep.subr.bf16.mxu0 0
  %1286 = vmatpush1.bf16.msra.mxu0 0
  %1287 = vmatprep.subr.bf16.mxu0 0
  %1288 = vmatpush1.bf16.msra.mxu0 0
  %1289 = vmatprep.subr.bf16.mxu0 0
  %1290 = vmatpush1.bf16.msra.mxu0 0
  %1291 = vmatprep.subr.bf16.mxu0 0
  %1292 = vmatpush1.bf16.msra.mxu0 0
  %1293 = vmatprep.subr.bf16.mxu0 0
  %1294 = vmatpush1.bf16.msra.mxu0 0
  %1295 = vmatprep.subr.bf16.mxu0 0
  %1296 = vmatpush1.bf16.msra.mxu0 0
  %1297 = vmatprep.subr.bf16.mxu0 0
  %1298 = vmatpush1.bf16.msra.mxu0 0
  %1299 = vmatprep.subr.bf16.mxu0 0
  %1300 = vmatpush1.bf16.msra.mxu0 0
  %1301 = vmatprep.subr.bf16.mxu0 0
  %1302 = vmatpush1.bf16.msra.mxu0 0
  %1303 = vmatprep.subr.bf16.mxu0 0
  %1304 = vmatpush1.bf16.msra.mxu0 0
  %1305 = vmatprep.subr.bf16.mxu0 0
  %1306 = vmatpush1.bf16.msra.mxu0 0
  %1307 = vmatprep.mubr.bf16.mxu0 0
  %1308 = vmatmul.mubr.bf16.gmra.mrb[0].mxu0 %v1258
  %v1309 = vpop.f32.mrb[0].mxu0
  %v1310 = vadd.f32 0.0, %v1309
  %v1311 = vpop.f32.mrb[0].mxu0
  %v1312 = vpop.f32.mrb[0].mxu0
  %v1313 = vadd.f32 0.0, %v1312
  %v1314 = vpop.f32.mrb[0].mxu0
  %1315 = vmatprep.mubr.bf16.mxu0 0
  %1316 = vmatmul.mubr.bf16.gmra.mrb[0].mxu0 %v1261
  %v1317 = vpop.f32.mrb[0].mxu0
  %v1318 = vadd.f32 0.0, %v1317
  %v1319 = vpop.f32.mrb[0].mxu0
  %v1320 = vpop.f32.mrb[0].mxu0
  %v1321 = vadd.f32 0.0, %v1320
  %v1322 = vpop.f32.mrb[0].mxu0
  %1323 = vmatprep.mubr.bf16.mxu0 0
  %1324 = vmatmul.mubr.bf16.gmra.mrb[0].mxu0 %v1264
  %v1325 = vpop.f32.mrb[0].mxu0
  %v1326 = vadd.f32 0.0, %v1325
  %v1327 = vpop.f32.mrb[0].mxu0
  %v1328 = vpop.f32.mrb[0].mxu0
  %v1329 = vadd.f32 0.0, %v1328
  %v1330 = vpop.f32.mrb[0].mxu0
  %1331 = vmatprep.mubr.bf16.mxu0 0
  %1332 = vmatmul.mubr.bf16.gmra.mrb[0].mxu0 %v1267
  %v1333 = vpop.f32.mrb[0].mxu0
  %v1334 = vadd.f32 0.0, %v1333
  %v1335 = vpop.f32.mrb[0].mxu0
  %v1336 = vpop.f32.mrb[0].mxu0
  %v1337 = vadd.f32 0.0, %v1336
  %v1338 = vpop.f32.mrb[0].mxu0
  %1339 = vmatprep.mubr.bf16.mxu0 0
  %1340 = vmatmul.mubr.bf16.gmra.mrb[0].mxu0 %v1270
  %v1341 = vpop.f32.mrb[0].mxu0
  %v1342 = vadd.f32 0.0, %v1341
  %v1343 = vpop.f32.mrb[0].mxu0
  %v1344 = vpop.f32.mrb[0].mxu0
  %v1345 = vadd.f32 0.0, %v1344
  %v1346 = vpop.f32.mrb[0].mxu0
  %1347 = vmatprep.mubr.bf16.mxu0 0
  %1348 = vmatmul.mubr.bf16.gmra.mrb[0].mxu0 %v1273
  %v1349 = vpop.f32.mrb[0].mxu0
  %v1350 = vadd.f32 0.0, %v1349
  %v1351 = vpop.f32.mrb[0].mxu0
  %v1352 = vpop.f32.mrb[0].mxu0
  %v1353 = vadd.f32 0.0, %v1352
  %v1354 = vpop.f32.mrb[0].mxu0
  %1355 = vdwg.mxu0
  %v1356 = vadd.f32 %v1152, %v1310
  %v1357 = vadd.f32 %v1153, %v1313
  %v1358 = vadd.f32 %v1154, %v1318
  %v1359 = vadd.f32 %v1155, %v1321
  %v1360 = vadd.f32 %v1156, %v1326
  %v1361 = vadd.f32 %v1157, %v1329
  %v1362 = vadd.f32 %v1158, %v1334
  %v1363 = vadd.f32 %v1159, %v1337
  %v1364 = vadd.f32 %v1160, %v1342
  %v1365 = vadd.f32 %v1161, %v1345
  %v1366 = vadd.f32 %v1162, %v1350
  %v1367 = vadd.f32 %v1163, %v1353
  %v1368 = vld [vmem:[#allocation2 + $0x8] sm:$0xf8]
  %v1369 = vld [vmem:[#allocation2 + $0x38] sm:$0xf]
  %s1370 = scalar_lea.vmem %s3, 192
  %v1371 = vld [vmem:[%s1370] sm:$0xf]
  %v1372 = vld [vmem:[%s1370 + $0x4] sm:$0xf]
  %v1373 = vld [vmem:[%s1370 + $0x8] sm:$0xf]
  %v1374 = vld [vmem:[%s1370 + $0xc] sm:$0xf]
  %v1375 = vld [vmem:[%s1370 + $0x10] sm:$0xf]
  %v1376 = vld [vmem:[%s1370 + $0x14] sm:$0xf]
  %v1377 = vld [vmem:[%s1370 + $0x18] sm:$0xf]
  %v1378 = vld [vmem:[%s1370 + $0x1c] sm:$0xf]
  %v1380 = vshrl.u32 %v1368, 16
  %v1382 = vrot.slane %v1380, 3
  %v1383 = vshll.u32 %v1368, 16
  %v1385 = vrot.slane %v1383, 4
  %v1386 = vor.u32 %v1382, %v1385
  %v1387 = vrot.slane %v1193, 3
  %v1388 = vrot.slane %v1189, 4
  %v1389 = vor.u32 %v1387, %v1388
  %v1390 = vsel %vm483, %v1386, %v1389
  %v1391 = vrot.slane %v1201, 3
  %v1392 = vrot.slane %v1197, 4
  %v1393 = vor.u32 %v1391, %v1392
  %v1394 = vsel %vm483, %v1389, %v1393
  %v1395 = vrot.slane %v1209, 3
  %v1396 = vrot.slane %v1205, 4
  %v1397 = vor.u32 %v1395, %v1396
  %v1398 = vsel %vm483, %v1393, %v1397
  %v1399 = vrot.slane %v1217, 3
  %v1400 = vrot.slane %v1213, 4
  %v1401 = vor.u32 %v1399, %v1400
  %v1402 = vsel %vm483, %v1397, %v1401
  %v1403 = vrot.slane %v1225, 3
  %v1404 = vrot.slane %v1221, 4
  %v1405 = vor.u32 %v1403, %v1404
  %v1406 = vsel %vm483, %v1401, %v1405
  %v1408 = vshrl.u32 %v1369, 16
  %v1410 = vrot.slane %v1408, 3
  %v1411 = vshll.u32 %v1369, 16
  %v1413 = vrot.slane %v1411, 4
  %v1414 = vor.u32 %v1410, %v1413
  %v1415 = vsel %vm483, %v1405, %v1414
  %v1424 = vunpack.c.l.b16 %v1371
  %v1425 = vunpack.c.l.b16 %v1372
  %v1426 = vunpack.c.l.b16 %v1373
  %v1427 = vunpack.c.l.b16 %v1374
  %v1428 = vunpack.c.l.b16 %v1375
  %v1429 = vunpack.c.l.b16 %v1376
  %v1430 = vunpack.c.l.b16 %v1377
  %v1431 = vunpack.c.l.b16 %v1378
  %v1432 = vpack.c.b16 %v1425, %v1424
  %v1433 = vpack.c.b16 %v1427, %v1426
  %v1434 = vpack.c.b16 %v1429, %v1428
  %v1435 = vpack.c.b16 %v1431, %v1430
  %v1441 = vsel %vm36, %v1390, 0
  %v1444 = vsel %vm36, %v1394, 0
  %v1447 = vsel %vm36, %v1398, 0
  %v1450 = vsel %vm36, %v1402, 0
  %v1453 = vsel %vm36, %v1406, 0
  %v1456 = vsel %vm36, %v1415, 0
  %1458 = vmatprep.subr.bf16.mxu0 0
  %1459 = vmatpush1.bf16.msra.mxu0 %v1432
  %1460 = vmatprep.subr.bf16.mxu0 0
  %1461 = vmatpush1.bf16.msra.mxu0 %v1433
  %1462 = vmatprep.subr.bf16.mxu0 0
  %1463 = vmatpush1.bf16.msra.mxu0 %v1434
  %1464 = vmatprep.subr.bf16.mxu0 0
  %1465 = vmatpush1.bf16.msra.mxu0 %v1435
  %1466 = vmatprep.subr.bf16.mxu0 0
  %1467 = vmatpush1.bf16.msra.mxu0 0
  %1468 = vmatprep.subr.bf16.mxu0 0
  %1469 = vmatpush1.bf16.msra.mxu0 0
  %1470 = vmatprep.subr.bf16.mxu0 0
  %1471 = vmatpush1.bf16.msra.mxu0 0
  %1472 = vmatprep.subr.bf16.mxu0 0
  %1473 = vmatpush1.bf16.msra.mxu0 0
  %1474 = vmatprep.subr.bf16.mxu0 0
  %1475 = vmatpush1.bf16.msra.mxu0 0
  %1476 = vmatprep.subr.bf16.mxu0 0
  %1477 = vmatpush1.bf16.msra.mxu0 0
  %1478 = vmatprep.subr.bf16.mxu0 0
  %1479 = vmatpush1.bf16.msra.mxu0 0
  %1480 = vmatprep.subr.bf16.mxu0 0
  %1481 = vmatpush1.bf16.msra.mxu0 0
  %1482 = vmatprep.subr.bf16.mxu0 0
  %1483 = vmatpush1.bf16.msra.mxu0 0
  %1484 = vmatprep.subr.bf16.mxu0 0
  %1485 = vmatpush1.bf16.msra.mxu0 0
  %1486 = vmatprep.subr.bf16.mxu0 0
  %1487 = vmatpush1.bf16.msra.mxu0 0
  %1488 = vmatprep.subr.bf16.mxu0 0
  %1489 = vmatpush1.bf16.msra.mxu0 0
  %1490 = vmatprep.mubr.bf16.mxu0 0
  %1491 = vmatmul.mubr.bf16.gmra.mrb[0].mxu0 %v1441
  %v1492 = vpop.f32.mrb[0].mxu0
  %v1493 = vadd.f32 0.0, %v1492
  %v1494 = vpop.f32.mrb[0].mxu0
  %v1495 = vpop.f32.mrb[0].mxu0
  %v1496 = vadd.f32 0.0, %v1495
  %v1497 = vpop.f32.mrb[0].mxu0
  %1498 = vmatprep.mubr.bf16.mxu0 0
  %1499 = vmatmul.mubr.bf16.gmra.mrb[0].mxu0 %v1444
  %v1500 = vpop.f32.mrb[0].mxu0
  %v1501 = vadd.f32 0.0, %v1500
  %v1502 = vpop.f32.mrb[0].mxu0
  %v1503 = vpop.f32.mrb[0].mxu0
  %v1504 = vadd.f32 0.0, %v1503
  %v1505 = vpop.f32.mrb[0].mxu0
  %1506 = vmatprep.mubr.bf16.mxu0 0
  %1507 = vmatmul.mubr.bf16.gmra.mrb[0].mxu0 %v1447
  %v1508 = vpop.f32.mrb[0].mxu0
  %v1509 = vadd.f32 0.0, %v1508
  %v1510 = vpop.f32.mrb[0].mxu0
  %v1511 = vpop.f32.mrb[0].mxu0
  %v1512 = vadd.f32 0.0, %v1511
  %v1513 = vpop.f32.mrb[0].mxu0
  %1514 = vmatprep.mubr.bf16.mxu0 0
  %1515 = vmatmul.mubr.bf16.gmra.mrb[0].mxu0 %v1450
  %v1516 = vpop.f32.mrb[0].mxu0
  %v1517 = vadd.f32 0.0, %v1516
  %v1518 = vpop.f32.mrb[0].mxu0
  %v1519 = vpop.f32.mrb[0].mxu0
  %v1520 = vadd.f32 0.0, %v1519
  %v1521 = vpop.f32.mrb[0].mxu0
  %1522 = vmatprep.mubr.bf16.mxu0 0
  %1523 = vmatmul.mubr.bf16.gmra.mrb[0].mxu0 %v1453
  %v1524 = vpop.f32.mrb[0].mxu0
  %v1525 = vadd.f32 0.0, %v1524
  %v1526 = vpop.f32.mrb[0].mxu0
  %v1527 = vpop.f32.mrb[0].mxu0
  %v1528 = vadd.f32 0.0, %v1527
  %v1529 = vpop.f32.mrb[0].mxu0
  %1530 = vmatprep.mubr.bf16.mxu0 0
  %1531 = vmatmul.mubr.bf16.gmra.mrb[0].mxu0 %v1456
  %v1532 = vpop.f32.mrb[0].mxu0
  %v1533 = vadd.f32 0.0, %v1532
  %v1534 = vpop.f32.mrb[0].mxu0
  %v1535 = vpop.f32.mrb[0].mxu0
  %v1536 = vadd.f32 0.0, %v1535
  %v1537 = vpop.f32.mrb[0].mxu0
  %1538 = vdwg.mxu0
  %v1539 = vadd.f32 %v1356, %v1493
  %v1540 = vadd.f32 %v1357, %v1496
  %v1541 = vadd.f32 %v1358, %v1501
  %v1542 = vadd.f32 %v1359, %v1504
  %v1543 = vadd.f32 %v1360, %v1509
  %v1544 = vadd.f32 %v1361, %v1512
  %v1545 = vadd.f32 %v1362, %v1517
  %v1546 = vadd.f32 %v1363, %v1520
  %v1547 = vadd.f32 %v1364, %v1525
  %v1548 = vadd.f32 %v1365, %v1528
  %v1549 = vadd.f32 %v1366, %v1533
  %v1550 = vadd.f32 %v1367, %v1536
  %v1551 = vld [vmem:[#allocation2 + $0x8] sm:$0xf0]
  %s1552 = scalar_lea.vmem %s3, 224
  %v1553 = vld [vmem:[%s1552] sm:$0xf]
  %v1554 = vld [vmem:[%s1552 + $0x4] sm:$0xf]
  %v1555 = vld [vmem:[%s1552 + $0x8] sm:$0xf]
  %v1556 = vld [vmem:[%s1552 + $0xc] sm:$0xf]
  %v1557 = vld [vmem:[%s1552 + $0x10] sm:$0xf]
  %v1558 = vld [vmem:[%s1552 + $0x14] sm:$0xf]
  %v1559 = vld [vmem:[%s1552 + $0x18] sm:$0xf]
  %v1560 = vld [vmem:[%s1552 + $0x1c] sm:$0xf]
  %v1568 = vrot.slane %v1551, 4
  %v1569 = vrot.slane %v1165, 4
  %v1570 = vsel %vm346, %v1568, %v1569
  %v1571 = vrot.slane %v1166, 4
  %v1572 = vsel %vm346, %v1569, %v1571
  %v1573 = vrot.slane %v1167, 4
  %v1574 = vsel %vm346, %v1571, %v1573
  %v1575 = vrot.slane %v1168, 4
  %v1576 = vsel %vm346, %v1573, %v1575
  %v1577 = vrot.slane %v1169, 4
  %v1578 = vsel %vm346, %v1575, %v1577
  %v1579 = vrot.slane %v1369, 4
  %v1580 = vsel %vm346, %v1577, %v1579
  %v1589 = vunpack.c.l.b16 %v1553
  %v1590 = vunpack.c.l.b16 %v1554
  %v1591 = vunpack.c.l.b16 %v1555
  %v1592 = vunpack.c.l.b16 %v1556
  %v1593 = vunpack.c.l.b16 %v1557
  %v1594 = vunpack.c.l.b16 %v1558
  %v1595 = vunpack.c.l.b16 %v1559
  %v1596 = vunpack.c.l.b16 %v1560
  %v1597 = vpack.c.b16 %v1590, %v1589
  %v1598 = vpack.c.b16 %v1592, %v1591
  %v1599 = vpack.c.b16 %v1594, %v1593
  %v1600 = vpack.c.b16 %v1596, %v1595
  %v1606 = vsel %vm36, %v1570, 0
  %v1609 = vsel %vm36, %v1572, 0
  %v1612 = vsel %vm36, %v1574, 0
  %v1615 = vsel %vm36, %v1576, 0
  %v1618 = vsel %vm36, %v1578, 0
  %v1621 = vsel %vm36, %v1580, 0
  %1623 = vmatprep.subr.bf16.mxu0 0
  %1624 = vmatpush1.bf16.msra.mxu0 %v1597
  %1625 = vmatprep.subr.bf16.mxu0 0
  %1626 = vmatpush1.bf16.msra.mxu0 %v1598
  %1627 = vmatprep.subr.bf16.mxu0 0
  %1628 = vmatpush1.bf16.msra.mxu0 %v1599
  %1629 = vmatprep.subr.bf16.mxu0 0
  %1630 = vmatpush1.bf16.msra.mxu0 %v1600
  %1631 = vmatprep.subr.bf16.mxu0 0
  %1632 = vmatpush1.bf16.msra.mxu0 0
  %1633 = vmatprep.subr.bf16.mxu0 0
  %1634 = vmatpush1.bf16.msra.mxu0 0
  %1635 = vmatprep.subr.bf16.mxu0 0
  %1636 = vmatpush1.bf16.msra.mxu0 0
  %1637 = vmatprep.subr.bf16.mxu0 0
  %1638 = vmatpush1.bf16.msra.mxu0 0
  %1639 = vmatprep.subr.bf16.mxu0 0
  %1640 = vmatpush1.bf16.msra.mxu0 0
  %1641 = vmatprep.subr.bf16.mxu0 0
  %1642 = vmatpush1.bf16.msra.mxu0 0
  %1643 = vmatprep.subr.bf16.mxu0 0
  %1644 = vmatpush1.bf16.msra.mxu0 0
  %1645 = vmatprep.subr.bf16.mxu0 0
  %1646 = vmatpush1.bf16.msra.mxu0 0
  %1647 = vmatprep.subr.bf16.mxu0 0
  %1648 = vmatpush1.bf16.msra.mxu0 0
  %1649 = vmatprep.subr.bf16.mxu0 0
  %1650 = vmatpush1.bf16.msra.mxu0 0
  %1651 = vmatprep.subr.bf16.mxu0 0
  %1652 = vmatpush1.bf16.msra.mxu0 0
  %1653 = vmatprep.subr.bf16.mxu0 0
  %1654 = vmatpush1.bf16.msra.mxu0 0
  %1655 = vmatprep.mubr.bf16.mxu0 0
  %1656 = vmatmul.mubr.bf16.gmra.mrb[0].mxu0 %v1606
  %v1657 = vpop.f32.mrb[0].mxu0
  %v1658 = vadd.f32 0.0, %v1657
  %v1659 = vpop.f32.mrb[0].mxu0
  %v1660 = vpop.f32.mrb[0].mxu0
  %v1661 = vadd.f32 0.0, %v1660
  %v1662 = vpop.f32.mrb[0].mxu0
  %1663 = vmatprep.mubr.bf16.mxu0 0
  %1664 = vmatmul.mubr.bf16.gmra.mrb[0].mxu0 %v1609
  %v1665 = vpop.f32.mrb[0].mxu0
  %v1666 = vadd.f32 0.0, %v1665
  %v1667 = vpop.f32.mrb[0].mxu0
  %v1668 = vpop.f32.mrb[0].mxu0
  %v1669 = vadd.f32 0.0, %v1668
  %v1670 = vpop.f32.mrb[0].mxu0
  %1671 = vmatprep.mubr.bf16.mxu0 0
  %1672 = vmatmul.mubr.bf16.gmra.mrb[0].mxu0 %v1612
  %v1673 = vpop.f32.mrb[0].mxu0
  %v1674 = vadd.f32 0.0, %v1673
  %v1675 = vpop.f32.mrb[0].mxu0
  %v1676 = vpop.f32.mrb[0].mxu0
  %v1677 = vadd.f32 0.0, %v1676
  %v1678 = vpop.f32.mrb[0].mxu0
  %1679 = vmatprep.mubr.bf16.mxu0 0
  %1680 = vmatmul.mubr.bf16.gmra.mrb[0].mxu0 %v1615
  %v1681 = vpop.f32.mrb[0].mxu0
  %v1682 = vadd.f32 0.0, %v1681
  %v1683 = vpop.f32.mrb[0].mxu0
  %v1684 = vpop.f32.mrb[0].mxu0
  %v1685 = vadd.f32 0.0, %v1684
  %v1686 = vpop.f32.mrb[0].mxu0
  %1687 = vmatprep.mubr.bf16.mxu0 0
  %1688 = vmatmul.mubr.bf16.gmra.mrb[0].mxu0 %v1618
  %v1689 = vpop.f32.mrb[0].mxu0
  %v1690 = vadd.f32 0.0, %v1689
  %v1691 = vpop.f32.mrb[0].mxu0
  %v1692 = vpop.f32.mrb[0].mxu0
  %v1693 = vadd.f32 0.0, %v1692
  %v1694 = vpop.f32.mrb[0].mxu0
  %1695 = vmatprep.mubr.bf16.mxu0 0
  %1696 = vmatmul.mubr.bf16.gmra.mrb[0].mxu0 %v1621
  %v1697 = vpop.f32.mrb[0].mxu0
  %v1698 = vadd.f32 0.0, %v1697
  %v1699 = vpop.f32.mrb[0].mxu0
  %v1700 = vpop.f32.mrb[0].mxu0
  %v1701 = vadd.f32 0.0, %v1700
  %v1702 = vpop.f32.mrb[0].mxu0
  %1703 = vdwg.mxu0
  %v1704 = vadd.f32 %v1539, %v1658
  %v1705 = vadd.f32 %v1540, %v1661
  %v1706 = vadd.f32 %v1541, %v1666
  %v1707 = vadd.f32 %v1542, %v1669
  %v1708 = vadd.f32 %v1543, %v1674
  %v1709 = vadd.f32 %v1544, %v1677
  %v1710 = vadd.f32 %v1545, %v1682
  %v1711 = vadd.f32 %v1546, %v1685
  %v1712 = vadd.f32 %v1547, %v1690
  %v1713 = vadd.f32 %v1548, %v1693
  %v1714 = vadd.f32 %v1549, %v1698
  %v1715 = vadd.f32 %v1550, %v1701
  %v1716 = vld [vmem:[#allocation2 + $0x38] sm:$0x1f]
  %s1717 = scalar_lea.vmem %s3, 256
  %v1718 = vld [vmem:[%s1717] sm:$0xf]
  %v1719 = vld [vmem:[%s1717 + $0x4] sm:$0xf]
  %v1720 = vld [vmem:[%s1717 + $0x8] sm:$0xf]
  %v1721 = vld [vmem:[%s1717 + $0xc] sm:$0xf]
  %v1722 = vld [vmem:[%s1717 + $0x10] sm:$0xf]
  %v1723 = vld [vmem:[%s1717 + $0x14] sm:$0xf]
  %v1724 = vld [vmem:[%s1717 + $0x18] sm:$0xf]
  %v1725 = vld [vmem:[%s1717 + $0x1c] sm:$0xf]
  %v1727 = vshrl.u32 %v1551, 16
  %v1729 = vrot.slane %v1727, 4
  %v1730 = vshll.u32 %v1551, 16
  %v1732 = vrot.slane %v1730, 5
  %v1733 = vor.u32 %v1729, %v1732
  %v1734 = vrot.slane %v1193, 4
  %v1735 = vrot.slane %v1189, 5
  %v1736 = vor.u32 %v1734, %v1735
  %v1737 = vsel %vm679, %v1733, %v1736
  %v1738 = vrot.slane %v1201, 4
  %v1739 = vrot.slane %v1197, 5
  %v1740 = vor.u32 %v1738, %v1739
  %v1741 = vsel %vm679, %v1736, %v1740
  %v1742 = vrot.slane %v1209, 4
  %v1743 = vrot.slane %v1205, 5
  %v1744 = vor.u32 %v1742, %v1743
  %v1745 = vsel %vm679, %v1740, %v1744
  %v1746 = vrot.slane %v1217, 4
  %v1747 = vrot.slane %v1213, 5
  %v1748 = vor.u32 %v1746, %v1747
  %v1749 = vsel %vm679, %v1744, %v1748
  %v1750 = vrot.slane %v1225, 4
  %v1751 = vrot.slane %v1221, 5
  %v1752 = vor.u32 %v1750, %v1751
  %v1753 = vsel %vm679, %v1748, %v1752
  %v1755 = vshrl.u32 %v1716, 16
  %v1757 = vrot.slane %v1755, 4
  %v1758 = vshll.u32 %v1716, 16
  %v1760 = vrot.slane %v1758, 5
  %v1761 = vor.u32 %v1757, %v1760
  %v1762 = vsel %vm679, %v1752, %v1761
  %v1771 = vunpack.c.l.b16 %v1718
  %v1772 = vunpack.c.l.b16 %v1719
  %v1773 = vunpack.c.l.b16 %v1720
  %v1774 = vunpack.c.l.b16 %v1721
  %v1775 = vunpack.c.l.b16 %v1722
  %v1776 = vunpack.c.l.b16 %v1723
  %v1777 = vunpack.c.l.b16 %v1724
  %v1778 = vunpack.c.l.b16 %v1725
  %v1779 = vpack.c.b16 %v1772, %v1771
  %v1780 = vpack.c.b16 %v1774, %v1773
  %v1781 = vpack.c.b16 %v1776, %v1775
  %v1782 = vpack.c.b16 %v1778, %v1777
  %v1788 = vsel %vm36, %v1737, 0
  %v1791 = vsel %vm36, %v1741, 0
  %v1794 = vsel %vm36, %v1745, 0
  %v1797 = vsel %vm36, %v1749, 0
  %v1800 = vsel %vm36, %v1753, 0
  %v1803 = vsel %vm36, %v1762, 0
  %1805 = vmatprep.subr.bf16.mxu0 0
  %1806 = vmatpush1.bf16.msra.mxu0 %v1779
  %1807 = vmatprep.subr.bf16.mxu0 0
  %1808 = vmatpush1.bf16.msra.mxu0 %v1780
  %1809 = vmatprep.subr.bf16.mxu0 0
  %1810 = vmatpush1.bf16.msra.mxu0 %v1781
  %1811 = vmatprep.subr.bf16.mxu0 0
  %1812 = vmatpush1.bf16.msra.mxu0 %v1782
  %1813 = vmatprep.subr.bf16.mxu0 0
  %1814 = vmatpush1.bf16.msra.mxu0 0
  %1815 = vmatprep.subr.bf16.mxu0 0
  %1816 = vmatpush1.bf16.msra.mxu0 0
  %1817 = vmatprep.subr.bf16.mxu0 0
  %1818 = vmatpush1.bf16.msra.mxu0 0
  %1819 = vmatprep.subr.bf16.mxu0 0
  %1820 = vmatpush1.bf16.msra.mxu0 0
  %1821 = vmatprep.subr.bf16.mxu0 0
  %1822 = vmatpush1.bf16.msra.mxu0 0
  %1823 = vmatprep.subr.bf16.mxu0 0
  %1824 = vmatpush1.bf16.msra.mxu0 0
  %1825 = vmatprep.subr.bf16.mxu0 0
  %1826 = vmatpush1.bf16.msra.mxu0 0
  %1827 = vmatprep.subr.bf16.mxu0 0
  %1828 = vmatpush1.bf16.msra.mxu0 0
  %1829 = vmatprep.subr.bf16.mxu0 0
  %1830 = vmatpush1.bf16.msra.mxu0 0
  %1831 = vmatprep.subr.bf16.mxu0 0
  %1832 = vmatpush1.bf16.msra.mxu0 0
  %1833 = vmatprep.subr.bf16.mxu0 0
  %1834 = vmatpush1.bf16.msra.mxu0 0
  %1835 = vmatprep.subr.bf16.mxu0 0
  %1836 = vmatpush1.bf16.msra.mxu0 0
  %1837 = vmatprep.mubr.bf16.mxu0 0
  %1838 = vmatmul.mubr.bf16.gmra.mrb[0].mxu0 %v1788
  %v1839 = vpop.f32.mrb[0].mxu0
  %v1840 = vadd.f32 0.0, %v1839
  %v1841 = vpop.f32.mrb[0].mxu0
  %v1842 = vpop.f32.mrb[0].mxu0
  %v1843 = vadd.f32 0.0, %v1842
  %v1844 = vpop.f32.mrb[0].mxu0
  %1845 = vmatprep.mubr.bf16.mxu0 0
  %1846 = vmatmul.mubr.bf16.gmra.mrb[0].mxu0 %v1791
  %v1847 = vpop.f32.mrb[0].mxu0
  %v1848 = vadd.f32 0.0, %v1847
  %v1849 = vpop.f32.mrb[0].mxu0
  %v1850 = vpop.f32.mrb[0].mxu0
  %v1851 = vadd.f32 0.0, %v1850
  %v1852 = vpop.f32.mrb[0].mxu0
  %1853 = vmatprep.mubr.bf16.mxu0 0
  %1854 = vmatmul.mubr.bf16.gmra.mrb[0].mxu0 %v1794
  %v1855 = vpop.f32.mrb[0].mxu0
  %v1856 = vadd.f32 0.0, %v1855
  %v1857 = vpop.f32.mrb[0].mxu0
  %v1858 = vpop.f32.mrb[0].mxu0
  %v1859 = vadd.f32 0.0, %v1858
  %v1860 = vpop.f32.mrb[0].mxu0
  %1861 = vmatprep.mubr.bf16.mxu0 0
  %1862 = vmatmul.mubr.bf16.gmra.mrb[0].mxu0 %v1797
  %v1863 = vpop.f32.mrb[0].mxu0
  %v1864 = vadd.f32 0.0, %v1863
  %v1865 = vpop.f32.mrb[0].mxu0
  %v1866 = vpop.f32.mrb[0].mxu0
  %v1867 = vadd.f32 0.0, %v1866
  %v1868 = vpop.f32.mrb[0].mxu0
  %1869 = vmatprep.mubr.bf16.mxu0 0
  %1870 = vmatmul.mubr.bf16.gmra.mrb[0].mxu0 %v1800
  %v1871 = vpop.f32.mrb[0].mxu0
  %v1872 = vadd.f32 0.0, %v1871
  %v1873 = vpop.f32.mrb[0].mxu0
  %v1874 = vpop.f32.mrb[0].mxu0
  %v1875 = vadd.f32 0.0, %v1874
  %v1876 = vpop.f32.mrb[0].mxu0
  %1877 = vmatprep.mubr.bf16.mxu0 0
  %1878 = vmatmul.mubr.bf16.gmra.mrb[0].mxu0 %v1803
  %v1879 = vpop.f32.mrb[0].mxu0
  %v1880 = vadd.f32 0.0, %v1879
  %v1881 = vpop.f32.mrb[0].mxu0
  %v1882 = vpop.f32.mrb[0].mxu0
  %v1883 = vadd.f32 0.0, %v1882
  %v1884 = vpop.f32.mrb[0].mxu0
  %1885 = vdwg.mxu0
  %v1886 = vadd.f32 %v1704, %v1840
  %v1887 = vadd.f32 %v1705, %v1843
  %v1888 = vadd.f32 %v1706, %v1848
  %v1889 = vadd.f32 %v1707, %v1851
  %v1890 = vadd.f32 %v1708, %v1856
  %v1891 = vadd.f32 %v1709, %v1859
  %v1892 = vadd.f32 %v1710, %v1864
  %v1893 = vadd.f32 %v1711, %v1867
  %v1894 = vadd.f32 %v1712, %v1872
  %v1895 = vadd.f32 %v1713, %v1875
  %v1896 = vadd.f32 %v1714, %v1880
  %v1897 = vadd.f32 %v1715, %v1883
  %v1898 = vld [vmem:[%s4] sm:$0x1]
  %v1900 = vlaneseq
  %v1901 = vshrl.u32 %v1900, 7
  %v1902 = vsub.s32 0, %v1901
  %v1903 = vrot.slane %v1898, %v1902
  %v1905 = vadd.f32 %v1886, %v1903
  %v1906 = vadd.f32 %v1887, %v1903
  %v1907 = vadd.f32 %v1888, %v1903
  %v1908 = vadd.f32 %v1889, %v1903
  %v1909 = vadd.f32 %v1890, %v1903
  %v1910 = vadd.f32 %v1891, %v1903
  %v1911 = vadd.f32 %v1892, %v1903
  %v1912 = vadd.f32 %v1893, %v1903
  %v1913 = vadd.f32 %v1894, %v1903
  %v1914 = vadd.f32 %v1895, %v1903
  %v1915 = vadd.f32 %v1896, %v1903
  %v1916 = vadd.f32 %v1897, %v1903
  %v1917 = vmax.f32 %v1905, 0.0
  %v1918 = vmax.f32 %v1906, 0.0
  %v1919 = vmax.f32 %v1907, 0.0
  %v1920 = vmax.f32 %v1908, 0.0
  %v1921 = vmax.f32 %v1909, 0.0
  %v1922 = vmax.f32 %v1910, 0.0
  %v1923 = vmax.f32 %v1911, 0.0
  %v1924 = vmax.f32 %v1912, 0.0
  %v1925 = vmax.f32 %v1913, 0.0
  %v1926 = vmax.f32 %v1914, 0.0
  %v1927 = vmax.f32 %v1915, 0.0
  %v1928 = vmax.f32 %v1916, 0.0
  %v1929 = vmul.f32 %v1917, %v233
  %v1930 = vmul.f32 %v1918, %v238
  %v1931 = vmul.f32 %v1919, %v243
  %v1932 = vmul.f32 %v1920, %v248
  %v1933 = vmul.f32 %v1921, %v253
  %v1934 = vmul.f32 %v1922, %v258
  %v1935 = vmul.f32 %v1923, %v263
  %v1936 = vmul.f32 %v1924, %v268
  %v1937 = vmul.f32 %v1925, %v273
  %v1938 = vmul.f32 %v1926, %v278
  %v1939 = vmul.f32 %v1927, %v283
  %v1940 = vmul.f32 %v1928, %v288
  %v1941 = vpack.c.bf16 %v1930, %v1929
  %v1942 = vpack.c.bf16 %v1932, %v1931
  %v1943 = vpack.c.bf16 %v1934, %v1933
  %v1944 = vpack.c.bf16 %v1936, %v1935
  %v1945 = vpack.c.bf16 %v1938, %v1937
  %v1946 = vpack.c.bf16 %v1940, %v1939
  %1947 = vst [vmem:[#allocation3 + $0x8] sm:$0xff] %v1941
  %1948 = vst [vmem:[#allocation3 + $0x10] sm:$0xff] %v1942
  %1949 = vst [vmem:[#allocation3 + $0x18] sm:$0xff] %v1943
  %1950 = vst [vmem:[#allocation3 + $0x20] sm:$0xff] %v1944
  %1951 = vst [vmem:[#allocation3 + $0x28] sm:$0xff] %v1945
  %1952 = vst [vmem:[#allocation3 + $0x30] sm:$0xff] %v1946
  %v1953 = vld [vmem:[#allocation3] sm:$0xf8]
  %v1954 = vld [vmem:[#allocation3 + $0x8] sm:$0xff]
  %v1955 = vld [vmem:[#allocation3 + $0x10] sm:$0xff]
  %v1956 = vld [vmem:[#allocation3 + $0x18] sm:$0xff]
  %v1957 = vld [vmem:[#allocation3 + $0x20] sm:$0xff]
  %v1958 = vld [vmem:[#allocation3 + $0x28] sm:$0xff]
  %v1959 = vld [vmem:[#allocation3 + $0x30] sm:$0xf]
  %v1960 = vld [vmem:[%s5] sm:$0xf]
  %v1961 = vld [vmem:[%s5 + $0x4] sm:$0xf]
  %v1962 = vld [vmem:[%s5 + $0x8] sm:$0xf]
  %v1963 = vld [vmem:[%s5 + $0xc] sm:$0xf]
  %v1964 = vld [vmem:[%s5 + $0x10] sm:$0xf]
  %v1965 = vld [vmem:[%s5 + $0x14] sm:$0xf]
  %v1966 = vld [vmem:[%s5 + $0x18] sm:$0xf]
  %v1967 = vld [vmem:[%s5 + $0x1c] sm:$0xf]
  %v1968 = vld [vmem:[%s5 + $0x20] sm:$0xf]
  %v1969 = vld [vmem:[%s5 + $0x24] sm:$0xf]
  %v1970 = vld [vmem:[%s5 + $0x28] sm:$0xf]
  %v1971 = vld [vmem:[%s5 + $0x2c] sm:$0xf]
  %v1972 = vld [vmem:[%s5 + $0x30] sm:$0xf]
  %v1973 = vld [vmem:[%s5 + $0x34] sm:$0xf]
  %v1974 = vld [vmem:[%s5 + $0x38] sm:$0xf]
  %v1975 = vld [vmem:[%s5 + $0x3c] sm:$0xf]
  %v1976 = vld [vmem:[#allocation3] sm:$0xf0]
  %s1977 = scalar_lea.vmem %s5, 64
  %v1978 = vld [vmem:[%s1977] sm:$0xf]
  %v1979 = vld [vmem:[%s1977 + $0x4] sm:$0xf]
  %v1980 = vld [vmem:[%s1977 + $0x8] sm:$0xf]
  %v1981 = vld [vmem:[%s1977 + $0xc] sm:$0xf]
  %v1982 = vld [vmem:[%s1977 + $0x10] sm:$0xf]
  %v1983 = vld [vmem:[%s1977 + $0x14] sm:$0xf]
  %v1984 = vld [vmem:[%s1977 + $0x18] sm:$0xf]
  %v1985 = vld [vmem:[%s1977 + $0x1c] sm:$0xf]
  %v1986 = vld [vmem:[%s1977 + $0x20] sm:$0xf]
  %v1987 = vld [vmem:[%s1977 + $0x24] sm:$0xf]
  %v1988 = vld [vmem:[%s1977 + $0x28] sm:$0xf]
  %v1989 = vld [vmem:[%s1977 + $0x2c] sm:$0xf]
  %v1990 = vld [vmem:[%s1977 + $0x30] sm:$0xf]
  %v1991 = vld [vmem:[%s1977 + $0x34] sm:$0xf]
  %v1992 = vld [vmem:[%s1977 + $0x38] sm:$0xf]
  %v1993 = vld [vmem:[%s1977 + $0x3c] sm:$0xf]
  %v2001 = vrot.slane %v1976, 4
  %v2002 = vrot.slane %v1954, 4
  %v2003 = vsel %vm346, %v2001, %v2002
  %v2004 = vrot.slane %v1955, 4
  %v2005 = vsel %vm346, %v2002, %v2004
  %v2006 = vrot.slane %v1956, 4
  %v2007 = vsel %vm346, %v2004, %v2006
  %v2008 = vrot.slane %v1957, 4
  %v2009 = vsel %vm346, %v2006, %v2008
  %v2010 = vrot.slane %v1958, 4
  %v2011 = vsel %vm346, %v2008, %v2010
  %v2012 = vrot.slane %v1959, 4
  %v2013 = vsel %vm346, %v2010, %v2012
  %v2036 = vunpack.c.l.b16 %v1978
  %v2037 = vunpack.c.l.b16 %v1979
  %v2038 = vunpack.c.l.b16 %v1980
  %v2039 = vunpack.c.l.b16 %v1981
  %v2040 = vunpack.c.l.b16 %v1982
  %v2041 = vunpack.c.l.b16 %v1983
  %v2042 = vunpack.c.l.b16 %v1984
  %v2043 = vunpack.c.l.b16 %v1985
  %v2044 = vunpack.c.l.b16 %v1986
  %v2045 = vunpack.c.l.b16 %v1987
  %v2046 = vunpack.c.l.b16 %v1988
  %v2047 = vunpack.c.l.b16 %v1989
  %v2048 = vunpack.c.l.b16 %v1990
  %v2049 = vunpack.c.l.b16 %v1991
  %v2050 = vunpack.c.l.b16 %v1992
  %v2051 = vunpack.c.l.b16 %v1993
  %v2052 = vpack.c.b16 %v2037, %v2036
  %v2053 = vpack.c.b16 %v2039, %v2038
  %v2054 = vpack.c.b16 %v2041, %v2040
  %v2055 = vpack.c.b16 %v2043, %v2042
  %v2056 = vpack.c.b16 %v2045, %v2044
  %v2057 = vpack.c.b16 %v2047, %v2046
  %v2058 = vpack.c.b16 %v2049, %v2048
  %v2059 = vpack.c.b16 %v2051, %v2050
  %2068 = vmatprep.subr.bf16.mxu0 0
  %2069 = vmatpush1.bf16.msra.mxu0 %v2052
  %2070 = vmatprep.subr.bf16.mxu0 0
  %2071 = vmatpush1.bf16.msra.mxu0 %v2053
  %2072 = vmatprep.subr.bf16.mxu0 0
  %2073 = vmatpush1.bf16.msra.mxu0 %v2054
  %2074 = vmatprep.subr.bf16.mxu0 0
  %2075 = vmatpush1.bf16.msra.mxu0 %v2055
  %2076 = vmatprep.subr.bf16.mxu0 0
  %2077 = vmatpush1.bf16.msra.mxu0 %v2056
  %2078 = vmatprep.subr.bf16.mxu0 0
  %2079 = vmatpush1.bf16.msra.mxu0 %v2057
  %2080 = vmatprep.subr.bf16.mxu0 0
  %2081 = vmatpush1.bf16.msra.mxu0 %v2058
  %2082 = vmatprep.subr.bf16.mxu0 0
  %2083 = vmatpush1.bf16.msra.mxu0 %v2059
  %2084 = vmatprep.subr.bf16.mxu0 0
  %2085 = vmatpush1.bf16.msra.mxu0 0
  %2086 = vmatprep.subr.bf16.mxu0 0
  %2087 = vmatpush1.bf16.msra.mxu0 0
  %2088 = vmatprep.subr.bf16.mxu0 0
  %2089 = vmatpush1.bf16.msra.mxu0 0
  %2090 = vmatprep.subr.bf16.mxu0 0
  %2091 = vmatpush1.bf16.msra.mxu0 0
  %2092 = vmatprep.subr.bf16.mxu0 0
  %2093 = vmatpush1.bf16.msra.mxu0 0
  %2094 = vmatprep.subr.bf16.mxu0 0
  %2095 = vmatpush1.bf16.msra.mxu0 0
  %2096 = vmatprep.subr.bf16.mxu0 0
  %2097 = vmatpush1.bf16.msra.mxu0 0
  %2098 = vmatprep.subr.bf16.mxu0 0
  %2099 = vmatpush1.bf16.msra.mxu0 0
  %2100 = vmatprep.mubr.bf16.mxu0 0
  %2101 = vmatmul.mubr.bf16.gmra.mrb[0].mxu0 %v2003
  %v2102 = vpop.f32.mrb[0].mxu0
  %v2103 = vadd.f32 0.0, %v2102
  %v2104 = vpop.f32.mrb[0].mxu0
  %v2105 = vpop.f32.mrb[0].mxu0
  %v2106 = vadd.f32 0.0, %v2105
  %v2107 = vpop.f32.mrb[0].mxu0
  %2108 = vmatprep.mubr.bf16.mxu0 0
  %2109 = vmatmul.mubr.bf16.gmra.mrb[0].mxu0 %v2005
  %v2110 = vpop.f32.mrb[0].mxu0
  %v2111 = vadd.f32 0.0, %v2110
  %v2112 = vpop.f32.mrb[0].mxu0
  %v2113 = vpop.f32.mrb[0].mxu0
  %v2114 = vadd.f32 0.0, %v2113
  %v2115 = vpop.f32.mrb[0].mxu0
  %2116 = vmatprep.mubr.bf16.mxu0 0
  %2117 = vmatmul.mubr.bf16.gmra.mrb[0].mxu0 %v2007
  %v2118 = vpop.f32.mrb[0].mxu0
  %v2119 = vadd.f32 0.0, %v2118
  %v2120 = vpop.f32.mrb[0].mxu0
  %v2121 = vpop.f32.mrb[0].mxu0
  %v2122 = vadd.f32 0.0, %v2121
  %v2123 = vpop.f32.mrb[0].mxu0
  %2124 = vmatprep.mubr.bf16.mxu0 0
  %2125 = vmatmul.mubr.bf16.gmra.mrb[0].mxu0 %v2009
  %v2126 = vpop.f32.mrb[0].mxu0
  %v2127 = vadd.f32 0.0, %v2126
  %v2128 = vpop.f32.mrb[0].mxu0
  %v2129 = vpop.f32.mrb[0].mxu0
  %v2130 = vadd.f32 0.0, %v2129
  %v2131 = vpop.f32.mrb[0].mxu0
  %2132 = vmatprep.mubr.bf16.mxu0 0
  %2133 = vmatmul.mubr.bf16.gmra.mrb[0].mxu0 %v2011
  %v2134 = vpop.f32.mrb[0].mxu0
  %v2135 = vadd.f32 0.0, %v2134
  %v2136 = vpop.f32.mrb[0].mxu0
  %v2137 = vpop.f32.mrb[0].mxu0
  %v2138 = vadd.f32 0.0, %v2137
  %v2139 = vpop.f32.mrb[0].mxu0
  %2140 = vmatprep.mubr.bf16.mxu0 0
  %2141 = vmatmul.mubr.bf16.gmra.mrb[0].mxu0 %v2013
  %v2142 = vpop.f32.mrb[0].mxu0
  %v2143 = vadd.f32 0.0, %v2142
  %v2144 = vpop.f32.mrb[0].mxu0
  %v2145 = vpop.f32.mrb[0].mxu0
  %v2146 = vadd.f32 0.0, %v2145
  %v2147 = vpop.f32.mrb[0].mxu0
  %2148 = vdwg.mxu0
  %v2150 = vshrl.u32 %v1953, 16
  %v2152 = vrot.slane %v2150, 3
  %v2153 = vshll.u32 %v1953, 16
  %v2155 = vrot.slane %v2153, 4
  %v2156 = vor.u32 %v2152, %v2155
  %v2158 = vshrl.u32 %v1954, 16
  %v2160 = vrot.slane %v2158, 3
  %v2161 = vshll.u32 %v1954, 16
  %v2163 = vrot.slane %v2161, 4
  %v2164 = vor.u32 %v2160, %v2163
  %v2165 = vsel %vm483, %v2156, %v2164
  %v2167 = vshrl.u32 %v1955, 16
  %v2169 = vrot.slane %v2167, 3
  %v2170 = vshll.u32 %v1955, 16
  %v2172 = vrot.slane %v2170, 4
  %v2173 = vor.u32 %v2169, %v2172
  %v2174 = vsel %vm483, %v2164, %v2173
  %v2176 = vshrl.u32 %v1956, 16
  %v2178 = vrot.slane %v2176, 3
  %v2179 = vshll.u32 %v1956, 16
  %v2181 = vrot.slane %v2179, 4
  %v2182 = vor.u32 %v2178, %v2181
  %v2183 = vsel %vm483, %v2173, %v2182
  %v2185 = vshrl.u32 %v1957, 16
  %v2187 = vrot.slane %v2185, 3
  %v2188 = vshll.u32 %v1957, 16
  %v2190 = vrot.slane %v2188, 4
  %v2191 = vor.u32 %v2187, %v2190
  %v2192 = vsel %vm483, %v2182, %v2191
  %v2194 = vshrl.u32 %v1958, 16
  %v2196 = vrot.slane %v2194, 3
  %v2197 = vshll.u32 %v1958, 16
  %v2199 = vrot.slane %v2197, 4
  %v2200 = vor.u32 %v2196, %v2199
  %v2201 = vsel %vm483, %v2191, %v2200
  %v2203 = vshrl.u32 %v1959, 16
  %v2205 = vrot.slane %v2203, 3
  %v2206 = vshll.u32 %v1959, 16
  %v2208 = vrot.slane %v2206, 4
  %v2209 = vor.u32 %v2205, %v2208
  %v2210 = vsel %vm483, %v2200, %v2209
  %v2233 = vunpack.c.l.b16 %v1960
  %v2234 = vunpack.c.l.b16 %v1961
  %v2235 = vunpack.c.l.b16 %v1962
  %v2236 = vunpack.c.l.b16 %v1963
  %v2237 = vunpack.c.l.b16 %v1964
  %v2238 = vunpack.c.l.b16 %v1965
  %v2239 = vunpack.c.l.b16 %v1966
  %v2240 = vunpack.c.l.b16 %v1967
  %v2241 = vunpack.c.l.b16 %v1968
  %v2242 = vunpack.c.l.b16 %v1969
  %v2243 = vunpack.c.l.b16 %v1970
  %v2244 = vunpack.c.l.b16 %v1971
  %v2245 = vunpack.c.l.b16 %v1972
  %v2246 = vunpack.c.l.b16 %v1973
  %v2247 = vunpack.c.l.b16 %v1974
  %v2248 = vunpack.c.l.b16 %v1975
  %v2249 = vpack.c.b16 %v2234, %v2233
  %v2250 = vpack.c.b16 %v2236, %v2235
  %v2251 = vpack.c.b16 %v2238, %v2237
  %v2252 = vpack.c.b16 %v2240, %v2239
  %v2253 = vpack.c.b16 %v2242, %v2241
  %v2254 = vpack.c.b16 %v2244, %v2243
  %v2255 = vpack.c.b16 %v2246, %v2245
  %v2256 = vpack.c.b16 %v2248, %v2247
  %2265 = vmatprep.subr.bf16.mxu0 0
  %2266 = vmatpush1.bf16.msra.mxu0 %v2249
  %2267 = vmatprep.subr.bf16.mxu0 0
  %2268 = vmatpush1.bf16.msra.mxu0 %v2250
  %2269 = vmatprep.subr.bf16.mxu0 0
  %2270 = vmatpush1.bf16.msra.mxu0 %v2251
  %2271 = vmatprep.subr.bf16.mxu0 0
  %2272 = vmatpush1.bf16.msra.mxu0 %v2252
  %2273 = vmatprep.subr.bf16.mxu0 0
  %2274 = vmatpush1.bf16.msra.mxu0 %v2253
  %2275 = vmatprep.subr.bf16.mxu0 0
  %2276 = vmatpush1.bf16.msra.mxu0 %v2254
  %2277 = vmatprep.subr.bf16.mxu0 0
  %2278 = vmatpush1.bf16.msra.mxu0 %v2255
  %2279 = vmatprep.subr.bf16.mxu0 0
  %2280 = vmatpush1.bf16.msra.mxu0 %v2256
  %2281 = vmatprep.subr.bf16.mxu0 0
  %2282 = vmatpush1.bf16.msra.mxu0 0
  %2283 = vmatprep.subr.bf16.mxu0 0
  %2284 = vmatpush1.bf16.msra.mxu0 0
  %2285 = vmatprep.subr.bf16.mxu0 0
  %2286 = vmatpush1.bf16.msra.mxu0 0
  %2287 = vmatprep.subr.bf16.mxu0 0
  %2288 = vmatpush1.bf16.msra.mxu0 0
  %2289 = vmatprep.subr.bf16.mxu0 0
  %2290 = vmatpush1.bf16.msra.mxu0 0
  %2291 = vmatprep.subr.bf16.mxu0 0
  %2292 = vmatpush1.bf16.msra.mxu0 0
  %2293 = vmatprep.subr.bf16.mxu0 0
  %2294 = vmatpush1.bf16.msra.mxu0 0
  %2295 = vmatprep.subr.bf16.mxu0 0
  %2296 = vmatpush1.bf16.msra.mxu0 0
  %2297 = vmatprep.mubr.bf16.mxu0 0
  %2298 = vmatmul.mubr.bf16.gmra.mrb[0].mxu0 %v2165
  %v2299 = vpop.f32.mrb[0].mxu0
  %v2300 = vadd.f32 %v2103, %v2299
  %v2301 = vpop.f32.mrb[0].mxu0
  %v2302 = vpop.f32.mrb[0].mxu0
  %v2303 = vadd.f32 %v2106, %v2302
  %v2304 = vpop.f32.mrb[0].mxu0
  %2305 = vmatprep.mubr.bf16.mxu0 0
  %2306 = vmatmul.mubr.bf16.gmra.mrb[0].mxu0 %v2174
  %v2307 = vpop.f32.mrb[0].mxu0
  %v2308 = vadd.f32 %v2111, %v2307
  %v2309 = vpop.f32.mrb[0].mxu0
  %v2310 = vpop.f32.mrb[0].mxu0
  %v2311 = vadd.f32 %v2114, %v2310
  %v2312 = vpop.f32.mrb[0].mxu0
  %2313 = vmatprep.mubr.bf16.mxu0 0
  %2314 = vmatmul.mubr.bf16.gmra.mrb[0].mxu0 %v2183
  %v2315 = vpop.f32.mrb[0].mxu0
  %v2316 = vadd.f32 %v2119, %v2315
  %v2317 = vpop.f32.mrb[0].mxu0
  %v2318 = vpop.f32.mrb[0].mxu0
  %v2319 = vadd.f32 %v2122, %v2318
  %v2320 = vpop.f32.mrb[0].mxu0
  %2321 = vmatprep.mubr.bf16.mxu0 0
  %2322 = vmatmul.mubr.bf16.gmra.mrb[0].mxu0 %v2192
  %v2323 = vpop.f32.mrb[0].mxu0
  %v2324 = vadd.f32 %v2127, %v2323
  %v2325 = vpop.f32.mrb[0].mxu0
  %v2326 = vpop.f32.mrb[0].mxu0
  %v2327 = vadd.f32 %v2130, %v2326
  %v2328 = vpop.f32.mrb[0].mxu0
  %2329 = vmatprep.mubr.bf16.mxu0 0
  %2330 = vmatmul.mubr.bf16.gmra.mrb[0].mxu0 %v2201
  %v2331 = vpop.f32.mrb[0].mxu0
  %v2332 = vadd.f32 %v2135, %v2331
  %v2333 = vpop.f32.mrb[0].mxu0
  %v2334 = vpop.f32.mrb[0].mxu0
  %v2335 = vadd.f32 %v2138, %v2334
  %v2336 = vpop.f32.mrb[0].mxu0
  %2337 = vmatprep.mubr.bf16.mxu0 0
  %2338 = vmatmul.mubr.bf16.gmra.mrb[0].mxu0 %v2210
  %v2339 = vpop.f32.mrb[0].mxu0
  %v2340 = vadd.f32 %v2143, %v2339
  %v2341 = vpop.f32.mrb[0].mxu0
  %v2342 = vpop.f32.mrb[0].mxu0
  %v2343 = vadd.f32 %v2146, %v2342
  %v2344 = vpop.f32.mrb[0].mxu0
  %2345 = vdwg.mxu0
  %v2346 = vld [vmem:[#allocation3 + $0x30] sm:$0x1f]
  %s2347 = scalar_lea.vmem %s5, 128
  %v2348 = vld [vmem:[%s2347] sm:$0xf]
  %v2349 = vld [vmem:[%s2347 + $0x4] sm:$0xf]
  %v2350 = vld [vmem:[%s2347 + $0x8] sm:$0xf]
  %v2351 = vld [vmem:[%s2347 + $0xc] sm:$0xf]
  %v2352 = vld [vmem:[%s2347 + $0x10] sm:$0xf]
  %v2353 = vld [vmem:[%s2347 + $0x14] sm:$0xf]
  %v2354 = vld [vmem:[%s2347 + $0x18] sm:$0xf]
  %v2355 = vld [vmem:[%s2347 + $0x1c] sm:$0xf]
  %v2356 = vld [vmem:[%s2347 + $0x20] sm:$0xf]
  %v2357 = vld [vmem:[%s2347 + $0x24] sm:$0xf]
  %v2358 = vld [vmem:[%s2347 + $0x28] sm:$0xf]
  %v2359 = vld [vmem:[%s2347 + $0x2c] sm:$0xf]
  %v2360 = vld [vmem:[%s2347 + $0x30] sm:$0xf]
  %v2361 = vld [vmem:[%s2347 + $0x34] sm:$0xf]
  %v2362 = vld [vmem:[%s2347 + $0x38] sm:$0xf]
  %v2363 = vld [vmem:[%s2347 + $0x3c] sm:$0xf]
  %v2365 = vshrl.u32 %v1976, 16
  %v2367 = vrot.slane %v2365, 4
  %v2368 = vshll.u32 %v1976, 16
  %v2370 = vrot.slane %v2368, 5
  %v2371 = vor.u32 %v2367, %v2370
  %v2372 = vrot.slane %v2158, 4
  %v2373 = vrot.slane %v2161, 5
  %v2374 = vor.u32 %v2372, %v2373
  %v2375 = vsel %vm679, %v2371, %v2374
  %v2376 = vrot.slane %v2167, 4
  %v2377 = vrot.slane %v2170, 5
  %v2378 = vor.u32 %v2376, %v2377
  %v2379 = vsel %vm679, %v2374, %v2378
  %v2380 = vrot.slane %v2176, 4
  %v2381 = vrot.slane %v2179, 5
  %v2382 = vor.u32 %v2380, %v2381
  %v2383 = vsel %vm679, %v2378, %v2382
  %v2384 = vrot.slane %v2185, 4
  %v2385 = vrot.slane %v2188, 5
  %v2386 = vor.u32 %v2384, %v2385
  %v2387 = vsel %vm679, %v2382, %v2386
  %v2388 = vrot.slane %v2194, 4
  %v2389 = vrot.slane %v2197, 5
  %v2390 = vor.u32 %v2388, %v2389
  %v2391 = vsel %vm679, %v2386, %v2390
  %v2393 = vshrl.u32 %v2346, 16
  %v2395 = vrot.slane %v2393, 4
  %v2396 = vshll.u32 %v2346, 16
  %v2398 = vrot.slane %v2396, 5
  %v2399 = vor.u32 %v2395, %v2398
  %v2400 = vsel %vm679, %v2390, %v2399
  %v2423 = vunpack.c.l.b16 %v2348
  %v2424 = vunpack.c.l.b16 %v2349
  %v2425 = vunpack.c.l.b16 %v2350
  %v2426 = vunpack.c.l.b16 %v2351
  %v2427 = vunpack.c.l.b16 %v2352
  %v2428 = vunpack.c.l.b16 %v2353
  %v2429 = vunpack.c.l.b16 %v2354
  %v2430 = vunpack.c.l.b16 %v2355
  %v2431 = vunpack.c.l.b16 %v2356
  %v2432 = vunpack.c.l.b16 %v2357
  %v2433 = vunpack.c.l.b16 %v2358
  %v2434 = vunpack.c.l.b16 %v2359
  %v2435 = vunpack.c.l.b16 %v2360
  %v2436 = vunpack.c.l.b16 %v2361
  %v2437 = vunpack.c.l.b16 %v2362
  %v2438 = vunpack.c.l.b16 %v2363
  %v2439 = vpack.c.b16 %v2424, %v2423
  %v2440 = vpack.c.b16 %v2426, %v2425
  %v2441 = vpack.c.b16 %v2428, %v2427
  %v2442 = vpack.c.b16 %v2430, %v2429
  %v2443 = vpack.c.b16 %v2432, %v2431
  %v2444 = vpack.c.b16 %v2434, %v2433
  %v2445 = vpack.c.b16 %v2436, %v2435
  %v2446 = vpack.c.b16 %v2438, %v2437
  %2455 = vmatprep.subr.bf16.mxu0 0
  %2456 = vmatpush1.bf16.msra.mxu0 %v2439
  %2457 = vmatprep.subr.bf16.mxu0 0
  %2458 = vmatpush1.bf16.msra.mxu0 %v2440
  %2459 = vmatprep.subr.bf16.mxu0 0
  %2460 = vmatpush1.bf16.msra.mxu0 %v2441
  %2461 = vmatprep.subr.bf16.mxu0 0
  %2462 = vmatpush1.bf16.msra.mxu0 %v2442
  %2463 = vmatprep.subr.bf16.mxu0 0
  %2464 = vmatpush1.bf16.msra.mxu0 %v2443
  %2465 = vmatprep.subr.bf16.mxu0 0
  %2466 = vmatpush1.bf16.msra.mxu0 %v2444
  %2467 = vmatprep.subr.bf16.mxu0 0
  %2468 = vmatpush1.bf16.msra.mxu0 %v2445
  %2469 = vmatprep.subr.bf16.mxu0 0
  %2470 = vmatpush1.bf16.msra.mxu0 %v2446
  %2471 = vmatprep.subr.bf16.mxu0 0
  %2472 = vmatpush1.bf16.msra.mxu0 0
  %2473 = vmatprep.subr.bf16.mxu0 0
  %2474 = vmatpush1.bf16.msra.mxu0 0
  %2475 = vmatprep.subr.bf16.mxu0 0
  %2476 = vmatpush1.bf16.msra.mxu0 0
  %2477 = vmatprep.subr.bf16.mxu0 0
  %2478 = vmatpush1.bf16.msra.mxu0 0
  %2479 = vmatprep.subr.bf16.mxu0 0
  %2480 = vmatpush1.bf16.msra.mxu0 0
  %2481 = vmatprep.subr.bf16.mxu0 0
  %2482 = vmatpush1.bf16.msra.mxu0 0
  %2483 = vmatprep.subr.bf16.mxu0 0
  %2484 = vmatpush1.bf16.msra.mxu0 0
  %2485 = vmatprep.subr.bf16.mxu0 0
  %2486 = vmatpush1.bf16.msra.mxu0 0
  %2487 = vmatprep.mubr.bf16.mxu0 0
  %2488 = vmatmul.mubr.bf16.gmra.mrb[0].mxu0 %v2375
  %v2489 = vpop.f32.mrb[0].mxu0
  %v2490 = vadd.f32 0.0, %v2489
  %v2491 = vpop.f32.mrb[0].mxu0
  %v2492 = vpop.f32.mrb[0].mxu0
  %v2493 = vadd.f32 0.0, %v2492
  %v2494 = vpop.f32.mrb[0].mxu0
  %2495 = vmatprep.mubr.bf16.mxu0 0
  %2496 = vmatmul.mubr.bf16.gmra.mrb[0].mxu0 %v2379
  %v2497 = vpop.f32.mrb[0].mxu0
  %v2498 = vadd.f32 0.0, %v2497
  %v2499 = vpop.f32.mrb[0].mxu0
  %v2500 = vpop.f32.mrb[0].mxu0
  %v2501 = vadd.f32 0.0, %v2500
  %v2502 = vpop.f32.mrb[0].mxu0
  %2503 = vmatprep.mubr.bf16.mxu0 0
  %2504 = vmatmul.mubr.bf16.gmra.mrb[0].mxu0 %v2383
  %v2505 = vpop.f32.mrb[0].mxu0
  %v2506 = vadd.f32 0.0, %v2505
  %v2507 = vpop.f32.mrb[0].mxu0
  %v2508 = vpop.f32.mrb[0].mxu0
  %v2509 = vadd.f32 0.0, %v2508
  %v2510 = vpop.f32.mrb[0].mxu0
  %2511 = vmatprep.mubr.bf16.mxu0 0
  %2512 = vmatmul.mubr.bf16.gmra.mrb[0].mxu0 %v2387
  %v2513 = vpop.f32.mrb[0].mxu0
  %v2514 = vadd.f32 0.0, %v2513
  %v2515 = vpop.f32.mrb[0].mxu0
  %v2516 = vpop.f32.mrb[0].mxu0
  %v2517 = vadd.f32 0.0, %v2516
  %v2518 = vpop.f32.mrb[0].mxu0
  %2519 = vmatprep.mubr.bf16.mxu0 0
  %2520 = vmatmul.mubr.bf16.gmra.mrb[0].mxu0 %v2391
  %v2521 = vpop.f32.mrb[0].mxu0
  %v2522 = vadd.f32 0.0, %v2521
  %v2523 = vpop.f32.mrb[0].mxu0
  %v2524 = vpop.f32.mrb[0].mxu0
  %v2525 = vadd.f32 0.0, %v2524
  %v2526 = vpop.f32.mrb[0].mxu0
  %2527 = vmatprep.mubr.bf16.mxu0 0
  %2528 = vmatmul.mubr.bf16.gmra.mrb[0].mxu0 %v2400
  %v2529 = vpop.f32.mrb[0].mxu0
  %v2530 = vadd.f32 0.0, %v2529
  %v2531 = vpop.f32.mrb[0].mxu0
  %v2532 = vpop.f32.mrb[0].mxu0
  %v2533 = vadd.f32 0.0, %v2532
  %v2534 = vpop.f32.mrb[0].mxu0
  %2535 = vdwg.mxu0
  %v2536 = vadd.f32 %v2300, %v2490
  %v2537 = vadd.f32 %v2303, %v2493
  %v2538 = vadd.f32 %v2308, %v2498
  %v2539 = vadd.f32 %v2311, %v2501
  %v2540 = vadd.f32 %v2316, %v2506
  %v2541 = vadd.f32 %v2319, %v2509
  %v2542 = vadd.f32 %v2324, %v2514
  %v2543 = vadd.f32 %v2327, %v2517
  %v2544 = vadd.f32 %v2332, %v2522
  %v2545 = vadd.f32 %v2335, %v2525
  %v2546 = vadd.f32 %v2340, %v2530
  %v2547 = vadd.f32 %v2343, %v2533
  %v2548 = vld [vmem:[#allocation3] sm:$0x80]
  %v2549 = vld [vmem:[#allocation3 + $0x30] sm:$0xff]
  %s2550 = scalar_lea.vmem %s5, 192
  %v2551 = vld [vmem:[%s2550] sm:$0xf]
  %v2552 = vld [vmem:[%s2550 + $0x4] sm:$0xf]
  %v2553 = vld [vmem:[%s2550 + $0x8] sm:$0xf]
  %v2554 = vld [vmem:[%s2550 + $0xc] sm:$0xf]
  %v2555 = vld [vmem:[%s2550 + $0x10] sm:$0xf]
  %v2556 = vld [vmem:[%s2550 + $0x14] sm:$0xf]
  %v2557 = vld [vmem:[%s2550 + $0x18] sm:$0xf]
  %v2558 = vld [vmem:[%s2550 + $0x1c] sm:$0xf]
  %v2559 = vld [vmem:[%s2550 + $0x20] sm:$0xf]
  %v2560 = vld [vmem:[%s2550 + $0x24] sm:$0xf]
  %v2561 = vld [vmem:[%s2550 + $0x28] sm:$0xf]
  %v2562 = vld [vmem:[%s2550 + $0x2c] sm:$0xf]
  %v2563 = vld [vmem:[%s2550 + $0x30] sm:$0xf]
  %v2564 = vld [vmem:[%s2550 + $0x34] sm:$0xf]
  %v2565 = vld [vmem:[%s2550 + $0x38] sm:$0xf]
  %v2566 = vld [vmem:[%s2550 + $0x3c] sm:$0xf]
  %v2568 = vshrl.u32 %v2548, 16
  %v2570 = vrot.slane %v2568, 7
  %v2571 = vrot.slane %v2158, 7
  %v2572 = vor.u32 %v2571, %v2161
  %v2573 = vsel %vm863, %v2570, %v2572
  %v2574 = vrot.slane %v2167, 7
  %v2575 = vor.u32 %v2574, %v2170
  %v2576 = vsel %vm863, %v2571, %v2575
  %v2577 = vrot.slane %v2176, 7
  %v2578 = vor.u32 %v2577, %v2179
  %v2579 = vsel %vm863, %v2574, %v2578
  %v2580 = vrot.slane %v2185, 7
  %v2581 = vor.u32 %v2580, %v2188
  %v2582 = vsel %vm863, %v2577, %v2581
  %v2583 = vrot.slane %v2194, 7
  %v2584 = vor.u32 %v2583, %v2197
  %v2585 = vsel %vm863, %v2580, %v2584
  %v2587 = vshrl.u32 %v2549, 16
  %v2589 = vrot.slane %v2587, 7
  %v2590 = vshll.u32 %v2549, 16
  %v2592 = vor.u32 %v2589, %v2590
  %v2593 = vsel %vm863, %v2583, %v2592
  %v2616 = vunpack.c.l.b16 %v2551
  %v2617 = vunpack.c.l.b16 %v2552
  %v2618 = vunpack.c.l.b16 %v2553
  %v2619 = vunpack.c.l.b16 %v2554
  %v2620 = vunpack.c.l.b16 %v2555
  %v2621 = vunpack.c.l.b16 %v2556
  %v2622 = vunpack.c.l.b16 %v2557
  %v2623 = vunpack.c.l.b16 %v2558
  %v2624 = vunpack.c.l.b16 %v2559
  %v2625 = vunpack.c.l.b16 %v2560
  %v2626 = vunpack.c.l.b16 %v2561
  %v2627 = vunpack.c.l.b16 %v2562
  %v2628 = vunpack.c.l.b16 %v2563
  %v2629 = vunpack.c.l.b16 %v2564
  %v2630 = vunpack.c.l.b16 %v2565
  %v2631 = vunpack.c.l.b16 %v2566
  %v2632 = vpack.c.b16 %v2617, %v2616
  %v2633 = vpack.c.b16 %v2619, %v2618
  %v2634 = vpack.c.b16 %v2621, %v2620
  %v2635 = vpack.c.b16 %v2623, %v2622
  %v2636 = vpack.c.b16 %v2625, %v2624
  %v2637 = vpack.c.b16 %v2627, %v2626
  %v2638 = vpack.c.b16 %v2629, %v2628
  %v2639 = vpack.c.b16 %v2631, %v2630
  %2648 = vmatprep.subr.bf16.mxu0 0
  %2649 = vmatpush1.bf16.msra.mxu0 %v2632
  %2650 = vmatprep.subr.bf16.mxu0 0
  %2651 = vmatpush1.bf16.msra.mxu0 %v2633
  %2652 = vmatprep.subr.bf16.mxu0 0
  %2653 = vmatpush1.bf16.msra.mxu0 %v2634
  %2654 = vmatprep.subr.bf16.mxu0 0
  %2655 = vmatpush1.bf16.msra.mxu0 %v2635
  %2656 = vmatprep.subr.bf16.mxu0 0
  %2657 = vmatpush1.bf16.msra.mxu0 %v2636
  %2658 = vmatprep.subr.bf16.mxu0 0
  %2659 = vmatpush1.bf16.msra.mxu0 %v2637
  %2660 = vmatprep.subr.bf16.mxu0 0
  %2661 = vmatpush1.bf16.msra.mxu0 %v2638
  %2662 = vmatprep.subr.bf16.mxu0 0
  %2663 = vmatpush1.bf16.msra.mxu0 %v2639
  %2664 = vmatprep.subr.bf16.mxu0 0
  %2665 = vmatpush1.bf16.msra.mxu0 0
  %2666 = vmatprep.subr.bf16.mxu0 0
  %2667 = vmatpush1.bf16.msra.mxu0 0
  %2668 = vmatprep.subr.bf16.mxu0 0
  %2669 = vmatpush1.bf16.msra.mxu0 0
  %2670 = vmatprep.subr.bf16.mxu0 0
  %2671 = vmatpush1.bf16.msra.mxu0 0
  %2672 = vmatprep.subr.bf16.mxu0 0
  %2673 = vmatpush1.bf16.msra.mxu0 0
  %2674 = vmatprep.subr.bf16.mxu0 0
  %2675 = vmatpush1.bf16.msra.mxu0 0
  %2676 = vmatprep.subr.bf16.mxu0 0
  %2677 = vmatpush1.bf16.msra.mxu0 0
  %2678 = vmatprep.subr.bf16.mxu0 0
  %2679 = vmatpush1.bf16.msra.mxu0 0
  %2680 = vmatprep.mubr.bf16.mxu0 0
  %2681 = vmatmul.mubr.bf16.gmra.mrb[0].mxu0 %v2573
  %v2682 = vpop.f32.mrb[0].mxu0
  %v2683 = vadd.f32 0.0, %v2682
  %v2684 = vpop.f32.mrb[0].mxu0
  %v2685 = vpop.f32.mrb[0].mxu0
  %v2686 = vadd.f32 0.0, %v2685
  %v2687 = vpop.f32.mrb[0].mxu0
  %2688 = vmatprep.mubr.bf16.mxu0 0
  %2689 = vmatmul.mubr.bf16.gmra.mrb[0].mxu0 %v2576
  %v2690 = vpop.f32.mrb[0].mxu0
  %v2691 = vadd.f32 0.0, %v2690
  %v2692 = vpop.f32.mrb[0].mxu0
  %v2693 = vpop.f32.mrb[0].mxu0
  %v2694 = vadd.f32 0.0, %v2693
  %v2695 = vpop.f32.mrb[0].mxu0
  %2696 = vmatprep.mubr.bf16.mxu0 0
  %2697 = vmatmul.mubr.bf16.gmra.mrb[0].mxu0 %v2579
  %v2698 = vpop.f32.mrb[0].mxu0
  %v2699 = vadd.f32 0.0, %v2698
  %v2700 = vpop.f32.mrb[0].mxu0
  %v2701 = vpop.f32.mrb[0].mxu0
  %v2702 = vadd.f32 0.0, %v2701
  %v2703 = vpop.f32.mrb[0].mxu0
  %2704 = vmatprep.mubr.bf16.mxu0 0
  %2705 = vmatmul.mubr.bf16.gmra.mrb[0].mxu0 %v2582
  %v2706 = vpop.f32.mrb[0].mxu0
  %v2707 = vadd.f32 0.0, %v2706
  %v2708 = vpop.f32.mrb[0].mxu0
  %v2709 = vpop.f32.mrb[0].mxu0
  %v2710 = vadd.f32 0.0, %v2709
  %v2711 = vpop.f32.mrb[0].mxu0
  %2712 = vmatprep.mubr.bf16.mxu0 0
  %2713 = vmatmul.mubr.bf16.gmra.mrb[0].mxu0 %v2585
  %v2714 = vpop.f32.mrb[0].mxu0
  %v2715 = vadd.f32 0.0, %v2714
  %v2716 = vpop.f32.mrb[0].mxu0
  %v2717 = vpop.f32.mrb[0].mxu0
  %v2718 = vadd.f32 0.0, %v2717
  %v2719 = vpop.f32.mrb[0].mxu0
  %2720 = vmatprep.mubr.bf16.mxu0 0
  %2721 = vmatmul.mubr.bf16.gmra.mrb[0].mxu0 %v2593
  %v2722 = vpop.f32.mrb[0].mxu0
  %v2723 = vadd.f32 0.0, %v2722
  %v2724 = vpop.f32.mrb[0].mxu0
  %v2725 = vpop.f32.mrb[0].mxu0
  %v2726 = vadd.f32 0.0, %v2725
  %v2727 = vpop.f32.mrb[0].mxu0
  %2728 = vdwg.mxu0
  %v2729 = vadd.f32 %v2536, %v2683
  %v2730 = vadd.f32 %v2537, %v2686
  %v2731 = vadd.f32 %v2538, %v2691
  %v2732 = vadd.f32 %v2539, %v2694
  %v2733 = vadd.f32 %v2540, %v2699
  %v2734 = vadd.f32 %v2541, %v2702
  %v2735 = vadd.f32 %v2542, %v2707
  %v2736 = vadd.f32 %v2543, %v2710
  %v2737 = vadd.f32 %v2544, %v2715
  %v2738 = vadd.f32 %v2545, %v2718
  %v2739 = vadd.f32 %v2546, %v2723
  %v2740 = vadd.f32 %v2547, %v2726
  %s2741 = scalar_lea.vmem %s5, 256
  %v2742 = vld [vmem:[%s2741] sm:$0xf]
  %v2743 = vld [vmem:[%s2741 + $0x4] sm:$0xf]
  %v2744 = vld [vmem:[%s2741 + $0x8] sm:$0xf]
  %v2745 = vld [vmem:[%s2741 + $0xc] sm:$0xf]
  %v2746 = vld [vmem:[%s2741 + $0x10] sm:$0xf]
  %v2747 = vld [vmem:[%s2741 + $0x14] sm:$0xf]
  %v2748 = vld [vmem:[%s2741 + $0x18] sm:$0xf]
  %v2749 = vld [vmem:[%s2741 + $0x1c] sm:$0xf]
  %v2750 = vld [vmem:[%s2741 + $0x20] sm:$0xf]
  %v2751 = vld [vmem:[%s2741 + $0x24] sm:$0xf]
  %v2752 = vld [vmem:[%s2741 + $0x28] sm:$0xf]
  %v2753 = vld [vmem:[%s2741 + $0x2c] sm:$0xf]
  %v2754 = vld [vmem:[%s2741 + $0x30] sm:$0xf]
  %v2755 = vld [vmem:[%s2741 + $0x34] sm:$0xf]
  %v2756 = vld [vmem:[%s2741 + $0x38] sm:$0xf]
  %v2757 = vld [vmem:[%s2741 + $0x3c] sm:$0xf]
  %v2774 = vunpack.c.l.b16 %v2742
  %v2775 = vunpack.c.l.b16 %v2743
  %v2776 = vunpack.c.l.b16 %v2744
  %v2777 = vunpack.c.l.b16 %v2745
  %v2778 = vunpack.c.l.b16 %v2746
  %v2779 = vunpack.c.l.b16 %v2747
  %v2780 = vunpack.c.l.b16 %v2748
  %v2781 = vunpack.c.l.b16 %v2749
  %v2782 = vunpack.c.l.b16 %v2750
  %v2783 = vunpack.c.l.b16 %v2751
  %v2784 = vunpack.c.l.b16 %v2752
  %v2785 = vunpack.c.l.b16 %v2753
  %v2786 = vunpack.c.l.b16 %v2754
  %v2787 = vunpack.c.l.b16 %v2755
  %v2788 = vunpack.c.l.b16 %v2756
  %v2789 = vunpack.c.l.b16 %v2757
  %v2790 = vpack.c.b16 %v2775, %v2774
  %v2791 = vpack.c.b16 %v2777, %v2776
  %v2792 = vpack.c.b16 %v2779, %v2778
  %v2793 = vpack.c.b16 %v2781, %v2780
  %v2794 = vpack.c.b16 %v2783, %v2782
  %v2795 = vpack.c.b16 %v2785, %v2784
  %v2796 = vpack.c.b16 %v2787, %v2786
  %v2797 = vpack.c.b16 %v2789, %v2788
  %2806 = vmatprep.subr.bf16.mxu0 0
  %2807 = vmatpush1.bf16.msra.mxu0 %v2790
  %2808 = vmatprep.subr.bf16.mxu0 0
  %2809 = vmatpush1.bf16.msra.mxu0 %v2791
  %2810 = vmatprep.subr.bf16.mxu0 0
  %2811 = vmatpush1.bf16.msra.mxu0 %v2792
  %2812 = vmatprep.subr.bf16.mxu0 0
  %2813 = vmatpush1.bf16.msra.mxu0 %v2793
  %2814 = vmatprep.subr.bf16.mxu0 0
  %2815 = vmatpush1.bf16.msra.mxu0 %v2794
  %2816 = vmatprep.subr.bf16.mxu0 0
  %2817 = vmatpush1.bf16.msra.mxu0 %v2795
  %2818 = vmatprep.subr.bf16.mxu0 0
  %2819 = vmatpush1.bf16.msra.mxu0 %v2796
  %2820 = vmatprep.subr.bf16.mxu0 0
  %2821 = vmatpush1.bf16.msra.mxu0 %v2797
  %2822 = vmatprep.subr.bf16.mxu0 0
  %2823 = vmatpush1.bf16.msra.mxu0 0
  %2824 = vmatprep.subr.bf16.mxu0 0
  %2825 = vmatpush1.bf16.msra.mxu0 0
  %2826 = vmatprep.subr.bf16.mxu0 0
  %2827 = vmatpush1.bf16.msra.mxu0 0
  %2828 = vmatprep.subr.bf16.mxu0 0
  %2829 = vmatpush1.bf16.msra.mxu0 0
  %2830 = vmatprep.subr.bf16.mxu0 0
  %2831 = vmatpush1.bf16.msra.mxu0 0
  %2832 = vmatprep.subr.bf16.mxu0 0
  %2833 = vmatpush1.bf16.msra.mxu0 0
  %2834 = vmatprep.subr.bf16.mxu0 0
  %2835 = vmatpush1.bf16.msra.mxu0 0
  %2836 = vmatprep.subr.bf16.mxu0 0
  %2837 = vmatpush1.bf16.msra.mxu0 0
  %2838 = vmatprep.mubr.bf16.mxu0 0
  %2839 = vmatmul.mubr.bf16.gmra.mrb[0].mxu0 %v1954
  %v2840 = vpop.f32.mrb[0].mxu0
  %v2841 = vadd.f32 0.0, %v2840
  %v2842 = vpop.f32.mrb[0].mxu0
  %v2843 = vpop.f32.mrb[0].mxu0
  %v2844 = vadd.f32 0.0, %v2843
  %v2845 = vpop.f32.mrb[0].mxu0
  %2846 = vmatprep.mubr.bf16.mxu0 0
  %2847 = vmatmul.mubr.bf16.gmra.mrb[0].mxu0 %v1955
  %v2848 = vpop.f32.mrb[0].mxu0
  %v2849 = vadd.f32 0.0, %v2848
  %v2850 = vpop.f32.mrb[0].mxu0
  %v2851 = vpop.f32.mrb[0].mxu0
  %v2852 = vadd.f32 0.0, %v2851
  %v2853 = vpop.f32.mrb[0].mxu0
  %2854 = vmatprep.mubr.bf16.mxu0 0
  %2855 = vmatmul.mubr.bf16.gmra.mrb[0].mxu0 %v1956
  %v2856 = vpop.f32.mrb[0].mxu0
  %v2857 = vadd.f32 0.0, %v2856
  %v2858 = vpop.f32.mrb[0].mxu0
  %v2859 = vpop.f32.mrb[0].mxu0
  %v2860 = vadd.f32 0.0, %v2859
  %v2861 = vpop.f32.mrb[0].mxu0
  %2862 = vmatprep.mubr.bf16.mxu0 0
  %2863 = vmatmul.mubr.bf16.gmra.mrb[0].mxu0 %v1957
  %v2864 = vpop.f32.mrb[0].mxu0
  %v2865 = vadd.f32 0.0, %v2864
  %v2866 = vpop.f32.mrb[0].mxu0
  %v2867 = vpop.f32.mrb[0].mxu0
  %v2868 = vadd.f32 0.0, %v2867
  %v2869 = vpop.f32.mrb[0].mxu0
  %2870 = vmatprep.mubr.bf16.mxu0 0
  %2871 = vmatmul.mubr.bf16.gmra.mrb[0].mxu0 %v1958
  %v2872 = vpop.f32.mrb[0].mxu0
  %v2873 = vadd.f32 0.0, %v2872
  %v2874 = vpop.f32.mrb[0].mxu0
  %v2875 = vpop.f32.mrb[0].mxu0
  %v2876 = vadd.f32 0.0, %v2875
  %v2877 = vpop.f32.mrb[0].mxu0
  %2878 = vmatprep.mubr.bf16.mxu0 0
  %2879 = vmatmul.mubr.bf16.gmra.mrb[0].mxu0 %v2549
  %v2880 = vpop.f32.mrb[0].mxu0
  %v2881 = vadd.f32 0.0, %v2880
  %v2882 = vpop.f32.mrb[0].mxu0
  %v2883 = vpop.f32.mrb[0].mxu0
  %v2884 = vadd.f32 0.0, %v2883
  %v2885 = vpop.f32.mrb[0].mxu0
  %2886 = vdwg.mxu0
  %v2887 = vadd.f32 %v2729, %v2841
  %v2888 = vadd.f32 %v2730, %v2844
  %v2889 = vadd.f32 %v2731, %v2849
  %v2890 = vadd.f32 %v2732, %v2852
  %v2891 = vadd.f32 %v2733, %v2857
  %v2892 = vadd.f32 %v2734, %v2860
  %v2893 = vadd.f32 %v2735, %v2865
  %v2894 = vadd.f32 %v2736, %v2868
  %v2895 = vadd.f32 %v2737, %v2873
  %v2896 = vadd.f32 %v2738, %v2876
  %v2897 = vadd.f32 %v2739, %v2881
  %v2898 = vadd.f32 %v2740, %v2884
  %v2899 = vld [vmem:[#allocation3 + $0x8] sm:$0xff]
  %v2900 = vld [vmem:[#allocation3 + $0x10] sm:$0xff]
  %v2901 = vld [vmem:[#allocation3 + $0x18] sm:$0xff]
  %v2902 = vld [vmem:[#allocation3 + $0x20] sm:$0xff]
  %v2903 = vld [vmem:[#allocation3 + $0x28] sm:$0xff]
  %v2904 = vld [vmem:[#allocation3 + $0x30] sm:$0xff]
  %v2905 = vld [vmem:[#allocation3 + $0x38] sm:$0x1]
  %s2906 = scalar_lea.vmem %s5, 320
  %v2907 = vld [vmem:[%s2906] sm:$0xf]
  %v2908 = vld [vmem:[%s2906 + $0x4] sm:$0xf]
  %v2909 = vld [vmem:[%s2906 + $0x8] sm:$0xf]
  %v2910 = vld [vmem:[%s2906 + $0xc] sm:$0xf]
  %v2911 = vld [vmem:[%s2906 + $0x10] sm:$0xf]
  %v2912 = vld [vmem:[%s2906 + $0x14] sm:$0xf]
  %v2913 = vld [vmem:[%s2906 + $0x18] sm:$0xf]
  %v2914 = vld [vmem:[%s2906 + $0x1c] sm:$0xf]
  %v2915 = vld [vmem:[%s2906 + $0x20] sm:$0xf]
  %v2916 = vld [vmem:[%s2906 + $0x24] sm:$0xf]
  %v2917 = vld [vmem:[%s2906 + $0x28] sm:$0xf]
  %v2918 = vld [vmem:[%s2906 + $0x2c] sm:$0xf]
  %v2919 = vld [vmem:[%s2906 + $0x30] sm:$0xf]
  %v2920 = vld [vmem:[%s2906 + $0x34] sm:$0xf]
  %v2921 = vld [vmem:[%s2906 + $0x38] sm:$0xf]
  %v2922 = vld [vmem:[%s2906 + $0x3c] sm:$0xf]
  %v2924 = vshrl.u32 %v2899, 16
  %v2926 = vshll.u32 %v2899, 16
  %v2928 = vrot.slane %v2926, 1
  %v2929 = vor.u32 %v2924, %v2928
  %v2931 = vshll.u32 %v2900, 16
  %v2933 = vrot.slane %v2931, 1
  %v2934 = vsel %vm1180, %v2929, %v2933
  %v2935 = vshrl.u32 %v2900, 16
  %v2937 = vor.u32 %v2935, %v2933
  %v2939 = vshll.u32 %v2901, 16
  %v2941 = vrot.slane %v2939, 1
  %v2942 = vsel %vm1180, %v2937, %v2941
  %v2943 = vshrl.u32 %v2901, 16
  %v2945 = vor.u32 %v2943, %v2941
  %v2947 = vshll.u32 %v2902, 16
  %v2949 = vrot.slane %v2947, 1
  %v2950 = vsel %vm1180, %v2945, %v2949
  %v2951 = vshrl.u32 %v2902, 16
  %v2953 = vor.u32 %v2951, %v2949
  %v2955 = vshll.u32 %v2903, 16
  %v2957 = vrot.slane %v2955, 1
  %v2958 = vsel %vm1180, %v2953, %v2957
  %v2959 = vshrl.u32 %v2903, 16
  %v2961 = vor.u32 %v2959, %v2957
  %v2963 = vshll.u32 %v2904, 16
  %v2965 = vrot.slane %v2963, 1
  %v2966 = vsel %vm1180, %v2961, %v2965
  %v2967 = vshrl.u32 %v2904, 16
  %v2969 = vor.u32 %v2967, %v2965
  %v2971 = vshll.u32 %v2905, 16
  %v2973 = vrot.slane %v2971, 1
  %v2974 = vsel %vm1180, %v2969, %v2973
  %v2997 = vunpack.c.l.b16 %v2907
  %v2998 = vunpack.c.l.b16 %v2908
  %v2999 = vunpack.c.l.b16 %v2909
  %v3000 = vunpack.c.l.b16 %v2910
  %v3001 = vunpack.c.l.b16 %v2911
  %v3002 = vunpack.c.l.b16 %v2912
  %v3003 = vunpack.c.l.b16 %v2913
  %v3004 = vunpack.c.l.b16 %v2914
  %v3005 = vunpack.c.l.b16 %v2915
  %v3006 = vunpack.c.l.b16 %v2916
  %v3007 = vunpack.c.l.b16 %v2917
  %v3008 = vunpack.c.l.b16 %v2918
  %v3009 = vunpack.c.l.b16 %v2919
  %v3010 = vunpack.c.l.b16 %v2920
  %v3011 = vunpack.c.l.b16 %v2921
  %v3012 = vunpack.c.l.b16 %v2922
  %v3013 = vpack.c.b16 %v2998, %v2997
  %v3014 = vpack.c.b16 %v3000, %v2999
  %v3015 = vpack.c.b16 %v3002, %v3001
  %v3016 = vpack.c.b16 %v3004, %v3003
  %v3017 = vpack.c.b16 %v3006, %v3005
  %v3018 = vpack.c.b16 %v3008, %v3007
  %v3019 = vpack.c.b16 %v3010, %v3009
  %v3020 = vpack.c.b16 %v3012, %v3011
  %3029 = vmatprep.subr.bf16.mxu0 0
  %3030 = vmatpush1.bf16.msra.mxu0 %v3013
  %3031 = vmatprep.subr.bf16.mxu0 0
  %3032 = vmatpush1.bf16.msra.mxu0 %v3014
  %3033 = vmatprep.subr.bf16.mxu0 0
  %3034 = vmatpush1.bf16.msra.mxu0 %v3015
  %3035 = vmatprep.subr.bf16.mxu0 0
  %3036 = vmatpush1.bf16.msra.mxu0 %v3016
  %3037 = vmatprep.subr.bf16.mxu0 0
  %3038 = vmatpush1.bf16.msra.mxu0 %v3017
  %3039 = vmatprep.subr.bf16.mxu0 0
  %3040 = vmatpush1.bf16.msra.mxu0 %v3018
  %3041 = vmatprep.subr.bf16.mxu0 0
  %3042 = vmatpush1.bf16.msra.mxu0 %v3019
  %3043 = vmatprep.subr.bf16.mxu0 0
  %3044 = vmatpush1.bf16.msra.mxu0 %v3020
  %3045 = vmatprep.subr.bf16.mxu0 0
  %3046 = vmatpush1.bf16.msra.mxu0 0
  %3047 = vmatprep.subr.bf16.mxu0 0
  %3048 = vmatpush1.bf16.msra.mxu0 0
  %3049 = vmatprep.subr.bf16.mxu0 0
  %3050 = vmatpush1.bf16.msra.mxu0 0
  %3051 = vmatprep.subr.bf16.mxu0 0
  %3052 = vmatpush1.bf16.msra.mxu0 0
  %3053 = vmatprep.subr.bf16.mxu0 0
  %3054 = vmatpush1.bf16.msra.mxu0 0
  %3055 = vmatprep.subr.bf16.mxu0 0
  %3056 = vmatpush1.bf16.msra.mxu0 0
  %3057 = vmatprep.subr.bf16.mxu0 0
  %3058 = vmatpush1.bf16.msra.mxu0 0
  %3059 = vmatprep.subr.bf16.mxu0 0
  %3060 = vmatpush1.bf16.msra.mxu0 0
  %3061 = vmatprep.mubr.bf16.mxu0 0
  %3062 = vmatmul.mubr.bf16.gmra.mrb[0].mxu0 %v2934
  %v3063 = vpop.f32.mrb[0].mxu0
  %v3064 = vadd.f32 0.0, %v3063
  %v3065 = vpop.f32.mrb[0].mxu0
  %v3066 = vpop.f32.mrb[0].mxu0
  %v3067 = vadd.f32 0.0, %v3066
  %v3068 = vpop.f32.mrb[0].mxu0
  %3069 = vmatprep.mubr.bf16.mxu0 0
  %3070 = vmatmul.mubr.bf16.gmra.mrb[0].mxu0 %v2942
  %v3071 = vpop.f32.mrb[0].mxu0
  %v3072 = vadd.f32 0.0, %v3071
  %v3073 = vpop.f32.mrb[0].mxu0
  %v3074 = vpop.f32.mrb[0].mxu0
  %v3075 = vadd.f32 0.0, %v3074
  %v3076 = vpop.f32.mrb[0].mxu0
  %3077 = vmatprep.mubr.bf16.mxu0 0
  %3078 = vmatmul.mubr.bf16.gmra.mrb[0].mxu0 %v2950
  %v3079 = vpop.f32.mrb[0].mxu0
  %v3080 = vadd.f32 0.0, %v3079
  %v3081 = vpop.f32.mrb[0].mxu0
  %v3082 = vpop.f32.mrb[0].mxu0
  %v3083 = vadd.f32 0.0, %v3082
  %v3084 = vpop.f32.mrb[0].mxu0
  %3085 = vmatprep.mubr.bf16.mxu0 0
  %3086 = vmatmul.mubr.bf16.gmra.mrb[0].mxu0 %v2958
  %v3087 = vpop.f32.mrb[0].mxu0
  %v3088 = vadd.f32 0.0, %v3087
  %v3089 = vpop.f32.mrb[0].mxu0
  %v3090 = vpop.f32.mrb[0].mxu0
  %v3091 = vadd.f32 0.0, %v3090
  %v3092 = vpop.f32.mrb[0].mxu0
  %3093 = vmatprep.mubr.bf16.mxu0 0
  %3094 = vmatmul.mubr.bf16.gmra.mrb[0].mxu0 %v2966
  %v3095 = vpop.f32.mrb[0].mxu0
  %v3096 = vadd.f32 0.0, %v3095
  %v3097 = vpop.f32.mrb[0].mxu0
  %v3098 = vpop.f32.mrb[0].mxu0
  %v3099 = vadd.f32 0.0, %v3098
  %v3100 = vpop.f32.mrb[0].mxu0
  %3101 = vmatprep.mubr.bf16.mxu0 0
  %3102 = vmatmul.mubr.bf16.gmra.mrb[0].mxu0 %v2974
  %v3103 = vpop.f32.mrb[0].mxu0
  %v3104 = vadd.f32 0.0, %v3103
  %v3105 = vpop.f32.mrb[0].mxu0
  %v3106 = vpop.f32.mrb[0].mxu0
  %v3107 = vadd.f32 0.0, %v3106
  %v3108 = vpop.f32.mrb[0].mxu0
  %3109 = vdwg.mxu0
  %v3110 = vadd.f32 %v2887, %v3064
  %v3111 = vadd.f32 %v2888, %v3067
  %v3112 = vadd.f32 %v2889, %v3072
  %v3113 = vadd.f32 %v2890, %v3075
  %v3114 = vadd.f32 %v2891, %v3080
  %v3115 = vadd.f32 %v2892, %v3083
  %v3116 = vadd.f32 %v2893, %v3088
  %v3117 = vadd.f32 %v2894, %v3091
  %v3118 = vadd.f32 %v2895, %v3096
  %v3119 = vadd.f32 %v2896, %v3099
  %v3120 = vadd.f32 %v2897, %v3104
  %v3121 = vadd.f32 %v2898, %v3107
  %v3122 = vld [vmem:[#allocation3 + $0x8] sm:$0xf8]
  %v3123 = vld [vmem:[#allocation3 + $0x38] sm:$0xf]
  %s3124 = scalar_lea.vmem %s5, 384
  %v3125 = vld [vmem:[%s3124] sm:$0xf]
  %v3126 = vld [vmem:[%s3124 + $0x4] sm:$0xf]
  %v3127 = vld [vmem:[%s3124 + $0x8] sm:$0xf]
  %v3128 = vld [vmem:[%s3124 + $0xc] sm:$0xf]
  %v3129 = vld [vmem:[%s3124 + $0x10] sm:$0xf]
  %v3130 = vld [vmem:[%s3124 + $0x14] sm:$0xf]
  %v3131 = vld [vmem:[%s3124 + $0x18] sm:$0xf]
  %v3132 = vld [vmem:[%s3124 + $0x1c] sm:$0xf]
  %v3133 = vld [vmem:[%s3124 + $0x20] sm:$0xf]
  %v3134 = vld [vmem:[%s3124 + $0x24] sm:$0xf]
  %v3135 = vld [vmem:[%s3124 + $0x28] sm:$0xf]
  %v3136 = vld [vmem:[%s3124 + $0x2c] sm:$0xf]
  %v3137 = vld [vmem:[%s3124 + $0x30] sm:$0xf]
  %v3138 = vld [vmem:[%s3124 + $0x34] sm:$0xf]
  %v3139 = vld [vmem:[%s3124 + $0x38] sm:$0xf]
  %v3140 = vld [vmem:[%s3124 + $0x3c] sm:$0xf]
  %v3142 = vshrl.u32 %v3122, 16
  %v3144 = vrot.slane %v3142, 3
  %v3145 = vshll.u32 %v3122, 16
  %v3147 = vrot.slane %v3145, 4
  %v3148 = vor.u32 %v3144, %v3147
  %v3149 = vrot.slane %v2935, 3
  %v3150 = vrot.slane %v2931, 4
  %v3151 = vor.u32 %v3149, %v3150
  %v3152 = vsel %vm483, %v3148, %v3151
  %v3153 = vrot.slane %v2943, 3
  %v3154 = vrot.slane %v2939, 4
  %v3155 = vor.u32 %v3153, %v3154
  %v3156 = vsel %vm483, %v3151, %v3155
  %v3157 = vrot.slane %v2951, 3
  %v3158 = vrot.slane %v2947, 4
  %v3159 = vor.u32 %v3157, %v3158
  %v3160 = vsel %vm483, %v3155, %v3159
  %v3161 = vrot.slane %v2959, 3
  %v3162 = vrot.slane %v2955, 4
  %v3163 = vor.u32 %v3161, %v3162
  %v3164 = vsel %vm483, %v3159, %v3163
  %v3165 = vrot.slane %v2967, 3
  %v3166 = vrot.slane %v2963, 4
  %v3167 = vor.u32 %v3165, %v3166
  %v3168 = vsel %vm483, %v3163, %v3167
  %v3170 = vshrl.u32 %v3123, 16
  %v3172 = vrot.slane %v3170, 3
  %v3173 = vshll.u32 %v3123, 16
  %v3175 = vrot.slane %v3173, 4
  %v3176 = vor.u32 %v3172, %v3175
  %v3177 = vsel %vm483, %v3167, %v3176
  %v3200 = vunpack.c.l.b16 %v3125
  %v3201 = vunpack.c.l.b16 %v3126
  %v3202 = vunpack.c.l.b16 %v3127
  %v3203 = vunpack.c.l.b16 %v3128
  %v3204 = vunpack.c.l.b16 %v3129
  %v3205 = vunpack.c.l.b16 %v3130
  %v3206 = vunpack.c.l.b16 %v3131
  %v3207 = vunpack.c.l.b16 %v3132
  %v3208 = vunpack.c.l.b16 %v3133
  %v3209 = vunpack.c.l.b16 %v3134
  %v3210 = vunpack.c.l.b16 %v3135
  %v3211 = vunpack.c.l.b16 %v3136
  %v3212 = vunpack.c.l.b16 %v3137
  %v3213 = vunpack.c.l.b16 %v3138
  %v3214 = vunpack.c.l.b16 %v3139
  %v3215 = vunpack.c.l.b16 %v3140
  %v3216 = vpack.c.b16 %v3201, %v3200
  %v3217 = vpack.c.b16 %v3203, %v3202
  %v3218 = vpack.c.b16 %v3205, %v3204
  %v3219 = vpack.c.b16 %v3207, %v3206
  %v3220 = vpack.c.b16 %v3209, %v3208
  %v3221 = vpack.c.b16 %v3211, %v3210
  %v3222 = vpack.c.b16 %v3213, %v3212
  %v3223 = vpack.c.b16 %v3215, %v3214
  %3232 = vmatprep.subr.bf16.mxu0 0
  %3233 = vmatpush1.bf16.msra.mxu0 %v3216
  %3234 = vmatprep.subr.bf16.mxu0 0
  %3235 = vmatpush1.bf16.msra.mxu0 %v3217
  %3236 = vmatprep.subr.bf16.mxu0 0
  %3237 = vmatpush1.bf16.msra.mxu0 %v3218
  %3238 = vmatprep.subr.bf16.mxu0 0
  %3239 = vmatpush1.bf16.msra.mxu0 %v3219
  %3240 = vmatprep.subr.bf16.mxu0 0
  %3241 = vmatpush1.bf16.msra.mxu0 %v3220
  %3242 = vmatprep.subr.bf16.mxu0 0
  %3243 = vmatpush1.bf16.msra.mxu0 %v3221
  %3244 = vmatprep.subr.bf16.mxu0 0
  %3245 = vmatpush1.bf16.msra.mxu0 %v3222
  %3246 = vmatprep.subr.bf16.mxu0 0
  %3247 = vmatpush1.bf16.msra.mxu0 %v3223
  %3248 = vmatprep.subr.bf16.mxu0 0
  %3249 = vmatpush1.bf16.msra.mxu0 0
  %3250 = vmatprep.subr.bf16.mxu0 0
  %3251 = vmatpush1.bf16.msra.mxu0 0
  %3252 = vmatprep.subr.bf16.mxu0 0
  %3253 = vmatpush1.bf16.msra.mxu0 0
  %3254 = vmatprep.subr.bf16.mxu0 0
  %3255 = vmatpush1.bf16.msra.mxu0 0
  %3256 = vmatprep.subr.bf16.mxu0 0
  %3257 = vmatpush1.bf16.msra.mxu0 0
  %3258 = vmatprep.subr.bf16.mxu0 0
  %3259 = vmatpush1.bf16.msra.mxu0 0
  %3260 = vmatprep.subr.bf16.mxu0 0
  %3261 = vmatpush1.bf16.msra.mxu0 0
  %3262 = vmatprep.subr.bf16.mxu0 0
  %3263 = vmatpush1.bf16.msra.mxu0 0
  %3264 = vmatprep.mubr.bf16.mxu0 0
  %3265 = vmatmul.mubr.bf16.gmra.mrb[0].mxu0 %v3152
  %v3266 = vpop.f32.mrb[0].mxu0
  %v3267 = vadd.f32 0.0, %v3266
  %v3268 = vpop.f32.mrb[0].mxu0
  %v3269 = vpop.f32.mrb[0].mxu0
  %v3270 = vadd.f32 0.0, %v3269
  %v3271 = vpop.f32.mrb[0].mxu0
  %3272 = vmatprep.mubr.bf16.mxu0 0
  %3273 = vmatmul.mubr.bf16.gmra.mrb[0].mxu0 %v3156
  %v3274 = vpop.f32.mrb[0].mxu0
  %v3275 = vadd.f32 0.0, %v3274
  %v3276 = vpop.f32.mrb[0].mxu0
  %v3277 = vpop.f32.mrb[0].mxu0
  %v3278 = vadd.f32 0.0, %v3277
  %v3279 = vpop.f32.mrb[0].mxu0
  %3280 = vmatprep.mubr.bf16.mxu0 0
  %3281 = vmatmul.mubr.bf16.gmra.mrb[0].mxu0 %v3160
  %v3282 = vpop.f32.mrb[0].mxu0
  %v3283 = vadd.f32 0.0, %v3282
  %v3284 = vpop.f32.mrb[0].mxu0
  %v3285 = vpop.f32.mrb[0].mxu0
  %v3286 = vadd.f32 0.0, %v3285
  %v3287 = vpop.f32.mrb[0].mxu0
  %3288 = vmatprep.mubr.bf16.mxu0 0
  %3289 = vmatmul.mubr.bf16.gmra.mrb[0].mxu0 %v3164
  %v3290 = vpop.f32.mrb[0].mxu0
  %v3291 = vadd.f32 0.0, %v3290
  %v3292 = vpop.f32.mrb[0].mxu0
  %v3293 = vpop.f32.mrb[0].mxu0
  %v3294 = vadd.f32 0.0, %v3293
  %v3295 = vpop.f32.mrb[0].mxu0
  %3296 = vmatprep.mubr.bf16.mxu0 0
  %3297 = vmatmul.mubr.bf16.gmra.mrb[0].mxu0 %v3168
  %v3298 = vpop.f32.mrb[0].mxu0
  %v3299 = vadd.f32 0.0, %v3298
  %v3300 = vpop.f32.mrb[0].mxu0
  %v3301 = vpop.f32.mrb[0].mxu0
  %v3302 = vadd.f32 0.0, %v3301
  %v3303 = vpop.f32.mrb[0].mxu0
  %3304 = vmatprep.mubr.bf16.mxu0 0
  %3305 = vmatmul.mubr.bf16.gmra.mrb[0].mxu0 %v3177
  %v3306 = vpop.f32.mrb[0].mxu0
  %v3307 = vadd.f32 0.0, %v3306
  %v3308 = vpop.f32.mrb[0].mxu0
  %v3309 = vpop.f32.mrb[0].mxu0
  %v3310 = vadd.f32 0.0, %v3309
  %v3311 = vpop.f32.mrb[0].mxu0
  %3312 = vdwg.mxu0
  %v3313 = vadd.f32 %v3110, %v3267
  %v3314 = vadd.f32 %v3111, %v3270
  %v3315 = vadd.f32 %v3112, %v3275
  %v3316 = vadd.f32 %v3113, %v3278
  %v3317 = vadd.f32 %v3114, %v3283
  %v3318 = vadd.f32 %v3115, %v3286
  %v3319 = vadd.f32 %v3116, %v3291
  %v3320 = vadd.f32 %v3117, %v3294
  %v3321 = vadd.f32 %v3118, %v3299
  %v3322 = vadd.f32 %v3119, %v3302
  %v3323 = vadd.f32 %v3120, %v3307
  %v3324 = vadd.f32 %v3121, %v3310
  %v3325 = vld [vmem:[#allocation3 + $0x8] sm:$0xf0]
  %s3326 = scalar_lea.vmem %s5, 448
  %v3327 = vld [vmem:[%s3326] sm:$0xf]
  %v3328 = vld [vmem:[%s3326 + $0x4] sm:$0xf]
  %v3329 = vld [vmem:[%s3326 + $0x8] sm:$0xf]
  %v3330 = vld [vmem:[%s3326 + $0xc] sm:$0xf]
  %v3331 = vld [vmem:[%s3326 + $0x10] sm:$0xf]
  %v3332 = vld [vmem:[%s3326 + $0x14] sm:$0xf]
  %v3333 = vld [vmem:[%s3326 + $0x18] sm:$0xf]
  %v3334 = vld [vmem:[%s3326 + $0x1c] sm:$0xf]
  %v3335 = vld [vmem:[%s3326 + $0x20] sm:$0xf]
  %v3336 = vld [vmem:[%s3326 + $0x24] sm:$0xf]
  %v3337 = vld [vmem:[%s3326 + $0x28] sm:$0xf]
  %v3338 = vld [vmem:[%s3326 + $0x2c] sm:$0xf]
  %v3339 = vld [vmem:[%s3326 + $0x30] sm:$0xf]
  %v3340 = vld [vmem:[%s3326 + $0x34] sm:$0xf]
  %v3341 = vld [vmem:[%s3326 + $0x38] sm:$0xf]
  %v3342 = vld [vmem:[%s3326 + $0x3c] sm:$0xf]
  %v3350 = vrot.slane %v3325, 4
  %v3351 = vrot.slane %v2900, 4
  %v3352 = vsel %vm346, %v3350, %v3351
  %v3353 = vrot.slane %v2901, 4
  %v3354 = vsel %vm346, %v3351, %v3353
  %v3355 = vrot.slane %v2902, 4
  %v3356 = vsel %vm346, %v3353, %v3355
  %v3357 = vrot.slane %v2903, 4
  %v3358 = vsel %vm346, %v3355, %v3357
  %v3359 = vrot.slane %v2904, 4
  %v3360 = vsel %vm346, %v3357, %v3359
  %v3361 = vrot.slane %v3123, 4
  %v3362 = vsel %vm346, %v3359, %v3361
  %v3385 = vunpack.c.l.b16 %v3327
  %v3386 = vunpack.c.l.b16 %v3328
  %v3387 = vunpack.c.l.b16 %v3329
  %v3388 = vunpack.c.l.b16 %v3330
  %v3389 = vunpack.c.l.b16 %v3331
  %v3390 = vunpack.c.l.b16 %v3332
  %v3391 = vunpack.c.l.b16 %v3333
  %v3392 = vunpack.c.l.b16 %v3334
  %v3393 = vunpack.c.l.b16 %v3335
  %v3394 = vunpack.c.l.b16 %v3336
  %v3395 = vunpack.c.l.b16 %v3337
  %v3396 = vunpack.c.l.b16 %v3338
  %v3397 = vunpack.c.l.b16 %v3339
  %v3398 = vunpack.c.l.b16 %v3340
  %v3399 = vunpack.c.l.b16 %v3341
  %v3400 = vunpack.c.l.b16 %v3342
  %v3401 = vpack.c.b16 %v3386, %v3385
  %v3402 = vpack.c.b16 %v3388, %v3387
  %v3403 = vpack.c.b16 %v3390, %v3389
  %v3404 = vpack.c.b16 %v3392, %v3391
  %v3405 = vpack.c.b16 %v3394, %v3393
  %v3406 = vpack.c.b16 %v3396, %v3395
  %v3407 = vpack.c.b16 %v3398, %v3397
  %v3408 = vpack.c.b16 %v3400, %v3399
  %3417 = vmatprep.subr.bf16.mxu0 0
  %3418 = vmatpush1.bf16.msra.mxu0 %v3401
  %3419 = vmatprep.subr.bf16.mxu0 0
  %3420 = vmatpush1.bf16.msra.mxu0 %v3402
  %3421 = vmatprep.subr.bf16.mxu0 0
  %3422 = vmatpush1.bf16.msra.mxu0 %v3403
  %3423 = vmatprep.subr.bf16.mxu0 0
  %3424 = vmatpush1.bf16.msra.mxu0 %v3404
  %3425 = vmatprep.subr.bf16.mxu0 0
  %3426 = vmatpush1.bf16.msra.mxu0 %v3405
  %3427 = vmatprep.subr.bf16.mxu0 0
  %3428 = vmatpush1.bf16.msra.mxu0 %v3406
  %3429 = vmatprep.subr.bf16.mxu0 0
  %3430 = vmatpush1.bf16.msra.mxu0 %v3407
  %3431 = vmatprep.subr.bf16.mxu0 0
  %3432 = vmatpush1.bf16.msra.mxu0 %v3408
  %3433 = vmatprep.subr.bf16.mxu0 0
  %3434 = vmatpush1.bf16.msra.mxu0 0
  %3435 = vmatprep.subr.bf16.mxu0 0
  %3436 = vmatpush1.bf16.msra.mxu0 0
  %3437 = vmatprep.subr.bf16.mxu0 0
  %3438 = vmatpush1.bf16.msra.mxu0 0
  %3439 = vmatprep.subr.bf16.mxu0 0
  %3440 = vmatpush1.bf16.msra.mxu0 0
  %3441 = vmatprep.subr.bf16.mxu0 0
  %3442 = vmatpush1.bf16.msra.mxu0 0
  %3443 = vmatprep.subr.bf16.mxu0 0
  %3444 = vmatpush1.bf16.msra.mxu0 0
  %3445 = vmatprep.subr.bf16.mxu0 0
  %3446 = vmatpush1.bf16.msra.mxu0 0
  %3447 = vmatprep.subr.bf16.mxu0 0
  %3448 = vmatpush1.bf16.msra.mxu0 0
  %3449 = vmatprep.mubr.bf16.mxu0 0
  %3450 = vmatmul.mubr.bf16.gmra.mrb[0].mxu0 %v3352
  %v3451 = vpop.f32.mrb[0].mxu0
  %v3452 = vadd.f32 0.0, %v3451
  %v3453 = vpop.f32.mrb[0].mxu0
  %v3454 = vpop.f32.mrb[0].mxu0
  %v3455 = vadd.f32 0.0, %v3454
  %v3456 = vpop.f32.mrb[0].mxu0
  %3457 = vmatprep.mubr.bf16.mxu0 0
  %3458 = vmatmul.mubr.bf16.gmra.mrb[0].mxu0 %v3354
  %v3459 = vpop.f32.mrb[0].mxu0
  %v3460 = vadd.f32 0.0, %v3459
  %v3461 = vpop.f32.mrb[0].mxu0
  %v3462 = vpop.f32.mrb[0].mxu0
  %v3463 = vadd.f32 0.0, %v3462
  %v3464 = vpop.f32.mrb[0].mxu0
  %3465 = vmatprep.mubr.bf16.mxu0 0
  %3466 = vmatmul.mubr.bf16.gmra.mrb[0].mxu0 %v3356
  %v3467 = vpop.f32.mrb[0].mxu0
  %v3468 = vadd.f32 0.0, %v3467
  %v3469 = vpop.f32.mrb[0].mxu0
  %v3470 = vpop.f32.mrb[0].mxu0
  %v3471 = vadd.f32 0.0, %v3470
  %v3472 = vpop.f32.mrb[0].mxu0
  %3473 = vmatprep.mubr.bf16.mxu0 0
  %3474 = vmatmul.mubr.bf16.gmra.mrb[0].mxu0 %v3358
  %v3475 = vpop.f32.mrb[0].mxu0
  %v3476 = vadd.f32 0.0, %v3475
  %v3477 = vpop.f32.mrb[0].mxu0
  %v3478 = vpop.f32.mrb[0].mxu0
  %v3479 = vadd.f32 0.0, %v3478
  %v3480 = vpop.f32.mrb[0].mxu0
  %3481 = vmatprep.mubr.bf16.mxu0 0
  %3482 = vmatmul.mubr.bf16.gmra.mrb[0].mxu0 %v3360
  %v3483 = vpop.f32.mrb[0].mxu0
  %v3484 = vadd.f32 0.0, %v3483
  %v3485 = vpop.f32.mrb[0].mxu0
  %v3486 = vpop.f32.mrb[0].mxu0
  %v3487 = vadd.f32 0.0, %v3486
  %v3488 = vpop.f32.mrb[0].mxu0
  %3489 = vmatprep.mubr.bf16.mxu0 0
  %3490 = vmatmul.mubr.bf16.gmra.mrb[0].mxu0 %v3362
  %v3491 = vpop.f32.mrb[0].mxu0
  %v3492 = vadd.f32 0.0, %v3491
  %v3493 = vpop.f32.mrb[0].mxu0
  %v3494 = vpop.f32.mrb[0].mxu0
  %v3495 = vadd.f32 0.0, %v3494
  %v3496 = vpop.f32.mrb[0].mxu0
  %3497 = vdwg.mxu0
  %v3498 = vadd.f32 %v3313, %v3452
  %v3499 = vadd.f32 %v3314, %v3455
  %v3500 = vadd.f32 %v3315, %v3460
  %v3501 = vadd.f32 %v3316, %v3463
  %v3502 = vadd.f32 %v3317, %v3468
  %v3503 = vadd.f32 %v3318, %v3471
  %v3504 = vadd.f32 %v3319, %v3476
  %v3505 = vadd.f32 %v3320, %v3479
  %v3506 = vadd.f32 %v3321, %v3484
  %v3507 = vadd.f32 %v3322, %v3487
  %v3508 = vadd.f32 %v3323, %v3492
  %v3509 = vadd.f32 %v3324, %v3495
  %v3510 = vld [vmem:[#allocation3 + $0x38] sm:$0x1f]
  %s3511 = scalar_lea.vmem %s5, 512
  %v3512 = vld [vmem:[%s3511] sm:$0xf]
  %v3513 = vld [vmem:[%s3511 + $0x4] sm:$0xf]
  %v3514 = vld [vmem:[%s3511 + $0x8] sm:$0xf]
  %v3515 = vld [vmem:[%s3511 + $0xc] sm:$0xf]
  %v3516 = vld [vmem:[%s3511 + $0x10] sm:$0xf]
  %v3517 = vld [vmem:[%s3511 + $0x14] sm:$0xf]
  %v3518 = vld [vmem:[%s3511 + $0x18] sm:$0xf]
  %v3519 = vld [vmem:[%s3511 + $0x1c] sm:$0xf]
  %v3520 = vld [vmem:[%s3511 + $0x20] sm:$0xf]
  %v3521 = vld [vmem:[%s3511 + $0x24] sm:$0xf]
  %v3522 = vld [vmem:[%s3511 + $0x28] sm:$0xf]
  %v3523 = vld [vmem:[%s3511 + $0x2c] sm:$0xf]
  %v3524 = vld [vmem:[%s3511 + $0x30] sm:$0xf]
  %v3525 = vld [vmem:[%s3511 + $0x34] sm:$0xf]
  %v3526 = vld [vmem:[%s3511 + $0x38] sm:$0xf]
  %v3527 = vld [vmem:[%s3511 + $0x3c] sm:$0xf]
  %v3529 = vshrl.u32 %v3325, 16
  %v3531 = vrot.slane %v3529, 4
  %v3532 = vshll.u32 %v3325, 16
  %v3534 = vrot.slane %v3532, 5
  %v3535 = vor.u32 %v3531, %v3534
  %v3536 = vrot.slane %v2935, 4
  %v3537 = vrot.slane %v2931, 5
  %v3538 = vor.u32 %v3536, %v3537
  %v3539 = vsel %vm679, %v3535, %v3538
  %v3540 = vrot.slane %v2943, 4
  %v3541 = vrot.slane %v2939, 5
  %v3542 = vor.u32 %v3540, %v3541
  %v3543 = vsel %vm679, %v3538, %v3542
  %v3544 = vrot.slane %v2951, 4
  %v3545 = vrot.slane %v2947, 5
  %v3546 = vor.u32 %v3544, %v3545
  %v3547 = vsel %vm679, %v3542, %v3546
  %v3548 = vrot.slane %v2959, 4
  %v3549 = vrot.slane %v2955, 5
  %v3550 = vor.u32 %v3548, %v3549
  %v3551 = vsel %vm679, %v3546, %v3550
  %v3552 = vrot.slane %v2967, 4
  %v3553 = vrot.slane %v2963, 5
  %v3554 = vor.u32 %v3552, %v3553
  %v3555 = vsel %vm679, %v3550, %v3554
  %v3557 = vshrl.u32 %v3510, 16
  %v3559 = vrot.slane %v3557, 4
  %v3560 = vshll.u32 %v3510, 16
  %v3562 = vrot.slane %v3560, 5
  %v3563 = vor.u32 %v3559, %v3562
  %v3564 = vsel %vm679, %v3554, %v3563
  %v3587 = vunpack.c.l.b16 %v3512
  %v3588 = vunpack.c.l.b16 %v3513
  %v3589 = vunpack.c.l.b16 %v3514
  %v3590 = vunpack.c.l.b16 %v3515
  %v3591 = vunpack.c.l.b16 %v3516
  %v3592 = vunpack.c.l.b16 %v3517
  %v3593 = vunpack.c.l.b16 %v3518
  %v3594 = vunpack.c.l.b16 %v3519
  %v3595 = vunpack.c.l.b16 %v3520
  %v3596 = vunpack.c.l.b16 %v3521
  %v3597 = vunpack.c.l.b16 %v3522
  %v3598 = vunpack.c.l.b16 %v3523
  %v3599 = vunpack.c.l.b16 %v3524
  %v3600 = vunpack.c.l.b16 %v3525
  %v3601 = vunpack.c.l.b16 %v3526
  %v3602 = vunpack.c.l.b16 %v3527
  %v3603 = vpack.c.b16 %v3588, %v3587
  %v3604 = vpack.c.b16 %v3590, %v3589
  %v3605 = vpack.c.b16 %v3592, %v3591
  %v3606 = vpack.c.b16 %v3594, %v3593
  %v3607 = vpack.c.b16 %v3596, %v3595
  %v3608 = vpack.c.b16 %v3598, %v3597
  %v3609 = vpack.c.b16 %v3600, %v3599
  %v3610 = vpack.c.b16 %v3602, %v3601
  %3619 = vmatprep.subr.bf16.mxu0 0
  %3620 = vmatpush1.bf16.msra.mxu0 %v3603
  %3621 = vmatprep.subr.bf16.mxu0 0
  %3622 = vmatpush1.bf16.msra.mxu0 %v3604
  %3623 = vmatprep.subr.bf16.mxu0 0
  %3624 = vmatpush1.bf16.msra.mxu0 %v3605
  %3625 = vmatprep.subr.bf16.mxu0 0
  %3626 = vmatpush1.bf16.msra.mxu0 %v3606
  %3627 = vmatprep.subr.bf16.mxu0 0
  %3628 = vmatpush1.bf16.msra.mxu0 %v3607
  %3629 = vmatprep.subr.bf16.mxu0 0
  %3630 = vmatpush1.bf16.msra.mxu0 %v3608
  %3631 = vmatprep.subr.bf16.mxu0 0
  %3632 = vmatpush1.bf16.msra.mxu0 %v3609
  %3633 = vmatprep.subr.bf16.mxu0 0
  %3634 = vmatpush1.bf16.msra.mxu0 %v3610
  %3635 = vmatprep.subr.bf16.mxu0 0
  %3636 = vmatpush1.bf16.msra.mxu0 0
  %3637 = vmatprep.subr.bf16.mxu0 0
  %3638 = vmatpush1.bf16.msra.mxu0 0
  %3639 = vmatprep.subr.bf16.mxu0 0
  %3640 = vmatpush1.bf16.msra.mxu0 0
  %3641 = vmatprep.subr.bf16.mxu0 0
  %3642 = vmatpush1.bf16.msra.mxu0 0
  %3643 = vmatprep.subr.bf16.mxu0 0
  %3644 = vmatpush1.bf16.msra.mxu0 0
  %3645 = vmatprep.subr.bf16.mxu0 0
  %3646 = vmatpush1.bf16.msra.mxu0 0
  %3647 = vmatprep.subr.bf16.mxu0 0
  %3648 = vmatpush1.bf16.msra.mxu0 0
  %3649 = vmatprep.subr.bf16.mxu0 0
  %3650 = vmatpush1.bf16.msra.mxu0 0
  %3651 = vmatprep.mubr.bf16.mxu0 0
  %3652 = vmatmul.mubr.bf16.gmra.mrb[0].mxu0 %v3539
  %v3653 = vpop.f32.mrb[0].mxu0
  %v3654 = vadd.f32 0.0, %v3653
  %v3655 = vpop.f32.mrb[0].mxu0
  %v3656 = vpop.f32.mrb[0].mxu0
  %v3657 = vadd.f32 0.0, %v3656
  %v3658 = vpop.f32.mrb[0].mxu0
  %3659 = vmatprep.mubr.bf16.mxu0 0
  %3660 = vmatmul.mubr.bf16.gmra.mrb[0].mxu0 %v3543
  %v3661 = vpop.f32.mrb[0].mxu0
  %v3662 = vadd.f32 0.0, %v3661
  %v3663 = vpop.f32.mrb[0].mxu0
  %v3664 = vpop.f32.mrb[0].mxu0
  %v3665 = vadd.f32 0.0, %v3664
  %v3666 = vpop.f32.mrb[0].mxu0
  %3667 = vmatprep.mubr.bf16.mxu0 0
  %3668 = vmatmul.mubr.bf16.gmra.mrb[0].mxu0 %v3547
  %v3669 = vpop.f32.mrb[0].mxu0
  %v3670 = vadd.f32 0.0, %v3669
  %v3671 = vpop.f32.mrb[0].mxu0
  %v3672 = vpop.f32.mrb[0].mxu0
  %v3673 = vadd.f32 0.0, %v3672
  %v3674 = vpop.f32.mrb[0].mxu0
  %3675 = vmatprep.mubr.bf16.mxu0 0
  %3676 = vmatmul.mubr.bf16.gmra.mrb[0].mxu0 %v3551
  %v3677 = vpop.f32.mrb[0].mxu0
  %v3678 = vadd.f32 0.0, %v3677
  %v3679 = vpop.f32.mrb[0].mxu0
  %v3680 = vpop.f32.mrb[0].mxu0
  %v3681 = vadd.f32 0.0, %v3680
  %v3682 = vpop.f32.mrb[0].mxu0
  %3683 = vmatprep.mubr.bf16.mxu0 0
  %3684 = vmatmul.mubr.bf16.gmra.mrb[0].mxu0 %v3555
  %v3685 = vpop.f32.mrb[0].mxu0
  %v3686 = vadd.f32 0.0, %v3685
  %v3687 = vpop.f32.mrb[0].mxu0
  %v3688 = vpop.f32.mrb[0].mxu0
  %v3689 = vadd.f32 0.0, %v3688
  %v3690 = vpop.f32.mrb[0].mxu0
  %3691 = vmatprep.mubr.bf16.mxu0 0
  %3692 = vmatmul.mubr.bf16.gmra.mrb[0].mxu0 %v3564
  %v3693 = vpop.f32.mrb[0].mxu0
  %v3694 = vadd.f32 0.0, %v3693
  %v3695 = vpop.f32.mrb[0].mxu0
  %v3696 = vpop.f32.mrb[0].mxu0
  %v3697 = vadd.f32 0.0, %v3696
  %v3698 = vpop.f32.mrb[0].mxu0
  %3699 = vdwg.mxu0
  %v3700 = vadd.f32 %v3498, %v3654
  %v3701 = vadd.f32 %v3499, %v3657
  %v3702 = vadd.f32 %v3500, %v3662
  %v3703 = vadd.f32 %v3501, %v3665
  %v3704 = vadd.f32 %v3502, %v3670
  %v3705 = vadd.f32 %v3503, %v3673
  %v3706 = vadd.f32 %v3504, %v3678
  %v3707 = vadd.f32 %v3505, %v3681
  %v3708 = vadd.f32 %v3506, %v3686
  %v3709 = vadd.f32 %v3507, %v3689
  %v3710 = vadd.f32 %v3508, %v3694
  %v3711 = vadd.f32 %v3509, %v3697
  %v3712 = vld [vmem:[%s6] sm:$0x1]
  %v3714 = vlaneseq
  %v3715 = vshrl.u32 %v3714, 7
  %v3716 = vsub.s32 0, %v3715
  %v3717 = vrot.slane %v3712, %v3716
  %v3719 = vadd.f32 %v3700, %v3717
  %v3720 = vadd.f32 %v3701, %v3717
  %v3721 = vadd.f32 %v3702, %v3717
  %v3722 = vadd.f32 %v3703, %v3717
  %v3723 = vadd.f32 %v3704, %v3717
  %v3724 = vadd.f32 %v3705, %v3717
  %v3725 = vadd.f32 %v3706, %v3717
  %v3726 = vadd.f32 %v3707, %v3717
  %v3727 = vadd.f32 %v3708, %v3717
  %v3728 = vadd.f32 %v3709, %v3717
  %v3729 = vadd.f32 %v3710, %v3717
  %v3730 = vadd.f32 %v3711, %v3717
  %v3731 = vmax.f32 %v3719, 0.0
  %v3732 = vmax.f32 %v3720, 0.0
  %v3733 = vmax.f32 %v3721, 0.0
  %v3734 = vmax.f32 %v3722, 0.0
  %v3735 = vmax.f32 %v3723, 0.0
  %v3736 = vmax.f32 %v3724, 0.0
  %v3737 = vmax.f32 %v3725, 0.0
  %v3738 = vmax.f32 %v3726, 0.0
  %v3739 = vmax.f32 %v3727, 0.0
  %v3740 = vmax.f32 %v3728, 0.0
  %v3741 = vmax.f32 %v3729, 0.0
  %v3742 = vmax.f32 %v3730, 0.0
  %v3743 = vpack.c.bf16 %v3732, %v3731
  %v3744 = vpack.c.bf16 %v3734, %v3733
  %v3745 = vpack.c.bf16 %v3736, %v3735
  %v3746 = vpack.c.bf16 %v3738, %v3737
  %v3747 = vpack.c.bf16 %v3740, %v3739
  %v3748 = vpack.c.bf16 %v3742, %v3741
  %v3749 = vld [vmem:[%s7] sm:$0xf]
  %v3750 = vld [vmem:[%s7 + $0x4] sm:$0xf]
  %v3751 = vld [vmem:[%s7 + $0x8] sm:$0xf]
  %v3752 = vld [vmem:[%s7 + $0xc] sm:$0xf]
  %v3753 = vld [vmem:[%s7 + $0x10] sm:$0xf]
  %v3754 = vld [vmem:[%s7 + $0x14] sm:$0xf]
  %v3755 = vld [vmem:[%s7 + $0x18] sm:$0xf]
  %v3756 = vld [vmem:[%s7 + $0x1c] sm:$0xf]
  %v3757 = vld [vmem:[%s7 + $0x20] sm:$0xf]
  %v3758 = vld [vmem:[%s7 + $0x24] sm:$0xf]
  %v3759 = vld [vmem:[%s7 + $0x28] sm:$0xf]
  %v3760 = vld [vmem:[%s7 + $0x2c] sm:$0xf]
  %v3761 = vld [vmem:[%s7 + $0x30] sm:$0xf]
  %v3762 = vld [vmem:[%s7 + $0x34] sm:$0xf]
  %v3763 = vld [vmem:[%s7 + $0x38] sm:$0xf]
  %v3764 = vld [vmem:[%s7 + $0x3c] sm:$0xf]
  %v3765 = vld [vmem:[%s8] sm:$0x1]
  %v3767 = vlaneseq
  %v3768 = vshrl.u32 %v3767, 7
  %v3769 = vsub.s32 0, %v3768
  %v3770 = vrot.slane %v3765, %v3769
  %v3788 = vunpack.c.l.b16 %v3749
  %v3789 = vunpack.c.l.b16 %v3750
  %v3790 = vunpack.c.l.b16 %v3751
  %v3791 = vunpack.c.l.b16 %v3752
  %v3792 = vunpack.c.l.b16 %v3753
  %v3793 = vunpack.c.l.b16 %v3754
  %v3794 = vunpack.c.l.b16 %v3755
  %v3795 = vunpack.c.l.b16 %v3756
  %v3796 = vunpack.c.l.b16 %v3757
  %v3797 = vunpack.c.l.b16 %v3758
  %v3798 = vunpack.c.l.b16 %v3759
  %v3799 = vunpack.c.l.b16 %v3760
  %v3800 = vunpack.c.l.b16 %v3761
  %v3801 = vunpack.c.l.b16 %v3762
  %v3802 = vunpack.c.l.b16 %v3763
  %v3803 = vunpack.c.l.b16 %v3764
  %v3804 = vpack.c.b16 %v3789, %v3788
  %v3805 = vpack.c.b16 %v3791, %v3790
  %v3806 = vpack.c.b16 %v3793, %v3792
  %v3807 = vpack.c.b16 %v3795, %v3794
  %v3808 = vpack.c.b16 %v3797, %v3796
  %v3809 = vpack.c.b16 %v3799, %v3798
  %v3810 = vpack.c.b16 %v3801, %v3800
  %v3811 = vpack.c.b16 %v3803, %v3802
  %3820 = vmatprep.subr.bf16.mxu0 0
  %3821 = vmatpush1.bf16.msra.mxu0 %v3804
  %3822 = vmatprep.subr.bf16.mxu0 0
  %3823 = vmatpush1.bf16.msra.mxu0 %v3805
  %3824 = vmatprep.subr.bf16.mxu0 0
  %3825 = vmatpush1.bf16.msra.mxu0 %v3806
  %3826 = vmatprep.subr.bf16.mxu0 0
  %3827 = vmatpush1.bf16.msra.mxu0 %v3807
  %3828 = vmatprep.subr.bf16.mxu0 0
  %3829 = vmatpush1.bf16.msra.mxu0 %v3808
  %3830 = vmatprep.subr.bf16.mxu0 0
  %3831 = vmatpush1.bf16.msra.mxu0 %v3809
  %3832 = vmatprep.subr.bf16.mxu0 0
  %3833 = vmatpush1.bf16.msra.mxu0 %v3810
  %3834 = vmatprep.subr.bf16.mxu0 0
  %3835 = vmatpush1.bf16.msra.mxu0 %v3811
  %3836 = vmatprep.subr.bf16.mxu0 0
  %3837 = vmatpush1.bf16.msra.mxu0 0
  %3838 = vmatprep.subr.bf16.mxu0 0
  %3839 = vmatpush1.bf16.msra.mxu0 0
  %3840 = vmatprep.subr.bf16.mxu0 0
  %3841 = vmatpush1.bf16.msra.mxu0 0
  %3842 = vmatprep.subr.bf16.mxu0 0
  %3843 = vmatpush1.bf16.msra.mxu0 0
  %3844 = vmatprep.subr.bf16.mxu0 0
  %3845 = vmatpush1.bf16.msra.mxu0 0
  %3846 = vmatprep.subr.bf16.mxu0 0
  %3847 = vmatpush1.bf16.msra.mxu0 0
  %3848 = vmatprep.subr.bf16.mxu0 0
  %3849 = vmatpush1.bf16.msra.mxu0 0
  %3850 = vmatprep.subr.bf16.mxu0 0
  %3851 = vmatpush1.bf16.msra.mxu0 0
  %3852 = vmatprep.mubr.bf16.mxu0 0
  %3853 = vmatmul.mubr.bf16.gmra.mrb[0].mxu0 %v3743
  %v3854 = vpop.f32.mrb[0].mxu0
  %v3855 = vadd.f32 %v3770, %v3854
  %v3856 = vpop.f32.mrb[0].mxu0
  %v3857 = vpop.f32.mrb[0].mxu0
  %v3858 = vadd.f32 %v3770, %v3857
  %v3859 = vpop.f32.mrb[0].mxu0
  %3860 = vmatprep.mubr.bf16.mxu0 0
  %3861 = vmatmul.mubr.bf16.gmra.mrb[0].mxu0 %v3744
  %v3862 = vpop.f32.mrb[0].mxu0
  %v3863 = vadd.f32 %v3770, %v3862
  %v3864 = vpop.f32.mrb[0].mxu0
  %v3865 = vpop.f32.mrb[0].mxu0
  %v3866 = vadd.f32 %v3770, %v3865
  %v3867 = vpop.f32.mrb[0].mxu0
  %3868 = vmatprep.mubr.bf16.mxu0 0
  %3869 = vmatmul.mubr.bf16.gmra.mrb[0].mxu0 %v3745
  %v3870 = vpop.f32.mrb[0].mxu0
  %v3871 = vadd.f32 %v3770, %v3870
  %v3872 = vpop.f32.mrb[0].mxu0
  %v3873 = vpop.f32.mrb[0].mxu0
  %v3874 = vadd.f32 %v3770, %v3873
  %v3875 = vpop.f32.mrb[0].mxu0
  %3876 = vmatprep.mubr.bf16.mxu0 0
  %3877 = vmatmul.mubr.bf16.gmra.mrb[0].mxu0 %v3746
  %v3878 = vpop.f32.mrb[0].mxu0
  %v3879 = vadd.f32 %v3770, %v3878
  %v3880 = vpop.f32.mrb[0].mxu0
  %v3881 = vpop.f32.mrb[0].mxu0
  %v3882 = vadd.f32 %v3770, %v3881
  %v3883 = vpop.f32.mrb[0].mxu0
  %3884 = vmatprep.mubr.bf16.mxu0 0
  %3885 = vmatmul.mubr.bf16.gmra.mrb[0].mxu0 %v3747
  %v3886 = vpop.f32.mrb[0].mxu0
  %v3887 = vadd.f32 %v3770, %v3886
  %v3888 = vpop.f32.mrb[0].mxu0
  %v3889 = vpop.f32.mrb[0].mxu0
  %v3890 = vadd.f32 %v3770, %v3889
  %v3891 = vpop.f32.mrb[0].mxu0
  %3892 = vmatprep.mubr.bf16.mxu0 0
  %3893 = vmatmul.mubr.bf16.gmra.mrb[0].mxu0 %v3748
  %v3894 = vpop.f32.mrb[0].mxu0
  %v3895 = vadd.f32 %v3770, %v3894
  %v3896 = vpop.f32.mrb[0].mxu0
  %v3897 = vpop.f32.mrb[0].mxu0
  %v3898 = vadd.f32 %v3770, %v3897
  %v3899 = vpop.f32.mrb[0].mxu0
  %3900 = vdwg.mxu0
  %3901 = vst [vmem:[%s10] sm:$0xff] %v3855
  %3902 = vst [vmem:[%s10 + $0x8] sm:$0xff] %v3858
  %3903 = vst [vmem:[%s10 + $0x10] sm:$0xff] %v3863
  %3904 = vst [vmem:[%s10 + $0x18] sm:$0xff] %v3866
  %3905 = vst [vmem:[%s10 + $0x20] sm:$0xff] %v3871
  %3906 = vst [vmem:[%s10 + $0x28] sm:$0xff] %v3874
  %3907 = vst [vmem:[%s10 + $0x30] sm:$0xff] %v3879
  %3908 = vst [vmem:[%s10 + $0x38] sm:$0xff] %v3882
  %3909 = vst [vmem:[%s10 + $0x40] sm:$0xff] %v3887
  %3910 = vst [vmem:[%s10 + $0x48] sm:$0xff] %v3890
  %3911 = vst [vmem:[%s10 + $0x50] sm:$0xff] %v3895
  %3912 = vst [vmem:[%s10 + $0x58] sm:$0xff] %v3898
  // Predicated region
  $region42: #{forward.1} parent=0 // pred_check
    _
  $region43: #{forward.1} parent=0 // pred_check_branch
    %3914 = sbr.rel (0) target = $region45
  $region44: #{forward.1} parent=0 // pred_region
    _
  $region45: #{forward.1} parent=0 // pred_fallthru
    _
  // Predicated region
  $region46: #{forward.1} parent=0 // pred_check
    _
  $region47: #{forward.1} parent=0 // pred_check_branch
    %3916 = sbr.rel (0) target = $region49
  $region48: #{forward.1} parent=0 // pred_region
    _
  $region49: #{forward.1} parent=0 // pred_fallthru
    _

</llo_original>
